<compile_context>
chip_gen: v6e
topology: v6e:2x2x1
jax: 0.10.0
libtpu: 0.0.40
codegen_flags: <defaults>
</compile_context>

<pallas_src>
import jax
import jax.numpy as jnp
import numpy as np
from jax import lax
from jax.experimental import pallas as pl
from jax.experimental.pallas import tpu as pltpu

# ----------------------------- configuration -----------------------------
B = 2                       # batch
S, H, W = 4, 4, 4           # input_resolution
C = 32                      # dim
NUM_HEADS = 4
HEAD_DIM = C // NUM_HEADS
MLP_RATIO = 4.0
HIDDEN = int(C * MLP_RATIO)
WINDOW_SIZE = min(S, H, W)  # module clamps window_size to min(res)
SHIFT_SIZE = 0
N = WINDOW_SIZE ** 3        # tokens per window
L = S * H * W
M = B * L                   # batch-folded token rows (= 128)
SCALE = HEAD_DIM ** (-0.5)
LN_EPS = 1e-5
PREC = jax.lax.Precision.HIGHEST   # reference only

# f32 constant-bank row layout (every row is 128 lanes wide)
(_R_G1, _R_BE1, _R_G2, _R_BE2, _R_BQ, _R_BP, _R_GN2, _R_BEN2, _R_B2,
 _R_BKV, _R_B1) = range(11)
_R_BIAS = 16                                  # 8-aligned start row for bias
FB_ROWS = _R_BIAS + NUM_HEADS * N             # 16 + 256 = 272


# ----------------------------- glue: windows ------------------------------
def window_partition(x, ws):
    b, s, h, w, c = x.shape
    x = x.reshape(b, s // ws, ws, h // ws, ws, w // ws, ws, c)
    return jnp.transpose(x, (0, 1, 3, 5, 2, 4, 6, 7)).reshape(-1, ws, ws, ws, c)


def window_reverse(windows, ws, s, h, w):
    b = windows.shape[0] // (s * h * w // ws // ws // ws)
    x = windows.reshape(b, s // ws, h // ws, w // ws, ws, ws, ws, -1)
    return jnp.transpose(x, (0, 1, 4, 2, 5, 3, 6, 7)).reshape(b, s, h, w, -1)


def relative_position_index(ws):
    # Faithful reproduction of the (quirky) PyTorch index computation.
    coords = np.stack(np.meshgrid(np.arange(ws), np.arange(ws), np.arange(ws),
                                  indexing="ij"))
    cf = coords.reshape(3, -1)
    rel = cf[:, :, None] - cf[:, None, :]
    rel = rel.transpose(1, 2, 0).astype(np.int64)
    rel[:, :, 0] += ws - 1
    rel[:, :, 1] += ws - 1
    rel[:, :, 2] += ws - 1
    rel[:, :, 0] *= 3 * ws - 1
    rel[:, :, 1] *= 2 * ws - 1
    return rel.sum(-1)                     # (N, N)


# ----------------------------- Pallas kernel -------------------------------
def _layernorm(x, gamma, beta):
    mu = jnp.mean(x, axis=-1, keepdims=True)
    var = jnp.mean((x - mu) ** 2, axis=-1, keepdims=True)
    return (x - mu) * lax.rsqrt(var + LN_EPS) * gamma + beta


def swin_block_kernel(x1_ref, x2_ref, fb_ref, wb_ref, w2_ref, hm_ref, o_ref):
    f32, bf16 = jnp.float32, jnp.bfloat16

    x1 = x1_ref[...].astype(f32)             # (M, C), batch folded on sublanes
    x2 = x2_ref[...].astype(f32)

    # ---- resident constant banks, static slices (loaded once) ----
    g1, be1 = fb_ref[_R_G1:_R_G1 + 1, 0:C], fb_ref[_R_BE1:_R_BE1 + 1, 0:C]
    g2, be2 = fb_ref[_R_G2:_R_G2 + 1, 0:C], fb_ref[_R_BE2:_R_BE2 + 1, 0:C]
    bq, bp = fb_ref[_R_BQ:_R_BQ + 1, 0:C], fb_ref[_R_BP:_R_BP + 1, 0:C]
    gn2, ben2 = fb_ref[_R_GN2:_R_GN2 + 1, 0:C], fb_ref[_R_BEN2:_R_BEN2 + 1, 0:C]
    b2 = fb_ref[_R_B2:_R_B2 + 1, 0:C]
    bkv = fb_ref[_R_BKV:_R_BKV + 1, 0:2 * C]
    b1 = fb_ref[_R_B1:_R_B1 + 1, :]
    bias = fb_ref[_R_BIAS:_R_BIAS + NUM_HEADS * N, 0:N]      # (4N, N) f32
    hmask = hm_ref[...]                                       # (4N, C) f32

    wq = wb_ref[:, 0:C]                      # (C, C)      bf16
    wkv = wb_ref[:, C:3 * C]                 # (C, 2C)     bf16  (fused k|v)
    wp = wb_ref[:, 3 * C:4 * C]              # (C, C)      bf16
    w1 = wb_ref[:, 4 * C:4 * C + HIDDEN]     # (C, HIDDEN) bf16

    # ---- pre-norms (f32); bf16 MXU operands with f32 accumulation ----
    x1n = _layernorm(x1, g1, be1).astype(bf16)
    x2n = _layernorm(x2, g2, be2).astype(bf16)

    q = (jnp.dot(x1n, wq, preferred_element_type=f32) + bq) * SCALE   # (M, C)
    kv = jnp.dot(x2n, wkv, preferred_element_type=f32) + bkv          # (M, 2C)
    k = kv[:, 0:C].astype(bf16)
    v = kv[:, C:2 * C].astype(bf16)

    # ---- windowed attention: one window == one batch element here ----
    att_rows = []
    for b in range(B):
        qb = q[b * N:(b + 1) * N]            # (N, C) f32
        kb = k[b * N:(b + 1) * N]            # (N, C) bf16
        vb = v[b * N:(b + 1) * N]            # (N, C) bf16

        # heads stacked along sublanes with a precomputed head mask:
        # one score matmul for all 4 heads, (4N, C) x (N, C)^T -> (4N, N).
        qs = (jnp.concatenate([qb] * NUM_HEADS, axis=0) * hmask).astype(bf16)
        s = lax.dot_general(qs, kb, (((1,), (1,)), ((), ())),
                            preferred_element_type=f32)               # (4N, N)
        s = s + bias
        s = s - jnp.max(s, axis=-1, keepdims=True)
        e = jnp.exp(s)
        denom = jnp.sum(e, axis=-1, keepdims=True)
        p = (e * pl.reciprocal(denom, approx=False)).astype(bf16)     # (4N, N)

        # single attn@V matmul with UNMASKED V, then head-select-sum (VALU).
        att_full = jnp.dot(p, vb, preferred_element_type=f32)         # (4N, C)
        ab = att_full[0:N] * hmask[0:N]
        for h in range(1, NUM_HEADS):
            ab = ab + att_full[h * N:(h + 1) * N] * hmask[h * N:(h + 1) * N]
        att_rows.append(ab)                                           # (N, C)

    att = jnp.concatenate(att_rows, axis=0)                           # (M, C)
    att = jnp.dot(att.astype(bf16), wp, preferred_element_type=f32) + bp

    # ---- residual + LN + MLP (exact GELU) + residual ----
    y = x1 + att
    yn = _layernorm(y, gn2, ben2).astype(bf16)
    h1 = jnp.dot(yn, w1, preferred_element_type=f32) + b1             # (M, HIDDEN)
    h1 = 0.5 * h1 * (1.0 + lax.erf(h1 * 0.7071067811865476))
    m = jnp.dot(h1.astype(bf16), w2_ref[...], preferred_element_type=f32) + b2

    o_ref[...] = (y + m).astype(o_ref.dtype)


# ----------------------------- wrapper -------------------------------------
def swin_block_forward(x1, x2, params, rel_bias):
    # At these shapes the window partition/reverse are identities (one window
    # spans the whole (S,H,W) volume of each batch element), shift_size == 0
    # and there is no padding, so the whole block runs in one fused step.
    assert WINDOW_SIZE == S == H == W and SHIFT_SIZE == 0 and L == N

    x1f = x1.reshape(M, C)
    x2f = x2.reshape(M, C)

    def pad128(v):
        return jnp.pad(v, ((0, 0), (0, 128 - v.shape[1])))

    # One f32 constants bank: LN params, biases, fused kv bias, mlp bias, and
    # the relative-position bias (rows start at an 8-aligned offset).
    fbank = jnp.concatenate(
        [pad128(params["g1"]), pad128(params["be1"]),
         pad128(params["g2"]), pad128(params["be2"]),
         pad128(params["bq"]), pad128(params["bp"]),
         pad128(params["gn2"]), pad128(params["ben2"]),
         pad128(params["b2"]),
         pad128(jnp.concatenate([params["bk"], params["bv"]], axis=1)),
         pad128(params["b1"]),
         jnp.zeros((_R_BIAS - 11, 128), jnp.float32),
         pad128(rel_bias.reshape(NUM_HEADS * N, N).astype(jnp.float32))],
        axis=0)                                            # (FB_ROWS, 128)

    # Lane-dense bf16 weight bank: [wq | wk | wv | wp | w1] -> (C, 4C+HIDDEN).
    wbank = jnp.concatenate(
        [params["wq"], params["wk"], params["wv"], params["wp"], params["w1"]],
        axis=1).astype(jnp.bfloat16)                       # (32, 256)
    w2 = params["w2"].astype(jnp.bfloat16)                 # (HIDDEN, C)

    # Host-precomputed head mask: hmask[h*N+n, c] = 1 iff c // HEAD_DIM == h.
    hmask = ((jnp.arange(NUM_HEADS * N)[:, None] // N)
             == (jnp.arange(C)[None, :] // HEAD_DIM)).astype(jnp.float32)

    full = lambda shape: pl.BlockSpec(shape, lambda i: (0,) * len(shape))
    out = pl.pallas_call(
        swin_block_kernel,
        out_shape=jax.ShapeDtypeStruct((M, C), jnp.float32),
        grid=(1,),
        in_specs=[
            full((M, C)),                       # x1 (batch-folded)
            full((M, C)),                       # x2
            full((FB_ROWS, 128)),               # f32 constants bank
            full((C, 4 * C + HIDDEN)),          # bf16 weight bank
            full((HIDDEN, C)),                  # w2
            full((NUM_HEADS * N, C)),           # head mask
        ],
        out_specs=full((M, C)),
        compiler_params=pltpu.CompilerParams(
            dimension_semantics=("arbitrary",)),
    )(x1f, x2f, fbank, wbank, w2, hmask)
    return out.reshape(B, L, C)


# ----------------------------- pure-JAX reference --------------------------
def reference_forward(x1, x2, params, rel_bias):
    def ln(x, g, b):
        mu = jnp.mean(x, -1, keepdims=True)
        var = jnp.mean((x - mu) ** 2, -1, keepdims=True)
        return (x - mu) / jnp.sqrt(var + LN_EPS) * g + b

    dot = lambda a, b: jnp.dot(a, b, precision=PREC)

    shortcut = x1
    x1n = ln(x1, params["g1"][0], params["be1"][0]).reshape(B, S, H, W, C)
    x2n = ln(x2, params["g2"][0], params["be2"][0]).reshape(B, S, H, W, C)
    x1w = window_partition(x1n, WINDOW_SIZE).reshape(-1, N, C)
    x2w = window_partition(x2n, WINDOW_SIZE).reshape(-1, N, C)

    q = dot(x1w, params["wq"]) + params["bq"][0]
    k = dot(x2w, params["wk"]) + params["bk"][0]
    v = dot(x2w, params["wv"]) + params["bv"][0]
    Bn = q.shape[0]
    qh = q.reshape(Bn, N, NUM_HEADS, HEAD_DIM).transpose(0, 2, 1, 3) * SCALE
    kh = k.reshape(Bn, N, NUM_HEADS, HEAD_DIM).transpose(0, 2, 1, 3)
    vh = v.reshape(Bn, N, NUM_HEADS, HEAD_DIM).transpose(0, 2, 1, 3)
    attn = jnp.einsum("bhnd,bhmd->bhnm", qh, kh, precision=PREC)
    attn = attn + rel_bias[None]
    attn = jax.nn.softmax(attn, axis=-1)
    out = jnp.einsum("bhnm,bhmd->bhnd", attn, vh, precision=PREC)
    out = out.transpose(0, 2, 1, 3).reshape(Bn, N, C)
    out = dot(out, params["wp"]) + params["bp"][0]

    out = out.reshape(-1, WINDOW_SIZE, WINDOW_SIZE, WINDOW_SIZE, C)
    out = window_reverse(out, WINDOW_SIZE, S, H, W).reshape(B, L, C)

    y = shortcut + out
    yn = ln(y, params["gn2"][0], params["ben2"][0])
    h = dot(yn, params["w1"]) + params["b1"][0]
    h = 0.5 * h * (1.0 + lax.erf(h / jnp.sqrt(2.0)))
    m = dot(h, params["w2"]) + params["b2"][0]
    return y + m


# ----------------------------- main ----------------------------------------
if __name__ == "__main__":
    key = jax.random.PRNGKey(0)
    keys = jax.random.split(key, 24)

    x1 = jax.random.normal(keys[0], (B, L, C), jnp.float32)
    x2 = jax.random.normal(keys[1], (B, L, C), jnp.float32)

    def nrm(k, shape, std=0.05):
        return jax.random.normal(k, shape, jnp.float32) * std

    params = {
        "g1":   jnp.ones((1, C), jnp.float32) + nrm(keys[2], (1, C)),
        "be1":  nrm(keys[3], (1, C)),
        "g2":   jnp.ones((1, C), jnp.float32) + nrm(keys[4], (1, C)),
        "be2":  nrm(keys[5], (1, C)),
        "wq":   nrm(keys[6], (C, C), 0.1),
        "bq":   nrm(keys[7], (1, C)),
        "wk":   nrm(keys[8], (C, C), 0.1),      # kv Linear, columns [0:C]
        "bk":   nrm(keys[9], (1, C)),
        "wv":   nrm(keys[10], (C, C), 0.1),     # kv Linear, columns [C:2C]
        "bv":   nrm(keys[11], (1, C)),
        "wp":   nrm(keys[12], (C, C), 0.1),
        "bp":   nrm(keys[13], (1, C)),
        "gn2":  jnp.ones((1, C), jnp.float32) + nrm(keys[14], (1, C)),
        "ben2": nrm(keys[15], (1, C)),
        "w1":   nrm(keys[16], (C, HIDDEN), 0.1),
        "b1":   nrm(keys[17], (1, HIDDEN)),
        "w2":   nrm(keys[18], (HIDDEN, C), 0.1),
        "b2":   nrm(keys[19], (1, C)),
    }

    # relative position bias table -> gathered (nH, N, N) bias (host glue).
    table_rows = (2 * WINDOW_SIZE - 1) ** 3
    bias_table = nrm(keys[20], (table_rows, NUM_HEADS), 0.02)
    rpi = relative_position_index(WINDOW_SIZE)                  # (N, N)
    rel_bias = bias_table[jnp.asarray(rpi.reshape(-1))]         # (N*N, nH)
    rel_bias = rel_bias.reshape(N, N, NUM_HEADS).transpose(2, 0, 1)

    fwd = jax.jit(swin_block_forward)
    out = fwd(x1, x2, params, rel_bias)
    out = jax.block_until_ready(out)

    ref = reference_forward(x1, x2, params, rel_bias)
    np.testing.assert_allclose(np.asarray(out), np.asarray(ref),
                               rtol=2e-2, atol=2e-2)
    print("KERNEL_OK")
</pallas_src>

<mosaic_0001>
module attributes {stable_mosaic.version = 11 : i64} {
  func.func @swin_block_kernel(%arg0: i32, %arg1: memref<128x32xf32, #tpu.memory_space<vmem>>, %arg2: memref<128x32xf32, #tpu.memory_space<vmem>>, %arg3: memref<272x128xf32, #tpu.memory_space<vmem>>, %arg4: memref<32x256xbf16, #tpu.memory_space<vmem>>, %arg5: memref<128x32xbf16, #tpu.memory_space<vmem>>, %arg6: memref<256x32xf32, #tpu.memory_space<vmem>>, %arg7: memref<128x32xf32, #tpu.memory_space<vmem>>) attributes {dimension_semantics = [#tpu.dimension_semantics<arbitrary>], iteration_bounds = array<i64: 1>, scalar_prefetch = 0 : i64, scratch_operands = 0 : i64, tpu.core_type = #tpu.core_type<tc>, window_params = [{pipeline_mode = #tpu.pipeline_mode<synchronous>, transform_indices = @transform_0, window_bounds = array<i64: 128, 32>}, {pipeline_mode = #tpu.pipeline_mode<synchronous>, transform_indices = @transform_1, window_bounds = array<i64: 128, 32>}, {pipeline_mode = #tpu.pipeline_mode<synchronous>, transform_indices = @transform_2, window_bounds = array<i64: 272, 128>}, {pipeline_mode = #tpu.pipeline_mode<synchronous>, transform_indices = @transform_3, window_bounds = array<i64: 32, 256>}, {pipeline_mode = #tpu.pipeline_mode<synchronous>, transform_indices = @transform_4, window_bounds = array<i64: 128, 32>}, {pipeline_mode = #tpu.pipeline_mode<synchronous>, transform_indices = @transform_5, window_bounds = array<i64: 256, 32>}, {pipeline_mode = #tpu.pipeline_mode<synchronous>, transform_indices = @transform_6, window_bounds = array<i64: 128, 32>}]} {
    %c0 = arith.constant 0 : index
    %c0_0 = arith.constant 0 : index
    %0 = vector.load %arg1[%c0, %c0_0] : memref<128x32xf32, #tpu.memory_space<vmem>>, vector<128x32xf32>
    %c0_1 = arith.constant 0 : index
    %c0_2 = arith.constant 0 : index
    %1 = vector.load %arg2[%c0_1, %c0_2] : memref<128x32xf32, #tpu.memory_space<vmem>>, vector<128x32xf32>
    %c0_3 = arith.constant 0 : index
    %c0_4 = arith.constant 0 : index
    %2 = vector.load %arg3[%c0_3, %c0_4] : memref<272x128xf32, #tpu.memory_space<vmem>>, vector<1x32xf32>
    %c1 = arith.constant 1 : index
    %c0_5 = arith.constant 0 : index
    %3 = vector.load %arg3[%c1, %c0_5] : memref<272x128xf32, #tpu.memory_space<vmem>>, vector<1x32xf32>
    %c2 = arith.constant 2 : index
    %c0_6 = arith.constant 0 : index
    %4 = vector.load %arg3[%c2, %c0_6] : memref<272x128xf32, #tpu.memory_space<vmem>>, vector<1x32xf32>
    %c3 = arith.constant 3 : index
    %c0_7 = arith.constant 0 : index
    %5 = vector.load %arg3[%c3, %c0_7] : memref<272x128xf32, #tpu.memory_space<vmem>>, vector<1x32xf32>
    %c4 = arith.constant 4 : index
    %c0_8 = arith.constant 0 : index
    %6 = vector.load %arg3[%c4, %c0_8] : memref<272x128xf32, #tpu.memory_space<vmem>>, vector<1x32xf32>
    %c5 = arith.constant 5 : index
    %c0_9 = arith.constant 0 : index
    %7 = vector.load %arg3[%c5, %c0_9] : memref<272x128xf32, #tpu.memory_space<vmem>>, vector<1x32xf32>
    %c6 = arith.constant 6 : index
    %c0_10 = arith.constant 0 : index
    %8 = vector.load %arg3[%c6, %c0_10] : memref<272x128xf32, #tpu.memory_space<vmem>>, vector<1x32xf32>
    %c7 = arith.constant 7 : index
    %c0_11 = arith.constant 0 : index
    %9 = vector.load %arg3[%c7, %c0_11] : memref<272x128xf32, #tpu.memory_space<vmem>>, vector<1x32xf32>
    %c8 = arith.constant 8 : index
    %c0_12 = arith.constant 0 : index
    %10 = vector.load %arg3[%c8, %c0_12] : memref<272x128xf32, #tpu.memory_space<vmem>>, vector<1x32xf32>
    %c9 = arith.constant 9 : index
    %c0_13 = arith.constant 0 : index
    %11 = vector.load %arg3[%c9, %c0_13] : memref<272x128xf32, #tpu.memory_space<vmem>>, vector<1x64xf32>
    %c10 = arith.constant 10 : index
    %c0_14 = arith.constant 0 : index
    %12 = vector.load %arg3[%c10, %c0_14] : memref<272x128xf32, #tpu.memory_space<vmem>>, vector<1x128xf32>
    %c16 = arith.constant 16 : index
    %c0_15 = arith.constant 0 : index
    %13 = vector.load %arg3[%c16, %c0_15] : memref<272x128xf32, #tpu.memory_space<vmem>>, vector<256x64xf32>
    %c0_16 = arith.constant 0 : index
    %c0_17 = arith.constant 0 : index
    %14 = vector.load %arg6[%c0_16, %c0_17] : memref<256x32xf32, #tpu.memory_space<vmem>>, vector<256x32xf32>
    %c0_18 = arith.constant 0 : index
    %c0_19 = arith.constant 0 : index
    %15 = vector.load %arg4[%c0_18, %c0_19] : memref<32x256xbf16, #tpu.memory_space<vmem>>, vector<32x32xbf16>
    %c0_20 = arith.constant 0 : index
    %c32 = arith.constant 32 : index
    %16 = vector.load %arg4[%c0_20, %c32] : memref<32x256xbf16, #tpu.memory_space<vmem>>, vector<32x64xbf16>
    %c0_21 = arith.constant 0 : index
    %c96 = arith.constant 96 : index
    %17 = vector.load %arg4[%c0_21, %c96] : memref<32x256xbf16, #tpu.memory_space<vmem>>, vector<32x32xbf16>
    %c0_22 = arith.constant 0 : index
    %c128 = arith.constant 128 : index
    %18 = vector.load %arg4[%c0_22, %c128] : memref<32x256xbf16, #tpu.memory_space<vmem>>, vector<32x128xbf16>
    %cst = arith.constant dense<0.000000e+00> : vector<128xf32>
    %19 = vector.multi_reduction <add>, %0, %cst [1] : vector<128x32xf32> to vector<128xf32>
    %20 = vector.shape_cast %19 : vector<128xf32> to vector<128x1xf32>
    %cst_23 = arith.constant 3.200000e+01 : f32
    %21 = vector.broadcast %cst_23 : f32 to vector<128x1xf32>
    %22 = arith.divf %20, %21 : vector<128x1xf32>
    %23 = vector.broadcast %22 : vector<128x1xf32> to vector<128x32xf32>
    %24 = arith.subf %0, %23 : vector<128x32xf32>
    %25 = arith.mulf %24, %24 : vector<128x32xf32>
    %cst_24 = arith.constant dense<0.000000e+00> : vector<128xf32>
    %26 = vector.multi_reduction <add>, %25, %cst_24 [1] : vector<128x32xf32> to vector<128xf32>
    %27 = vector.shape_cast %26 : vector<128xf32> to vector<128x1xf32>
    %cst_25 = arith.constant 3.200000e+01 : f32
    %28 = vector.broadcast %cst_25 : f32 to vector<128x1xf32>
    %29 = arith.divf %27, %28 : vector<128x1xf32>
    %30 = vector.broadcast %22 : vector<128x1xf32> to vector<128x32xf32>
    %31 = arith.subf %0, %30 : vector<128x32xf32>
    %cst_26 = arith.constant 9.99999974E-6 : f32
    %32 = vector.broadcast %cst_26 : f32 to vector<128x1xf32>
    %33 = arith.addf %29, %32 : vector<128x1xf32>
    %34 = math.rsqrt %33 : vector<128x1xf32>
    %35 = vector.broadcast %34 : vector<128x1xf32> to vector<128x32xf32>
    %36 = arith.mulf %31, %35 : vector<128x32xf32>
    %37 = vector.broadcast %2 : vector<1x32xf32> to vector<128x32xf32>
    %38 = arith.mulf %36, %37 : vector<128x32xf32>
    %39 = vector.broadcast %3 : vector<1x32xf32> to vector<128x32xf32>
    %40 = arith.addf %38, %39 : vector<128x32xf32>
    %41 = arith.truncf %40 : vector<128x32xf32> to vector<128x32xbf16>
    %cst_27 = arith.constant dense<0.000000e+00> : vector<128xf32>
    %42 = vector.multi_reduction <add>, %1, %cst_27 [1] : vector<128x32xf32> to vector<128xf32>
    %43 = vector.shape_cast %42 : vector<128xf32> to vector<128x1xf32>
    %cst_28 = arith.constant 3.200000e+01 : f32
    %44 = vector.broadcast %cst_28 : f32 to vector<128x1xf32>
    %45 = arith.divf %43, %44 : vector<128x1xf32>
    %46 = vector.broadcast %45 : vector<128x1xf32> to vector<128x32xf32>
    %47 = arith.subf %1, %46 : vector<128x32xf32>
    %48 = arith.mulf %47, %47 : vector<128x32xf32>
    %cst_29 = arith.constant dense<0.000000e+00> : vector<128xf32>
    %49 = vector.multi_reduction <add>, %48, %cst_29 [1] : vector<128x32xf32> to vector<128xf32>
    %50 = vector.shape_cast %49 : vector<128xf32> to vector<128x1xf32>
    %cst_30 = arith.constant 3.200000e+01 : f32
    %51 = vector.broadcast %cst_30 : f32 to vector<128x1xf32>
    %52 = arith.divf %50, %51 : vector<128x1xf32>
    %53 = vector.broadcast %45 : vector<128x1xf32> to vector<128x32xf32>
    %54 = arith.subf %1, %53 : vector<128x32xf32>
    %cst_31 = arith.constant 9.99999974E-6 : f32
    %55 = vector.broadcast %cst_31 : f32 to vector<128x1xf32>
    %56 = arith.addf %52, %55 : vector<128x1xf32>
    %57 = math.rsqrt %56 : vector<128x1xf32>
    %58 = vector.broadcast %57 : vector<128x1xf32> to vector<128x32xf32>
    %59 = arith.mulf %54, %58 : vector<128x32xf32>
    %60 = vector.broadcast %4 : vector<1x32xf32> to vector<128x32xf32>
    %61 = arith.mulf %59, %60 : vector<128x32xf32>
    %62 = vector.broadcast %5 : vector<1x32xf32> to vector<128x32xf32>
    %63 = arith.addf %61, %62 : vector<128x32xf32>
    %64 = arith.truncf %63 : vector<128x32xf32> to vector<128x32xbf16>
    %cst_32 = arith.constant dense<0.000000e+00> : vector<128x32xf32>
    %65 = tpu.matmul %41, %15, %cst_32 {dimension_numbers = #tpu.dot_dimension_numbers<[1], [0], [0], [1], [0, 0, 1, 1], [], []>} : vector<128x32xbf16>, vector<32x32xbf16>, vector<128x32xf32> -> vector<128x32xf32>
    %66 = vector.broadcast %6 : vector<1x32xf32> to vector<128x32xf32>
    %67 = arith.addf %65, %66 : vector<128x32xf32>
    %cst_33 = arith.constant 0.353553385 : f32
    %68 = vector.broadcast %cst_33 : f32 to vector<128x32xf32>
    %69 = arith.mulf %67, %68 : vector<128x32xf32>
    %cst_34 = arith.constant dense<0.000000e+00> : vector<128x64xf32>
    %70 = tpu.matmul %64, %16, %cst_34 {dimension_numbers = #tpu.dot_dimension_numbers<[1], [0], [0], [1], [0, 0, 1, 1], [], []>} : vector<128x32xbf16>, vector<32x64xbf16>, vector<128x64xf32> -> vector<128x64xf32>
    %71 = vector.broadcast %11 : vector<1x64xf32> to vector<128x64xf32>
    %72 = arith.addf %70, %71 : vector<128x64xf32>
    %73 = vector.extract_strided_slice %72 {offsets = [0, 0], sizes = [128, 32], strides = [1, 1]} : vector<128x64xf32> to vector<128x32xf32>
    %74 = arith.truncf %73 : vector<128x32xf32> to vector<128x32xbf16>
    %75 = vector.extract_strided_slice %72 {offsets = [0, 32], sizes = [128, 32], strides = [1, 1]} : vector<128x64xf32> to vector<128x32xf32>
    %76 = arith.truncf %75 : vector<128x32xf32> to vector<128x32xbf16>
    %77 = vector.extract_strided_slice %69 {offsets = [0, 0], sizes = [64, 32], strides = [1, 1]} : vector<128x32xf32> to vector<64x32xf32>
    %78 = vector.extract_strided_slice %74 {offsets = [0, 0], sizes = [64, 32], strides = [1, 1]} : vector<128x32xbf16> to vector<64x32xbf16>
    %79 = vector.extract_strided_slice %76 {offsets = [0, 0], sizes = [64, 32], strides = [1, 1]} : vector<128x32xbf16> to vector<64x32xbf16>
    %80 = tpu.concatenate %77, %77, %77, %77 in 0 : vector<64x32xf32>, vector<64x32xf32>, vector<64x32xf32>, vector<64x32xf32> -> vector<256x32xf32>
    %81 = arith.mulf %80, %14 : vector<256x32xf32>
    %82 = arith.truncf %81 : vector<256x32xf32> to vector<256x32xbf16>
    %cst_35 = arith.constant dense<0.000000e+00> : vector<256x64xf32>
    %83 = tpu.matmul %82, %78, %cst_35 {dimension_numbers = #tpu.dot_dimension_numbers<[1], [1], [0], [0], [0, 0, 1, 0], [], []>} : vector<256x32xbf16>, vector<64x32xbf16>, vector<256x64xf32> -> vector<256x64xf32>
    %84 = arith.addf %83, %13 : vector<256x64xf32>
    %cst_36 = arith.constant dense<0xFF800000> : vector<256xf32>
    %85 = vector.multi_reduction <maximumf>, %84, %cst_36 [1] : vector<256x64xf32> to vector<256xf32>
    %86 = vector.shape_cast %85 : vector<256xf32> to vector<256x1xf32>
    %87 = vector.broadcast %86 : vector<256x1xf32> to vector<256x64xf32>
    %88 = arith.subf %84, %87 : vector<256x64xf32>
    %89 = math.exp %88 : vector<256x64xf32>
    %cst_37 = arith.constant dense<0.000000e+00> : vector<256xf32>
    %90 = vector.multi_reduction <add>, %89, %cst_37 [1] : vector<256x64xf32> to vector<256xf32>
    %91 = vector.shape_cast %90 : vector<256xf32> to vector<256x1xf32>
    %92 = tpu.reciprocal %91 : vector<256x1xf32> -> vector<256x1xf32>
    %93 = vector.broadcast %92 : vector<256x1xf32> to vector<256x64xf32>
    %94 = arith.mulf %89, %93 : vector<256x64xf32>
    %95 = arith.truncf %94 : vector<256x64xf32> to vector<256x64xbf16>
    %cst_38 = arith.constant dense<0.000000e+00> : vector<256x32xf32>
    %96 = tpu.matmul %95, %79, %cst_38 {dimension_numbers = #tpu.dot_dimension_numbers<[1], [0], [0], [1], [0, 0, 1, 1], [], []>} : vector<256x64xbf16>, vector<64x32xbf16>, vector<256x32xf32> -> vector<256x32xf32>
    %97 = vector.extract_strided_slice %96 {offsets = [0, 0], sizes = [64, 32], strides = [1, 1]} : vector<256x32xf32> to vector<64x32xf32>
    %98 = vector.extract_strided_slice %14 {offsets = [0, 0], sizes = [64, 32], strides = [1, 1]} : vector<256x32xf32> to vector<64x32xf32>
    %99 = arith.mulf %97, %98 : vector<64x32xf32>
    %100 = vector.extract_strided_slice %96 {offsets = [64, 0], sizes = [64, 32], strides = [1, 1]} : vector<256x32xf32> to vector<64x32xf32>
    %101 = vector.extract_strided_slice %14 {offsets = [64, 0], sizes = [64, 32], strides = [1, 1]} : vector<256x32xf32> to vector<64x32xf32>
    %102 = arith.mulf %100, %101 : vector<64x32xf32>
    %103 = arith.addf %99, %102 : vector<64x32xf32>
    %104 = vector.extract_strided_slice %96 {offsets = [128, 0], sizes = [64, 32], strides = [1, 1]} : vector<256x32xf32> to vector<64x32xf32>
    %105 = vector.extract_strided_slice %14 {offsets = [128, 0], sizes = [64, 32], strides = [1, 1]} : vector<256x32xf32> to vector<64x32xf32>
    %106 = arith.mulf %104, %105 : vector<64x32xf32>
    %107 = arith.addf %103, %106 : vector<64x32xf32>
    %108 = vector.extract_strided_slice %96 {offsets = [192, 0], sizes = [64, 32], strides = [1, 1]} : vector<256x32xf32> to vector<64x32xf32>
    %109 = vector.extract_strided_slice %14 {offsets = [192, 0], sizes = [64, 32], strides = [1, 1]} : vector<256x32xf32> to vector<64x32xf32>
    %110 = arith.mulf %108, %109 : vector<64x32xf32>
    %111 = arith.addf %107, %110 : vector<64x32xf32>
    %112 = vector.extract_strided_slice %69 {offsets = [64, 0], sizes = [64, 32], strides = [1, 1]} : vector<128x32xf32> to vector<64x32xf32>
    %113 = vector.extract_strided_slice %74 {offsets = [64, 0], sizes = [64, 32], strides = [1, 1]} : vector<128x32xbf16> to vector<64x32xbf16>
    %114 = vector.extract_strided_slice %76 {offsets = [64, 0], sizes = [64, 32], strides = [1, 1]} : vector<128x32xbf16> to vector<64x32xbf16>
    %115 = tpu.concatenate %112, %112, %112, %112 in 0 : vector<64x32xf32>, vector<64x32xf32>, vector<64x32xf32>, vector<64x32xf32> -> vector<256x32xf32>
    %116 = arith.mulf %115, %14 : vector<256x32xf32>
    %117 = arith.truncf %116 : vector<256x32xf32> to vector<256x32xbf16>
    %cst_39 = arith.constant dense<0.000000e+00> : vector<256x64xf32>
    %118 = tpu.matmul %117, %113, %cst_39 {dimension_numbers = #tpu.dot_dimension_numbers<[1], [1], [0], [0], [0, 0, 1, 0], [], []>} : vector<256x32xbf16>, vector<64x32xbf16>, vector<256x64xf32> -> vector<256x64xf32>
    %119 = arith.addf %118, %13 : vector<256x64xf32>
    %cst_40 = arith.constant dense<0xFF800000> : vector<256xf32>
    %120 = vector.multi_reduction <maximumf>, %119, %cst_40 [1] : vector<256x64xf32> to vector<256xf32>
    %121 = vector.shape_cast %120 : vector<256xf32> to vector<256x1xf32>
    %122 = vector.broadcast %121 : vector<256x1xf32> to vector<256x64xf32>
    %123 = arith.subf %119, %122 : vector<256x64xf32>
    %124 = math.exp %123 : vector<256x64xf32>
    %cst_41 = arith.constant dense<0.000000e+00> : vector<256xf32>
    %125 = vector.multi_reduction <add>, %124, %cst_41 [1] : vector<256x64xf32> to vector<256xf32>
    %126 = vector.shape_cast %125 : vector<256xf32> to vector<256x1xf32>
    %127 = tpu.reciprocal %126 : vector<256x1xf32> -> vector<256x1xf32>
    %128 = vector.broadcast %127 : vector<256x1xf32> to vector<256x64xf32>
    %129 = arith.mulf %124, %128 : vector<256x64xf32>
    %130 = arith.truncf %129 : vector<256x64xf32> to vector<256x64xbf16>
    %cst_42 = arith.constant dense<0.000000e+00> : vector<256x32xf32>
    %131 = tpu.matmul %130, %114, %cst_42 {dimension_numbers = #tpu.dot_dimension_numbers<[1], [0], [0], [1], [0, 0, 1, 1], [], []>} : vector<256x64xbf16>, vector<64x32xbf16>, vector<256x32xf32> -> vector<256x32xf32>
    %132 = vector.extract_strided_slice %131 {offsets = [0, 0], sizes = [64, 32], strides = [1, 1]} : vector<256x32xf32> to vector<64x32xf32>
    %133 = vector.extract_strided_slice %14 {offsets = [0, 0], sizes = [64, 32], strides = [1, 1]} : vector<256x32xf32> to vector<64x32xf32>
    %134 = arith.mulf %132, %133 : vector<64x32xf32>
    %135 = vector.extract_strided_slice %131 {offsets = [64, 0], sizes = [64, 32], strides = [1, 1]} : vector<256x32xf32> to vector<64x32xf32>
    %136 = vector.extract_strided_slice %14 {offsets = [64, 0], sizes = [64, 32], strides = [1, 1]} : vector<256x32xf32> to vector<64x32xf32>
    %137 = arith.mulf %135, %136 : vector<64x32xf32>
    %138 = arith.addf %134, %137 : vector<64x32xf32>
    %139 = vector.extract_strided_slice %131 {offsets = [128, 0], sizes = [64, 32], strides = [1, 1]} : vector<256x32xf32> to vector<64x32xf32>
    %140 = vector.extract_strided_slice %14 {offsets = [128, 0], sizes = [64, 32], strides = [1, 1]} : vector<256x32xf32> to vector<64x32xf32>
    %141 = arith.mulf %139, %140 : vector<64x32xf32>
    %142 = arith.addf %138, %141 : vector<64x32xf32>
    %143 = vector.extract_strided_slice %131 {offsets = [192, 0], sizes = [64, 32], strides = [1, 1]} : vector<256x32xf32> to vector<64x32xf32>
    %144 = vector.extract_strided_slice %14 {offsets = [192, 0], sizes = [64, 32], strides = [1, 1]} : vector<256x32xf32> to vector<64x32xf32>
    %145 = arith.mulf %143, %144 : vector<64x32xf32>
    %146 = arith.addf %142, %145 : vector<64x32xf32>
    %147 = tpu.concatenate %111, %146 in 0 : vector<64x32xf32>, vector<64x32xf32> -> vector<128x32xf32>
    %148 = arith.truncf %147 : vector<128x32xf32> to vector<128x32xbf16>
    %cst_43 = arith.constant dense<0.000000e+00> : vector<128x32xf32>
    %149 = tpu.matmul %148, %17, %cst_43 {dimension_numbers = #tpu.dot_dimension_numbers<[1], [0], [0], [1], [0, 0, 1, 1], [], []>} : vector<128x32xbf16>, vector<32x32xbf16>, vector<128x32xf32> -> vector<128x32xf32>
    %150 = vector.broadcast %7 : vector<1x32xf32> to vector<128x32xf32>
    %151 = arith.addf %149, %150 : vector<128x32xf32>
    %152 = arith.addf %0, %151 : vector<128x32xf32>
    %cst_44 = arith.constant dense<0.000000e+00> : vector<128xf32>
    %153 = vector.multi_reduction <add>, %152, %cst_44 [1] : vector<128x32xf32> to vector<128xf32>
    %154 = vector.shape_cast %153 : vector<128xf32> to vector<128x1xf32>
    %cst_45 = arith.constant 3.200000e+01 : f32
    %155 = vector.broadcast %cst_45 : f32 to vector<128x1xf32>
    %156 = arith.divf %154, %155 : vector<128x1xf32>
    %157 = vector.broadcast %156 : vector<128x1xf32> to vector<128x32xf32>
    %158 = arith.subf %152, %157 : vector<128x32xf32>
    %159 = arith.mulf %158, %158 : vector<128x32xf32>
    %cst_46 = arith.constant dense<0.000000e+00> : vector<128xf32>
    %160 = vector.multi_reduction <add>, %159, %cst_46 [1] : vector<128x32xf32> to vector<128xf32>
    %161 = vector.shape_cast %160 : vector<128xf32> to vector<128x1xf32>
    %cst_47 = arith.constant 3.200000e+01 : f32
    %162 = vector.broadcast %cst_47 : f32 to vector<128x1xf32>
    %163 = arith.divf %161, %162 : vector<128x1xf32>
    %164 = vector.broadcast %156 : vector<128x1xf32> to vector<128x32xf32>
    %165 = arith.subf %152, %164 : vector<128x32xf32>
    %cst_48 = arith.constant 9.99999974E-6 : f32
    %166 = vector.broadcast %cst_48 : f32 to vector<128x1xf32>
    %167 = arith.addf %163, %166 : vector<128x1xf32>
    %168 = math.rsqrt %167 : vector<128x1xf32>
    %169 = vector.broadcast %168 : vector<128x1xf32> to vector<128x32xf32>
    %170 = arith.mulf %165, %169 : vector<128x32xf32>
    %171 = vector.broadcast %8 : vector<1x32xf32> to vector<128x32xf32>
    %172 = arith.mulf %170, %171 : vector<128x32xf32>
    %173 = vector.broadcast %9 : vector<1x32xf32> to vector<128x32xf32>
    %174 = arith.addf %172, %173 : vector<128x32xf32>
    %175 = arith.truncf %174 : vector<128x32xf32> to vector<128x32xbf16>
    %cst_49 = arith.constant dense<0.000000e+00> : vector<128x128xf32>
    %176 = tpu.matmul %175, %18, %cst_49 {dimension_numbers = #tpu.dot_dimension_numbers<[1], [0], [0], [1], [0, 0, 1, 1], [], []>} : vector<128x32xbf16>, vector<32x128xbf16>, vector<128x128xf32> -> vector<128x128xf32>
    %177 = vector.broadcast %12 : vector<1x128xf32> to vector<128x128xf32>
    %178 = arith.addf %176, %177 : vector<128x128xf32>
    %cst_50 = arith.constant 5.000000e-01 : f32
    %179 = vector.broadcast %cst_50 : f32 to vector<128x128xf32>
    %180 = arith.mulf %179, %178 : vector<128x128xf32>
    %cst_51 = arith.constant 0.707106769 : f32
    %181 = vector.broadcast %cst_51 : f32 to vector<128x128xf32>
    %182 = arith.mulf %178, %181 : vector<128x128xf32>
    %183 = math.erf %182 : vector<128x128xf32>
    %cst_52 = arith.constant 1.000000e+00 : f32
    %184 = vector.broadcast %cst_52 : f32 to vector<128x128xf32>
    %185 = arith.addf %184, %183 : vector<128x128xf32>
    %186 = arith.mulf %180, %185 : vector<128x128xf32>
    %187 = arith.truncf %186 : vector<128x128xf32> to vector<128x128xbf16>
    %c0_53 = arith.constant 0 : index
    %c0_54 = arith.constant 0 : index
    %188 = vector.load %arg5[%c0_53, %c0_54] : memref<128x32xbf16, #tpu.memory_space<vmem>>, vector<128x32xbf16>
    %cst_55 = arith.constant dense<0.000000e+00> : vector<128x32xf32>
    %189 = tpu.matmul %187, %188, %cst_55 {dimension_numbers = #tpu.dot_dimension_numbers<[1], [0], [0], [1], [0, 0, 1, 1], [], []>} : vector<128x128xbf16>, vector<128x32xbf16>, vector<128x32xf32> -> vector<128x32xf32>
    %190 = vector.broadcast %10 : vector<1x32xf32> to vector<128x32xf32>
    %191 = arith.addf %189, %190 : vector<128x32xf32>
    %192 = arith.addf %152, %191 : vector<128x32xf32>
    %c0_56 = arith.constant 0 : index
    %c0_57 = arith.constant 0 : index
    %193 = vector.load %arg7[%c0_56, %c0_57] : memref<128x32xf32, #tpu.memory_space<vmem>>, vector<128x32xf32>
    tpu.vector_store %arg7[%c0_56, %c0_57], %192 {strides = array<i32>} : memref<128x32xf32, #tpu.memory_space<vmem>>, vector<128x32xf32>,
    return
  }
  func.func @transform_0(%arg0: i32) -> (i32, i32) {
    %c0_i32 = arith.constant 0 : i32
    %c0_i32_0 = arith.constant 0 : i32
    %c0_i32_1 = arith.constant 0 : i32
    return %c0_i32, %c0_i32_0 : i32, i32
  }
  func.func @transform_1(%arg0: i32) -> (i32, i32) {
    %c0_i32 = arith.constant 0 : i32
    %c0_i32_0 = arith.constant 0 : i32
    %c0_i32_1 = arith.constant 0 : i32
    return %c0_i32, %c0_i32_0 : i32, i32
  }
  func.func @transform_2(%arg0: i32) -> (i32, i32) {
    %c0_i32 = arith.constant 0 : i32
    %c0_i32_0 = arith.constant 0 : i32
    %c0_i32_1 = arith.constant 0 : i32
    return %c0_i32, %c0_i32_0 : i32, i32
  }
  func.func @transform_3(%arg0: i32) -> (i32, i32) {
    %c0_i32 = arith.constant 0 : i32
    %c0_i32_0 = arith.constant 0 : i32
    %c0_i32_1 = arith.constant 0 : i32
    return %c0_i32, %c0_i32_0 : i32, i32
  }
  func.func @transform_4(%arg0: i32) -> (i32, i32) {
    %c0_i32 = arith.constant 0 : i32
    %c0_i32_0 = arith.constant 0 : i32
    %c0_i32_1 = arith.constant 0 : i32
    return %c0_i32, %c0_i32_0 : i32, i32
  }
  func.func @transform_5(%arg0: i32) -> (i32, i32) {
    %c0_i32 = arith.constant 0 : i32
    %c0_i32_0 = arith.constant 0 : i32
    %c0_i32_1 = arith.constant 0 : i32
    return %c0_i32, %c0_i32_0 : i32, i32
  }
  func.func @transform_6(%arg0: i32) -> (i32, i32) {
    %c0_i32 = arith.constant 0 : i32
    %c0_i32_0 = arith.constant 0 : i32
    %c0_i32_1 = arith.constant 0 : i32
    return %c0_i32, %c0_i32_0 : i32, i32
  }
}

</mosaic_0001>

<llo_original>
// kernel: swin_block_forward.1
$region0: #{swin_block_forward.1}
  #allocation0 [shape = 'u32[]', space=smem, size = 0x4, offset = 0x4, fixed_abs, tag = 'smem constant byte address 0x4 - core index']
  #allocation1 [shape = 'u32[144,128]{1,0:T(1,128)}', space=vmem, size = 0x12000, scoped, tag = 'internal scratch']
  %s0 = inlined_call_operand.vmem [shape: f32[128,32], index: 0, kind: input, shape index: {}]
  %s1 = inlined_call_operand.vmem [shape: f32[128,32], index: 1, kind: input, shape index: {}]
  %s2 = inlined_call_operand.vmem [shape: f32[272,128], index: 2, kind: input, shape index: {}]
  %s3 = inlined_call_operand.vmem [shape: bf16[32,256], index: 3, kind: input, shape index: {}]
  %s4 = inlined_call_operand.vmem [shape: bf16[128,32], index: 4, kind: input, shape index: {}]
  %s5 = inlined_call_operand.vmem [shape: f32[256,32], index: 5, kind: input, shape index: {}]
  %s6 = inlined_call_operand.vmem [shape: f32[128,32], index: 6, kind: output, shape index: {}]
  %s7 = sld [smem:[#allocation0]]
  $region34: #{swin_block_forward.1} parent=0
    _
  %s9 = ssub.s32 1, %s7
  %s10 = scalar_select 0, %s9, %s7
  // Predicated region
  $region2: #{swin_block_forward.1} parent=0 // pred_check
    _
  $region3: #{swin_block_forward.1} parent=0 // pred_check_branch
    %12 = sbr.rel (0) target = $region5
  $region4: #{swin_block_forward.1} parent=0 // pred_region
    _
  $region5: #{swin_block_forward.1} parent=0 // pred_fallthru
    _
  // Predicated region
  $region6: #{swin_block_forward.1} parent=0 // pred_check
    _
  $region7: #{swin_block_forward.1} parent=0 // pred_check_branch
    %14 = sbr.rel (0) target = $region9
  $region8: #{swin_block_forward.1} parent=0 // pred_region
    _
  $region9: #{swin_block_forward.1} parent=0 // pred_fallthru
    _
  // Predicated region
  $region10: #{swin_block_forward.1} parent=0 // pred_check
    _
  $region11: #{swin_block_forward.1} parent=0 // pred_check_branch
    %16 = sbr.rel (0) target = $region13
  $region12: #{swin_block_forward.1} parent=0 // pred_region
    _
  $region13: #{swin_block_forward.1} parent=0 // pred_fallthru
    _
  // Predicated region
  $region14: #{swin_block_forward.1} parent=0 // pred_check
    _
  $region15: #{swin_block_forward.1} parent=0 // pred_check_branch
    %18 = sbr.rel (0) target = $region17
  $region16: #{swin_block_forward.1} parent=0 // pred_region
    _
  $region17: #{swin_block_forward.1} parent=0 // pred_fallthru
    _
  // Predicated region
  $region18: #{swin_block_forward.1} parent=0 // pred_check
    _
  $region19: #{swin_block_forward.1} parent=0 // pred_check_branch
    %20 = sbr.rel (0) target = $region21
  $region20: #{swin_block_forward.1} parent=0 // pred_region
    _
  $region21: #{swin_block_forward.1} parent=0 // pred_fallthru
    _
  // Predicated region
  $region22: #{swin_block_forward.1} parent=0 // pred_check
    _
  $region23: #{swin_block_forward.1} parent=0 // pred_check_branch
    %22 = sbr.rel (0) target = $region25
  $region24: #{swin_block_forward.1} parent=0 // pred_region
    _
  $region25: #{swin_block_forward.1} parent=0 // pred_fallthru
    _
  %v24 = vld [vmem:[%s0] sm:$0xff]
  %v25 = vld [vmem:[%s0 + $0x8] sm:$0xff]
  %v26 = vld [vmem:[%s0 + $0x10] sm:$0xff]
  %v27 = vld [vmem:[%s0 + $0x18] sm:$0xff]
  %v28 = vld [vmem:[%s0 + $0x20] sm:$0xff]
  %v29 = vld [vmem:[%s0 + $0x28] sm:$0xff]
  %v30 = vld [vmem:[%s0 + $0x30] sm:$0xff]
  %v31 = vld [vmem:[%s0 + $0x38] sm:$0xff]
  %v32 = vld [vmem:[%s0 + $0x40] sm:$0xff]
  %v33 = vld [vmem:[%s0 + $0x48] sm:$0xff]
  %v34 = vld [vmem:[%s0 + $0x50] sm:$0xff]
  %v35 = vld [vmem:[%s0 + $0x58] sm:$0xff]
  %v36 = vld [vmem:[%s0 + $0x60] sm:$0xff]
  %v37 = vld [vmem:[%s0 + $0x68] sm:$0xff]
  %v38 = vld [vmem:[%s0 + $0x70] sm:$0xff]
  %v39 = vld [vmem:[%s0 + $0x78] sm:$0xff]
  %v40 = vld [vmem:[%s1] sm:$0xff]
  %v41 = vld [vmem:[%s1 + $0x8] sm:$0xff]
  %v42 = vld [vmem:[%s1 + $0x10] sm:$0xff]
  %v43 = vld [vmem:[%s1 + $0x18] sm:$0xff]
  %v44 = vld [vmem:[%s1 + $0x20] sm:$0xff]
  %v45 = vld [vmem:[%s1 + $0x28] sm:$0xff]
  %v46 = vld [vmem:[%s1 + $0x30] sm:$0xff]
  %v47 = vld [vmem:[%s1 + $0x38] sm:$0xff]
  %v48 = vld [vmem:[%s1 + $0x40] sm:$0xff]
  %v49 = vld [vmem:[%s1 + $0x48] sm:$0xff]
  %v50 = vld [vmem:[%s1 + $0x50] sm:$0xff]
  %v51 = vld [vmem:[%s1 + $0x58] sm:$0xff]
  %v52 = vld [vmem:[%s1 + $0x60] sm:$0xff]
  %v53 = vld [vmem:[%s1 + $0x68] sm:$0xff]
  %v54 = vld [vmem:[%s1 + $0x70] sm:$0xff]
  %v55 = vld [vmem:[%s1 + $0x78] sm:$0xff]
  %v56 = vld [vmem:[%s2] sm:$0x1]
  %v57 = vld [vmem:[%s2 + $0x1] sm:$0x1]
  %v58 = vld [vmem:[%s2 + $0x2] sm:$0x1]
  %v59 = vld [vmem:[%s2 + $0x3] sm:$0x1]
  %v60 = vld [vmem:[%s2 + $0x4] sm:$0x1]
  %v61 = vld [vmem:[%s2 + $0x5] sm:$0x1]
  %v62 = vld [vmem:[%s2 + $0x6] sm:$0x1]
  %v63 = vld [vmem:[%s2 + $0x7] sm:$0x1]
  %v64 = vld [vmem:[%s2 + $0x8] sm:$0x1]
  %v65 = vld [vmem:[%s2 + $0x9] sm:$0x1]
  %v66 = vld [vmem:[%s2 + $0xa] sm:$0x1]
  %v67 = vld [vmem:[%s2 + $0x10] sm:$0xff]
  %v68 = vld [vmem:[%s2 + $0x18] sm:$0xff]
  %v69 = vld [vmem:[%s2 + $0x20] sm:$0xff]
  %v70 = vld [vmem:[%s2 + $0x28] sm:$0xff]
  %v71 = vld [vmem:[%s2 + $0x30] sm:$0xff]
  %v72 = vld [vmem:[%s2 + $0x38] sm:$0xff]
  %v73 = vld [vmem:[%s2 + $0x40] sm:$0xff]
  %v74 = vld [vmem:[%s2 + $0x48] sm:$0xff]
  %v75 = vld [vmem:[%s2 + $0x50] sm:$0xff]
  %v76 = vld [vmem:[%s2 + $0x58] sm:$0xff]
  %v77 = vld [vmem:[%s2 + $0x60] sm:$0xff]
  %v78 = vld [vmem:[%s2 + $0x68] sm:$0xff]
  %v79 = vld [vmem:[%s2 + $0x70] sm:$0xff]
  %v80 = vld [vmem:[%s2 + $0x78] sm:$0xff]
  %v81 = vld [vmem:[%s2 + $0x80] sm:$0xff]
  %v82 = vld [vmem:[%s2 + $0x88] sm:$0xff]
  %v83 = vld [vmem:[%s2 + $0x90] sm:$0xff]
  %v84 = vld [vmem:[%s2 + $0x98] sm:$0xff]
  %v85 = vld [vmem:[%s2 + $0xa0] sm:$0xff]
  %v86 = vld [vmem:[%s2 + $0xa8] sm:$0xff]
  %v87 = vld [vmem:[%s2 + $0xb0] sm:$0xff]
  %v88 = vld [vmem:[%s2 + $0xb8] sm:$0xff]
  %v89 = vld [vmem:[%s2 + $0xc0] sm:$0xff]
  %v90 = vld [vmem:[%s2 + $0xc8] sm:$0xff]
  %v91 = vld [vmem:[%s2 + $0xd0] sm:$0xff]
  %v92 = vld [vmem:[%s2 + $0xd8] sm:$0xff]
  %v93 = vld [vmem:[%s2 + $0xe0] sm:$0xff]
  %v94 = vld [vmem:[%s2 + $0xe8] sm:$0xff]
  %v95 = vld [vmem:[%s2 + $0xf0] sm:$0xff]
  %v96 = vld [vmem:[%s2 + $0xf8] sm:$0xff]
  %v97 = vld [vmem:[%s2 + $0x100] sm:$0xff]
  %v98 = vld [vmem:[%s2 + $0x108] sm:$0xff]
  %v99 = vld [vmem:[%s5] sm:$0xff]
  %v100 = vld [vmem:[%s5 + $0x8] sm:$0xff]
  %v101 = vld [vmem:[%s5 + $0x10] sm:$0xff]
  %v102 = vld [vmem:[%s5 + $0x18] sm:$0xff]
  %v103 = vld [vmem:[%s5 + $0x20] sm:$0xff]
  %v104 = vld [vmem:[%s5 + $0x28] sm:$0xff]
  %v105 = vld [vmem:[%s5 + $0x30] sm:$0xff]
  %v106 = vld [vmem:[%s5 + $0x38] sm:$0xff]
  %v107 = vld [vmem:[%s5 + $0x40] sm:$0xff]
  %v108 = vld [vmem:[%s5 + $0x48] sm:$0xff]
  %v109 = vld [vmem:[%s5 + $0x50] sm:$0xff]
  %v110 = vld [vmem:[%s5 + $0x58] sm:$0xff]
  %v111 = vld [vmem:[%s5 + $0x60] sm:$0xff]
  %v112 = vld [vmem:[%s5 + $0x68] sm:$0xff]
  %v113 = vld [vmem:[%s5 + $0x70] sm:$0xff]
  %v114 = vld [vmem:[%s5 + $0x78] sm:$0xff]
  %v115 = vld [vmem:[%s5 + $0x80] sm:$0xff]
  %v116 = vld [vmem:[%s5 + $0x88] sm:$0xff]
  %v117 = vld [vmem:[%s5 + $0x90] sm:$0xff]
  %v118 = vld [vmem:[%s5 + $0x98] sm:$0xff]
  %v119 = vld [vmem:[%s5 + $0xa0] sm:$0xff]
  %v120 = vld [vmem:[%s5 + $0xa8] sm:$0xff]
  %v121 = vld [vmem:[%s5 + $0xb0] sm:$0xff]
  %v122 = vld [vmem:[%s5 + $0xb8] sm:$0xff]
  %v123 = vld [vmem:[%s5 + $0xc0] sm:$0xff]
  %v124 = vld [vmem:[%s5 + $0xc8] sm:$0xff]
  %v125 = vld [vmem:[%s5 + $0xd0] sm:$0xff]
  %v126 = vld [vmem:[%s5 + $0xd8] sm:$0xff]
  %v127 = vld [vmem:[%s5 + $0xe0] sm:$0xff]
  %v128 = vld [vmem:[%s5 + $0xe8] sm:$0xff]
  %v129 = vld [vmem:[%s5 + $0xf0] sm:$0xff]
  %v130 = vld [vmem:[%s5 + $0xf8] sm:$0xff]
  %v131 = vld [vmem:[%s3] sm:$0xf]
  %v132 = vld [vmem:[%s3 + $0x8] sm:$0xf]
  %v133 = vld [vmem:[%s3 + $0x10] sm:$0xf]
  %v134 = vld [vmem:[%s3 + $0x18] sm:$0xf]
  %v135 = vld [vmem:[%s3 + $0x4] sm:$0xf]
  %v136 = vld [vmem:[%s3 + $0xc] sm:$0xf]
  %v137 = vld [vmem:[%s3 + $0x14] sm:$0xf]
  %v138 = vld [vmem:[%s3 + $0x1c] sm:$0xf]
  %vm139 = vcmask 261120
  %v140 = vsel %vm139, %v24, 0.0
  %141 = vadd.xlane.f32.xlu0 %v140
  %v142 = vpop.xlane.xlu0 %141
  %v143 = vsel %vm139, %v25, 0.0
  %144 = vadd.xlane.f32.xlu0 %v143
  %v145 = vpop.xlane.xlu0 %144
  %v146 = vsel %vm139, %v26, 0.0
  %147 = vadd.xlane.f32.xlu0 %v146
  %v148 = vpop.xlane.xlu0 %147
  %v149 = vsel %vm139, %v27, 0.0
  %150 = vadd.xlane.f32.xlu0 %v149
  %v151 = vpop.xlane.xlu0 %150
  %v152 = vsel %vm139, %v28, 0.0
  %153 = vadd.xlane.f32.xlu0 %v152
  %v154 = vpop.xlane.xlu0 %153
  %v155 = vsel %vm139, %v29, 0.0
  %156 = vadd.xlane.f32.xlu0 %v155
  %v157 = vpop.xlane.xlu0 %156
  %v158 = vsel %vm139, %v30, 0.0
  %159 = vadd.xlane.f32.xlu0 %v158
  %v160 = vpop.xlane.xlu0 %159
  %v161 = vsel %vm139, %v31, 0.0
  %162 = vadd.xlane.f32.xlu0 %v161
  %v163 = vpop.xlane.xlu0 %162
  %v164 = vsel %vm139, %v32, 0.0
  %165 = vadd.xlane.f32.xlu0 %v164
  %v166 = vpop.xlane.xlu0 %165
  %v167 = vsel %vm139, %v33, 0.0
  %168 = vadd.xlane.f32.xlu0 %v167
  %v169 = vpop.xlane.xlu0 %168
  %v170 = vsel %vm139, %v34, 0.0
  %171 = vadd.xlane.f32.xlu0 %v170
  %v172 = vpop.xlane.xlu0 %171
  %v173 = vsel %vm139, %v35, 0.0
  %174 = vadd.xlane.f32.xlu0 %v173
  %v175 = vpop.xlane.xlu0 %174
  %v176 = vsel %vm139, %v36, 0.0
  %177 = vadd.xlane.f32.xlu0 %v176
  %v178 = vpop.xlane.xlu0 %177
  %v179 = vsel %vm139, %v37, 0.0
  %180 = vadd.xlane.f32.xlu0 %v179
  %v181 = vpop.xlane.xlu0 %180
  %v182 = vsel %vm139, %v38, 0.0
  %183 = vadd.xlane.f32.xlu0 %v182
  %v184 = vpop.xlane.xlu0 %183
  %v185 = vsel %vm139, %v39, 0.0
  %186 = vadd.xlane.f32.xlu0 %v185
  %v187 = vpop.xlane.xlu0 %186
  %v188 = vrcp.pop 32.0
  %v189 = vmul.f32 %v142, %v188
  %v190 = vmul.f32 %v145, %v188
  %v191 = vmul.f32 %v148, %v188
  %v192 = vmul.f32 %v151, %v188
  %v193 = vmul.f32 %v154, %v188
  %v194 = vmul.f32 %v157, %v188
  %v195 = vmul.f32 %v160, %v188
  %v196 = vmul.f32 %v163, %v188
  %v197 = vmul.f32 %v166, %v188
  %v198 = vmul.f32 %v169, %v188
  %v199 = vmul.f32 %v172, %v188
  %v200 = vmul.f32 %v175, %v188
  %v201 = vmul.f32 %v178, %v188
  %v202 = vmul.f32 %v181, %v188
  %v203 = vmul.f32 %v184, %v188
  %v204 = vmul.f32 %v187, %v188
  %v205 = vsub.f32 %v24, %v189
  %v206 = vsub.f32 %v25, %v190
  %v207 = vsub.f32 %v26, %v191
  %v208 = vsub.f32 %v27, %v192
  %v209 = vsub.f32 %v28, %v193
  %v210 = vsub.f32 %v29, %v194
  %v211 = vsub.f32 %v30, %v195
  %v212 = vsub.f32 %v31, %v196
  %v213 = vsub.f32 %v32, %v197
  %v214 = vsub.f32 %v33, %v198
  %v215 = vsub.f32 %v34, %v199
  %v216 = vsub.f32 %v35, %v200
  %v217 = vsub.f32 %v36, %v201
  %v218 = vsub.f32 %v37, %v202
  %v219 = vsub.f32 %v38, %v203
  %v220 = vsub.f32 %v39, %v204
  %v221 = vmul.f32 %v205, %v205
  %v222 = vmul.f32 %v206, %v206
  %v223 = vmul.f32 %v207, %v207
  %v224 = vmul.f32 %v208, %v208
  %v225 = vmul.f32 %v209, %v209
  %v226 = vmul.f32 %v210, %v210
  %v227 = vmul.f32 %v211, %v211
  %v228 = vmul.f32 %v212, %v212
  %v229 = vmul.f32 %v213, %v213
  %v230 = vmul.f32 %v214, %v214
  %v231 = vmul.f32 %v215, %v215
  %v232 = vmul.f32 %v216, %v216
  %v233 = vmul.f32 %v217, %v217
  %v234 = vmul.f32 %v218, %v218
  %v235 = vmul.f32 %v219, %v219
  %v236 = vmul.f32 %v220, %v220
  %v237 = vsel %vm139, %v221, 0.0
  %238 = vadd.xlane.f32.xlu0 %v237
  %v239 = vpop.xlane.xlu0 %238
  %v240 = vsel %vm139, %v222, 0.0
  %241 = vadd.xlane.f32.xlu0 %v240
  %v242 = vpop.xlane.xlu0 %241
  %v243 = vsel %vm139, %v223, 0.0
  %244 = vadd.xlane.f32.xlu0 %v243
  %v245 = vpop.xlane.xlu0 %244
  %v246 = vsel %vm139, %v224, 0.0
  %247 = vadd.xlane.f32.xlu0 %v246
  %v248 = vpop.xlane.xlu0 %247
  %v249 = vsel %vm139, %v225, 0.0
  %250 = vadd.xlane.f32.xlu0 %v249
  %v251 = vpop.xlane.xlu0 %250
  %v252 = vsel %vm139, %v226, 0.0
  %253 = vadd.xlane.f32.xlu0 %v252
  %v254 = vpop.xlane.xlu0 %253
  %v255 = vsel %vm139, %v227, 0.0
  %256 = vadd.xlane.f32.xlu0 %v255
  %v257 = vpop.xlane.xlu0 %256
  %v258 = vsel %vm139, %v228, 0.0
  %259 = vadd.xlane.f32.xlu0 %v258
  %v260 = vpop.xlane.xlu0 %259
  %v261 = vsel %vm139, %v229, 0.0
  %262 = vadd.xlane.f32.xlu0 %v261
  %v263 = vpop.xlane.xlu0 %262
  %v264 = vsel %vm139, %v230, 0.0
  %265 = vadd.xlane.f32.xlu0 %v264
  %v266 = vpop.xlane.xlu0 %265
  %v267 = vsel %vm139, %v231, 0.0
  %268 = vadd.xlane.f32.xlu0 %v267
  %v269 = vpop.xlane.xlu0 %268
  %v270 = vsel %vm139, %v232, 0.0
  %271 = vadd.xlane.f32.xlu0 %v270
  %v272 = vpop.xlane.xlu0 %271
  %v273 = vsel %vm139, %v233, 0.0
  %274 = vadd.xlane.f32.xlu0 %v273
  %v275 = vpop.xlane.xlu0 %274
  %v276 = vsel %vm139, %v234, 0.0
  %277 = vadd.xlane.f32.xlu0 %v276
  %v278 = vpop.xlane.xlu0 %277
  %v279 = vsel %vm139, %v235, 0.0
  %280 = vadd.xlane.f32.xlu0 %v279
  %v281 = vpop.xlane.xlu0 %280
  %v282 = vsel %vm139, %v236, 0.0
  %283 = vadd.xlane.f32.xlu0 %v282
  %v284 = vpop.xlane.xlu0 %283
  %v285 = vmul.f32 %v239, %v188
  %v286 = vmul.f32 %v242, %v188
  %v287 = vmul.f32 %v245, %v188
  %v288 = vmul.f32 %v248, %v188
  %v289 = vmul.f32 %v251, %v188
  %v290 = vmul.f32 %v254, %v188
  %v291 = vmul.f32 %v257, %v188
  %v292 = vmul.f32 %v260, %v188
  %v293 = vmul.f32 %v263, %v188
  %v294 = vmul.f32 %v266, %v188
  %v295 = vmul.f32 %v269, %v188
  %v296 = vmul.f32 %v272, %v188
  %v297 = vmul.f32 %v275, %v188
  %v298 = vmul.f32 %v278, %v188
  %v299 = vmul.f32 %v281, %v188
  %v300 = vmul.f32 %v284, %v188
  %v301 = vadd.f32 %v285, 1e-05
  %v302 = vadd.f32 %v286, 1e-05
  %v303 = vadd.f32 %v287, 1e-05
  %v304 = vadd.f32 %v288, 1e-05
  %v305 = vadd.f32 %v289, 1e-05
  %v306 = vadd.f32 %v290, 1e-05
  %v307 = vadd.f32 %v291, 1e-05
  %v308 = vadd.f32 %v292, 1e-05
  %v309 = vadd.f32 %v293, 1e-05
  %v310 = vadd.f32 %v294, 1e-05
  %v311 = vadd.f32 %v295, 1e-05
  %v312 = vadd.f32 %v296, 1e-05
  %v313 = vadd.f32 %v297, 1e-05
  %v314 = vadd.f32 %v298, 1e-05
  %v315 = vadd.f32 %v299, 1e-05
  %v316 = vadd.f32 %v300, 1e-05
  %v317 = vrsqrt.pop %v301
  %v318 = vrsqrt.pop %v302
  %v319 = vrsqrt.pop %v303
  %v320 = vrsqrt.pop %v304
  %v321 = vrsqrt.pop %v305
  %v322 = vrsqrt.pop %v306
  %v323 = vrsqrt.pop %v307
  %v324 = vrsqrt.pop %v308
  %v325 = vrsqrt.pop %v309
  %v326 = vrsqrt.pop %v310
  %v327 = vrsqrt.pop %v311
  %v328 = vrsqrt.pop %v312
  %v329 = vrsqrt.pop %v313
  %v330 = vrsqrt.pop %v314
  %v331 = vrsqrt.pop %v315
  %v332 = vrsqrt.pop %v316
  %v333 = vmul.f32 %v205, %v317
  %v334 = vmul.f32 %v206, %v318
  %v335 = vmul.f32 %v207, %v319
  %v336 = vmul.f32 %v208, %v320
  %v337 = vmul.f32 %v209, %v321
  %v338 = vmul.f32 %v210, %v322
  %v339 = vmul.f32 %v211, %v323
  %v340 = vmul.f32 %v212, %v324
  %v341 = vmul.f32 %v213, %v325
  %v342 = vmul.f32 %v214, %v326
  %v343 = vmul.f32 %v215, %v327
  %v344 = vmul.f32 %v216, %v328
  %v345 = vmul.f32 %v217, %v329
  %v346 = vmul.f32 %v218, %v330
  %v347 = vmul.f32 %v219, %v331
  %v348 = vmul.f32 %v220, %v332
  %v349 = vlaneseq
  %v350 = vshrl.u32 %v349, 7
  %v351 = vsub.s32 0, %v350
  %v352 = vrot.slane %v56, %v351
  %v353 = vmul.f32 %v333, %v352
  %v354 = vmul.f32 %v334, %v352
  %v355 = vmul.f32 %v335, %v352
  %v356 = vmul.f32 %v336, %v352
  %v357 = vmul.f32 %v337, %v352
  %v358 = vmul.f32 %v338, %v352
  %v359 = vmul.f32 %v339, %v352
  %v360 = vmul.f32 %v340, %v352
  %v361 = vmul.f32 %v341, %v352
  %v362 = vmul.f32 %v342, %v352
  %v363 = vmul.f32 %v343, %v352
  %v364 = vmul.f32 %v344, %v352
  %v365 = vmul.f32 %v345, %v352
  %v366 = vmul.f32 %v346, %v352
  %v367 = vmul.f32 %v347, %v352
  %v368 = vmul.f32 %v348, %v352
  %v369 = vlaneseq
  %v370 = vshrl.u32 %v369, 7
  %v371 = vsub.s32 0, %v370
  %v372 = vrot.slane %v57, %v371
  %v373 = vadd.f32 %v353, %v372
  %v374 = vadd.f32 %v354, %v372
  %v375 = vadd.f32 %v355, %v372
  %v376 = vadd.f32 %v356, %v372
  %v377 = vadd.f32 %v357, %v372
  %v378 = vadd.f32 %v358, %v372
  %v379 = vadd.f32 %v359, %v372
  %v380 = vadd.f32 %v360, %v372
  %v381 = vadd.f32 %v361, %v372
  %v382 = vadd.f32 %v362, %v372
  %v383 = vadd.f32 %v363, %v372
  %v384 = vadd.f32 %v364, %v372
  %v385 = vadd.f32 %v365, %v372
  %v386 = vadd.f32 %v366, %v372
  %v387 = vadd.f32 %v367, %v372
  %v388 = vadd.f32 %v368, %v372
  %v389 = vpack.c.bf16 %v374, %v373
  %v390 = vpack.c.bf16 %v376, %v375
  %v391 = vpack.c.bf16 %v378, %v377
  %v392 = vpack.c.bf16 %v380, %v379
  %v393 = vpack.c.bf16 %v382, %v381
  %v394 = vpack.c.bf16 %v384, %v383
  %v395 = vpack.c.bf16 %v386, %v385
  %v396 = vpack.c.bf16 %v388, %v387
  %v397 = vsel %vm139, %v40, 0.0
  %398 = vadd.xlane.f32.xlu0 %v397
  %v399 = vpop.xlane.xlu0 %398
  %v400 = vsel %vm139, %v41, 0.0
  %401 = vadd.xlane.f32.xlu0 %v400
  %v402 = vpop.xlane.xlu0 %401
  %v403 = vsel %vm139, %v42, 0.0
  %404 = vadd.xlane.f32.xlu0 %v403
  %v405 = vpop.xlane.xlu0 %404
  %v406 = vsel %vm139, %v43, 0.0
  %407 = vadd.xlane.f32.xlu0 %v406
  %v408 = vpop.xlane.xlu0 %407
  %v409 = vsel %vm139, %v44, 0.0
  %410 = vadd.xlane.f32.xlu0 %v409
  %v411 = vpop.xlane.xlu0 %410
  %v412 = vsel %vm139, %v45, 0.0
  %413 = vadd.xlane.f32.xlu0 %v412
  %v414 = vpop.xlane.xlu0 %413
  %v415 = vsel %vm139, %v46, 0.0
  %416 = vadd.xlane.f32.xlu0 %v415
  %v417 = vpop.xlane.xlu0 %416
  %v418 = vsel %vm139, %v47, 0.0
  %419 = vadd.xlane.f32.xlu0 %v418
  %v420 = vpop.xlane.xlu0 %419
  %v421 = vsel %vm139, %v48, 0.0
  %422 = vadd.xlane.f32.xlu0 %v421
  %v423 = vpop.xlane.xlu0 %422
  %v424 = vsel %vm139, %v49, 0.0
  %425 = vadd.xlane.f32.xlu0 %v424
  %v426 = vpop.xlane.xlu0 %425
  %v427 = vsel %vm139, %v50, 0.0
  %428 = vadd.xlane.f32.xlu0 %v427
  %v429 = vpop.xlane.xlu0 %428
  %v430 = vsel %vm139, %v51, 0.0
  %431 = vadd.xlane.f32.xlu0 %v430
  %v432 = vpop.xlane.xlu0 %431
  %v433 = vsel %vm139, %v52, 0.0
  %434 = vadd.xlane.f32.xlu0 %v433
  %v435 = vpop.xlane.xlu0 %434
  %v436 = vsel %vm139, %v53, 0.0
  %437 = vadd.xlane.f32.xlu0 %v436
  %v438 = vpop.xlane.xlu0 %437
  %v439 = vsel %vm139, %v54, 0.0
  %440 = vadd.xlane.f32.xlu0 %v439
  %v441 = vpop.xlane.xlu0 %440
  %v442 = vsel %vm139, %v55, 0.0
  %443 = vadd.xlane.f32.xlu0 %v442
  %v444 = vpop.xlane.xlu0 %443
  %v445 = vmul.f32 %v399, %v188
  %v446 = vmul.f32 %v402, %v188
  %v447 = vmul.f32 %v405, %v188
  %v448 = vmul.f32 %v408, %v188
  %v449 = vmul.f32 %v411, %v188
  %v450 = vmul.f32 %v414, %v188
  %v451 = vmul.f32 %v417, %v188
  %v452 = vmul.f32 %v420, %v188
  %v453 = vmul.f32 %v423, %v188
  %v454 = vmul.f32 %v426, %v188
  %v455 = vmul.f32 %v429, %v188
  %v456 = vmul.f32 %v432, %v188
  %v457 = vmul.f32 %v435, %v188
  %v458 = vmul.f32 %v438, %v188
  %v459 = vmul.f32 %v441, %v188
  %v460 = vmul.f32 %v444, %v188
  %v461 = vsub.f32 %v40, %v445
  %v462 = vsub.f32 %v41, %v446
  %v463 = vsub.f32 %v42, %v447
  %v464 = vsub.f32 %v43, %v448
  %v465 = vsub.f32 %v44, %v449
  %v466 = vsub.f32 %v45, %v450
  %v467 = vsub.f32 %v46, %v451
  %v468 = vsub.f32 %v47, %v452
  %v469 = vsub.f32 %v48, %v453
  %v470 = vsub.f32 %v49, %v454
  %v471 = vsub.f32 %v50, %v455
  %v472 = vsub.f32 %v51, %v456
  %v473 = vsub.f32 %v52, %v457
  %v474 = vsub.f32 %v53, %v458
  %v475 = vsub.f32 %v54, %v459
  %v476 = vsub.f32 %v55, %v460
  %v477 = vmul.f32 %v461, %v461
  %v478 = vmul.f32 %v462, %v462
  %v479 = vmul.f32 %v463, %v463
  %v480 = vmul.f32 %v464, %v464
  %v481 = vmul.f32 %v465, %v465
  %v482 = vmul.f32 %v466, %v466
  %v483 = vmul.f32 %v467, %v467
  %v484 = vmul.f32 %v468, %v468
  %v485 = vmul.f32 %v469, %v469
  %v486 = vmul.f32 %v470, %v470
  %v487 = vmul.f32 %v471, %v471
  %v488 = vmul.f32 %v472, %v472
  %v489 = vmul.f32 %v473, %v473
  %v490 = vmul.f32 %v474, %v474
  %v491 = vmul.f32 %v475, %v475
  %v492 = vmul.f32 %v476, %v476
  %v493 = vsel %vm139, %v477, 0.0
  %494 = vadd.xlane.f32.xlu0 %v493
  %v495 = vpop.xlane.xlu0 %494
  %v496 = vsel %vm139, %v478, 0.0
  %497 = vadd.xlane.f32.xlu0 %v496
  %v498 = vpop.xlane.xlu0 %497
  %v499 = vsel %vm139, %v479, 0.0
  %500 = vadd.xlane.f32.xlu0 %v499
  %v501 = vpop.xlane.xlu0 %500
  %v502 = vsel %vm139, %v480, 0.0
  %503 = vadd.xlane.f32.xlu0 %v502
  %v504 = vpop.xlane.xlu0 %503
  %v505 = vsel %vm139, %v481, 0.0
  %506 = vadd.xlane.f32.xlu0 %v505
  %v507 = vpop.xlane.xlu0 %506
  %v508 = vsel %vm139, %v482, 0.0
  %509 = vadd.xlane.f32.xlu0 %v508
  %v510 = vpop.xlane.xlu0 %509
  %v511 = vsel %vm139, %v483, 0.0
  %512 = vadd.xlane.f32.xlu0 %v511
  %v513 = vpop.xlane.xlu0 %512
  %v514 = vsel %vm139, %v484, 0.0
  %515 = vadd.xlane.f32.xlu0 %v514
  %v516 = vpop.xlane.xlu0 %515
  %v517 = vsel %vm139, %v485, 0.0
  %518 = vadd.xlane.f32.xlu0 %v517
  %v519 = vpop.xlane.xlu0 %518
  %v520 = vsel %vm139, %v486, 0.0
  %521 = vadd.xlane.f32.xlu0 %v520
  %v522 = vpop.xlane.xlu0 %521
  %v523 = vsel %vm139, %v487, 0.0
  %524 = vadd.xlane.f32.xlu0 %v523
  %v525 = vpop.xlane.xlu0 %524
  %v526 = vsel %vm139, %v488, 0.0
  %527 = vadd.xlane.f32.xlu0 %v526
  %v528 = vpop.xlane.xlu0 %527
  %v529 = vsel %vm139, %v489, 0.0
  %530 = vadd.xlane.f32.xlu0 %v529
  %v531 = vpop.xlane.xlu0 %530
  %v532 = vsel %vm139, %v490, 0.0
  %533 = vadd.xlane.f32.xlu0 %v532
  %v534 = vpop.xlane.xlu0 %533
  %v535 = vsel %vm139, %v491, 0.0
  %536 = vadd.xlane.f32.xlu0 %v535
  %v537 = vpop.xlane.xlu0 %536
  %v538 = vsel %vm139, %v492, 0.0
  %539 = vadd.xlane.f32.xlu0 %v538
  %v540 = vpop.xlane.xlu0 %539
  %v541 = vmul.f32 %v495, %v188
  %v542 = vmul.f32 %v498, %v188
  %v543 = vmul.f32 %v501, %v188
  %v544 = vmul.f32 %v504, %v188
  %v545 = vmul.f32 %v507, %v188
  %v546 = vmul.f32 %v510, %v188
  %v547 = vmul.f32 %v513, %v188
  %v548 = vmul.f32 %v516, %v188
  %v549 = vmul.f32 %v519, %v188
  %v550 = vmul.f32 %v522, %v188
  %v551 = vmul.f32 %v525, %v188
  %v552 = vmul.f32 %v528, %v188
  %v553 = vmul.f32 %v531, %v188
  %v554 = vmul.f32 %v534, %v188
  %v555 = vmul.f32 %v537, %v188
  %v556 = vmul.f32 %v540, %v188
  %v557 = vadd.f32 %v541, 1e-05
  %v558 = vadd.f32 %v542, 1e-05
  %v559 = vadd.f32 %v543, 1e-05
  %v560 = vadd.f32 %v544, 1e-05
  %v561 = vadd.f32 %v545, 1e-05
  %v562 = vadd.f32 %v546, 1e-05
  %v563 = vadd.f32 %v547, 1e-05
  %v564 = vadd.f32 %v548, 1e-05
  %v565 = vadd.f32 %v549, 1e-05
  %v566 = vadd.f32 %v550, 1e-05
  %v567 = vadd.f32 %v551, 1e-05
  %v568 = vadd.f32 %v552, 1e-05
  %v569 = vadd.f32 %v553, 1e-05
  %v570 = vadd.f32 %v554, 1e-05
  %v571 = vadd.f32 %v555, 1e-05
  %v572 = vadd.f32 %v556, 1e-05
  %v573 = vrsqrt.pop %v557
  %v574 = vrsqrt.pop %v558
  %v575 = vrsqrt.pop %v559
  %v576 = vrsqrt.pop %v560
  %v577 = vrsqrt.pop %v561
  %v578 = vrsqrt.pop %v562
  %v579 = vrsqrt.pop %v563
  %v580 = vrsqrt.pop %v564
  %v581 = vrsqrt.pop %v565
  %v582 = vrsqrt.pop %v566
  %v583 = vrsqrt.pop %v567
  %v584 = vrsqrt.pop %v568
  %v585 = vrsqrt.pop %v569
  %v586 = vrsqrt.pop %v570
  %v587 = vrsqrt.pop %v571
  %v588 = vrsqrt.pop %v572
  %v589 = vmul.f32 %v461, %v573
  %v590 = vmul.f32 %v462, %v574
  %v591 = vmul.f32 %v463, %v575
  %v592 = vmul.f32 %v464, %v576
  %v593 = vmul.f32 %v465, %v577
  %v594 = vmul.f32 %v466, %v578
  %v595 = vmul.f32 %v467, %v579
  %v596 = vmul.f32 %v468, %v580
  %v597 = vmul.f32 %v469, %v581
  %v598 = vmul.f32 %v470, %v582
  %v599 = vmul.f32 %v471, %v583
  %v600 = vmul.f32 %v472, %v584
  %v601 = vmul.f32 %v473, %v585
  %v602 = vmul.f32 %v474, %v586
  %v603 = vmul.f32 %v475, %v587
  %v604 = vmul.f32 %v476, %v588
  %v605 = vlaneseq
  %v606 = vshrl.u32 %v605, 7
  %v607 = vsub.s32 0, %v606
  %v608 = vrot.slane %v58, %v607
  %v609 = vmul.f32 %v589, %v608
  %v610 = vmul.f32 %v590, %v608
  %v611 = vmul.f32 %v591, %v608
  %v612 = vmul.f32 %v592, %v608
  %v613 = vmul.f32 %v593, %v608
  %v614 = vmul.f32 %v594, %v608
  %v615 = vmul.f32 %v595, %v608
  %v616 = vmul.f32 %v596, %v608
  %v617 = vmul.f32 %v597, %v608
  %v618 = vmul.f32 %v598, %v608
  %v619 = vmul.f32 %v599, %v608
  %v620 = vmul.f32 %v600, %v608
  %v621 = vmul.f32 %v601, %v608
  %v622 = vmul.f32 %v602, %v608
  %v623 = vmul.f32 %v603, %v608
  %v624 = vmul.f32 %v604, %v608
  %v625 = vlaneseq
  %v626 = vshrl.u32 %v625, 7
  %v627 = vsub.s32 0, %v626
  %v628 = vrot.slane %v59, %v627
  %v629 = vadd.f32 %v609, %v628
  %v630 = vadd.f32 %v610, %v628
  %v631 = vadd.f32 %v611, %v628
  %v632 = vadd.f32 %v612, %v628
  %v633 = vadd.f32 %v613, %v628
  %v634 = vadd.f32 %v614, %v628
  %v635 = vadd.f32 %v615, %v628
  %v636 = vadd.f32 %v616, %v628
  %v637 = vadd.f32 %v617, %v628
  %v638 = vadd.f32 %v618, %v628
  %v639 = vadd.f32 %v619, %v628
  %v640 = vadd.f32 %v620, %v628
  %v641 = vadd.f32 %v621, %v628
  %v642 = vadd.f32 %v622, %v628
  %v643 = vadd.f32 %v623, %v628
  %v644 = vadd.f32 %v624, %v628
  %v645 = vpack.c.bf16 %v630, %v629
  %v646 = vpack.c.bf16 %v632, %v631
  %v647 = vpack.c.bf16 %v634, %v633
  %v648 = vpack.c.bf16 %v636, %v635
  %v649 = vpack.c.bf16 %v638, %v637
  %v650 = vpack.c.bf16 %v640, %v639
  %v651 = vpack.c.bf16 %v642, %v641
  %v652 = vpack.c.bf16 %v644, %v643
  %v653 = vlaneseq
  %v654 = vshrl.u32 %v653, 7
  %v655 = vsub.s32 0, %v654
  %v656 = vrot.slane %v60, %v655
  %v661 = vunpack.c.l.b16 %v131
  %v662 = vunpack.c.l.b16 %v132
  %v663 = vunpack.c.l.b16 %v133
  %v664 = vunpack.c.l.b16 %v134
  %v665 = vpack.c.b16 %v662, %v661
  %v666 = vpack.c.b16 %v664, %v663
  %v670 = vsel %vm139, %v389, 0
  %v673 = vsel %vm139, %v390, 0
  %v676 = vsel %vm139, %v391, 0
  %v679 = vsel %vm139, %v392, 0
  %v682 = vsel %vm139, %v393, 0
  %v685 = vsel %vm139, %v394, 0
  %v688 = vsel %vm139, %v395, 0
  %v691 = vsel %vm139, %v396, 0
  %693 = vmatprep.subr.bf16.mxu0 0
  %694 = vmatpush1.bf16.msra.mxu0 0
  %695 = vmatprep.subr.bf16.mxu0 0
  %696 = vmatpush1.bf16.msra.mxu0 0
  %697 = vmatprep.subr.bf16.mxu0 0
  %698 = vmatpush1.bf16.msra.mxu0 0
  %699 = vmatprep.subr.bf16.mxu0 0
  %700 = vmatpush1.bf16.msra.mxu0 0
  %701 = vmatprep.subr.bf16.mxu0 0
  %702 = vmatpush1.bf16.msra.mxu0 0
  %703 = vmatprep.subr.bf16.mxu0 0
  %704 = vmatpush1.bf16.msra.mxu0 0
  %705 = vmatprep.subr.bf16.mxu0 0
  %706 = vmatpush1.bf16.msra.mxu0 %v666
  %707 = vmatprep.subr.bf16.mxu0 0
  %708 = vmatpush1.bf16.msra.mxu0 %v665
  %709 = vmatprep.subr.bf16.mxu0 0
  %710 = vmatpush2.bf16.msra.mxu0 0
  %711 = vmatprep.subr.bf16.mxu0 0
  %712 = vmatpush2.bf16.msra.mxu0 0
  %713 = vmatprep.subr.bf16.mxu0 0
  %714 = vmatpush2.bf16.msra.mxu0 0
  %715 = vmatprep.subr.bf16.mxu0 0
  %716 = vmatpush2.bf16.msra.mxu0 0
  %717 = vmatprep.subr.bf16.mxu0 0
  %718 = vmatpush2.bf16.msra.mxu0 0
  %719 = vmatprep.subr.bf16.mxu0 0
  %720 = vmatpush2.bf16.msra.mxu0 0
  %721 = vmatprep.subr.bf16.mxu0 0
  %722 = vmatpush2.bf16.msra.mxu0 0
  %723 = vmatprep.subr.bf16.mxu0 0
  %724 = vmatpush2.bf16.msra.mxu0 0
  %725 = vmatprep.mubr.bf16.mxu0 0
  %726 = vmatmul.mubr.bf16.gmra.mxu0 %v670
  %v727 = vpop.f32.mrf.mxu0
  %v728 = vadd.f32 %v656, %v727
  %v729 = vpop.f32.mrf.mxu0
  %v730 = vpop.f32.mrf.mxu0
  %v731 = vadd.f32 %v656, %v730
  %v732 = vpop.f32.mrf.mxu0
  %733 = vmatprep.mubr.bf16.mxu0 0
  %734 = vmatmul.mubr.bf16.gmra.mxu0 %v673
  %v735 = vpop.f32.mrf.mxu0
  %v736 = vadd.f32 %v656, %v735
  %v737 = vpop.f32.mrf.mxu0
  %v738 = vpop.f32.mrf.mxu0
  %v739 = vadd.f32 %v656, %v738
  %v740 = vpop.f32.mrf.mxu0
  %741 = vmatprep.mubr.bf16.mxu0 0
  %742 = vmatmul.mubr.bf16.gmra.mxu0 %v676
  %v743 = vpop.f32.mrf.mxu0
  %v744 = vadd.f32 %v656, %v743
  %v745 = vpop.f32.mrf.mxu0
  %v746 = vpop.f32.mrf.mxu0
  %v747 = vadd.f32 %v656, %v746
  %v748 = vpop.f32.mrf.mxu0
  %749 = vmatprep.mubr.bf16.mxu0 0
  %750 = vmatmul.mubr.bf16.gmra.mxu0 %v679
  %v751 = vpop.f32.mrf.mxu0
  %v752 = vadd.f32 %v656, %v751
  %v753 = vpop.f32.mrf.mxu0
  %v754 = vpop.f32.mrf.mxu0
  %v755 = vadd.f32 %v656, %v754
  %v756 = vpop.f32.mrf.mxu0
  %757 = vmatprep.mubr.bf16.mxu0 0
  %758 = vmatmul.mubr.bf16.gmra.mxu0 %v682
  %v759 = vpop.f32.mrf.mxu0
  %v760 = vadd.f32 %v656, %v759
  %v761 = vpop.f32.mrf.mxu0
  %v762 = vpop.f32.mrf.mxu0
  %v763 = vadd.f32 %v656, %v762
  %v764 = vpop.f32.mrf.mxu0
  %765 = vmatprep.mubr.bf16.mxu0 0
  %766 = vmatmul.mubr.bf16.gmra.mxu0 %v685
  %v767 = vpop.f32.mrf.mxu0
  %v768 = vadd.f32 %v656, %v767
  %v769 = vpop.f32.mrf.mxu0
  %v770 = vpop.f32.mrf.mxu0
  %v771 = vadd.f32 %v656, %v770
  %v772 = vpop.f32.mrf.mxu0
  %773 = vmatprep.mubr.bf16.mxu0 0
  %774 = vmatmul.mubr.bf16.gmra.mxu0 %v688
  %v775 = vpop.f32.mrf.mxu0
  %v776 = vadd.f32 %v656, %v775
  %v777 = vpop.f32.mrf.mxu0
  %v778 = vpop.f32.mrf.mxu0
  %v779 = vadd.f32 %v656, %v778
  %v780 = vpop.f32.mrf.mxu0
  %781 = vmatprep.mubr.bf16.mxu0 0
  %782 = vmatmul.mubr.bf16.gmra.mxu0 %v691
  %v783 = vpop.f32.mrf.mxu0
  %v784 = vadd.f32 %v656, %v783
  %v785 = vpop.f32.mrf.mxu0
  %v786 = vpop.f32.mrf.mxu0
  %v787 = vadd.f32 %v656, %v786
  %v788 = vpop.f32.mrf.mxu0
  %789 = vdwg.mxu0
  %v790 = vmul.f32 %v728, 0.35355338
  %v791 = vmul.f32 %v731, 0.35355338
  %v792 = vmul.f32 %v736, 0.35355338
  %v793 = vmul.f32 %v739, 0.35355338
  %v794 = vmul.f32 %v744, 0.35355338
  %v795 = vmul.f32 %v747, 0.35355338
  %v796 = vmul.f32 %v752, 0.35355338
  %v797 = vmul.f32 %v755, 0.35355338
  %v798 = vmul.f32 %v760, 0.35355338
  %v799 = vmul.f32 %v763, 0.35355338
  %v800 = vmul.f32 %v768, 0.35355338
  %v801 = vmul.f32 %v771, 0.35355338
  %v802 = vmul.f32 %v776, 0.35355338
  %v803 = vmul.f32 %v779, 0.35355338
  %v804 = vmul.f32 %v784, 0.35355338
  %v805 = vmul.f32 %v787, 0.35355338
  %v806 = vlaneseq
  %v807 = vshrl.u32 %v806, 7
  %v808 = vsub.s32 0, %v807
  %v809 = vrot.slane %v65, %v808
  %810 = vrot.lane.b32.xlu0 %v665, 96
  %v811 = vpop.permute.xlu0 %810
  %812 = vrot.lane.b32.xlu0 %v666, 96
  %v813 = vpop.permute.xlu0 %812
  %v817 = vsel %vm139, %v645, 0
  %v820 = vsel %vm139, %v646, 0
  %v823 = vsel %vm139, %v647, 0
  %v826 = vsel %vm139, %v648, 0
  %v829 = vsel %vm139, %v649, 0
  %v832 = vsel %vm139, %v650, 0
  %v835 = vsel %vm139, %v651, 0
  %v838 = vsel %vm139, %v652, 0
  %840 = vmatprep.subr.bf16.mxu0 0
  %841 = vmatpush1.bf16.msra.mxu0 0
  %842 = vmatprep.subr.bf16.mxu0 0
  %843 = vmatpush1.bf16.msra.mxu0 0
  %844 = vmatprep.subr.bf16.mxu0 0
  %845 = vmatpush1.bf16.msra.mxu0 0
  %846 = vmatprep.subr.bf16.mxu0 0
  %847 = vmatpush1.bf16.msra.mxu0 0
  %848 = vmatprep.subr.bf16.mxu0 0
  %849 = vmatpush1.bf16.msra.mxu0 0
  %850 = vmatprep.subr.bf16.mxu0 0
  %851 = vmatpush1.bf16.msra.mxu0 0
  %852 = vmatprep.subr.bf16.mxu0 0
  %853 = vmatpush1.bf16.msra.mxu0 %v813
  %854 = vmatprep.subr.bf16.mxu0 0
  %855 = vmatpush1.bf16.msra.mxu0 %v811
  %856 = vmatprep.subr.bf16.mxu0 0
  %857 = vmatpush2.bf16.msra.mxu0 0
  %858 = vmatprep.subr.bf16.mxu0 0
  %859 = vmatpush2.bf16.msra.mxu0 0
  %860 = vmatprep.subr.bf16.mxu0 0
  %861 = vmatpush2.bf16.msra.mxu0 0
  %862 = vmatprep.subr.bf16.mxu0 0
  %863 = vmatpush2.bf16.msra.mxu0 0
  %864 = vmatprep.subr.bf16.mxu0 0
  %865 = vmatpush2.bf16.msra.mxu0 0
  %866 = vmatprep.subr.bf16.mxu0 0
  %867 = vmatpush2.bf16.msra.mxu0 0
  %868 = vmatprep.subr.bf16.mxu0 0
  %869 = vmatpush2.bf16.msra.mxu0 0
  %870 = vmatprep.subr.bf16.mxu0 0
  %871 = vmatpush2.bf16.msra.mxu0 0
  %872 = vmatprep.mubr.bf16.mxu0 0
  %873 = vmatmul.mubr.bf16.gmra.mxu0 %v817
  %v874 = vpop.f32.mrf.mxu0
  %v875 = vadd.f32 %v809, %v874
  %v876 = vpop.f32.mrf.mxu0
  %v877 = vpop.f32.mrf.mxu0
  %v878 = vadd.f32 %v809, %v877
  %v879 = vpop.f32.mrf.mxu0
  %880 = vmatprep.mubr.bf16.mxu0 0
  %881 = vmatmul.mubr.bf16.gmra.mxu0 %v820
  %v882 = vpop.f32.mrf.mxu0
  %v883 = vadd.f32 %v809, %v882
  %v884 = vpop.f32.mrf.mxu0
  %v885 = vpop.f32.mrf.mxu0
  %v886 = vadd.f32 %v809, %v885
  %v887 = vpop.f32.mrf.mxu0
  %888 = vmatprep.mubr.bf16.mxu0 0
  %889 = vmatmul.mubr.bf16.gmra.mxu0 %v823
  %v890 = vpop.f32.mrf.mxu0
  %v891 = vadd.f32 %v809, %v890
  %v892 = vpop.f32.mrf.mxu0
  %v893 = vpop.f32.mrf.mxu0
  %v894 = vadd.f32 %v809, %v893
  %v895 = vpop.f32.mrf.mxu0
  %896 = vmatprep.mubr.bf16.mxu0 0
  %897 = vmatmul.mubr.bf16.gmra.mxu0 %v826
  %v898 = vpop.f32.mrf.mxu0
  %v899 = vadd.f32 %v809, %v898
  %v900 = vpop.f32.mrf.mxu0
  %v901 = vpop.f32.mrf.mxu0
  %v902 = vadd.f32 %v809, %v901
  %v903 = vpop.f32.mrf.mxu0
  %904 = vmatprep.mubr.bf16.mxu0 0
  %905 = vmatmul.mubr.bf16.gmra.mxu0 %v829
  %v906 = vpop.f32.mrf.mxu0
  %v907 = vadd.f32 %v809, %v906
  %v908 = vpop.f32.mrf.mxu0
  %v909 = vpop.f32.mrf.mxu0
  %v910 = vadd.f32 %v809, %v909
  %v911 = vpop.f32.mrf.mxu0
  %912 = vmatprep.mubr.bf16.mxu0 0
  %913 = vmatmul.mubr.bf16.gmra.mxu0 %v832
  %v914 = vpop.f32.mrf.mxu0
  %v915 = vadd.f32 %v809, %v914
  %v916 = vpop.f32.mrf.mxu0
  %v917 = vpop.f32.mrf.mxu0
  %v918 = vadd.f32 %v809, %v917
  %v919 = vpop.f32.mrf.mxu0
  %920 = vmatprep.mubr.bf16.mxu0 0
  %921 = vmatmul.mubr.bf16.gmra.mxu0 %v835
  %v922 = vpop.f32.mrf.mxu0
  %v923 = vadd.f32 %v809, %v922
  %v924 = vpop.f32.mrf.mxu0
  %v925 = vpop.f32.mrf.mxu0
  %v926 = vadd.f32 %v809, %v925
  %v927 = vpop.f32.mrf.mxu0
  %928 = vmatprep.mubr.bf16.mxu0 0
  %929 = vmatmul.mubr.bf16.gmra.mxu0 %v838
  %v930 = vpop.f32.mrf.mxu0
  %v931 = vadd.f32 %v809, %v930
  %v932 = vpop.f32.mrf.mxu0
  %v933 = vpop.f32.mrf.mxu0
  %v934 = vadd.f32 %v809, %v933
  %v935 = vpop.f32.mrf.mxu0
  %936 = vdwg.mxu0
  %v937 = vpack.c.bf16 %v878, %v875
  %v938 = vpack.c.bf16 %v886, %v883
  %v939 = vpack.c.bf16 %v894, %v891
  %v940 = vpack.c.bf16 %v902, %v899
  %v941 = vpack.c.bf16 %v910, %v907
  %v942 = vpack.c.bf16 %v918, %v915
  %v943 = vpack.c.bf16 %v926, %v923
  %v944 = vpack.c.bf16 %v934, %v931
  %v945 = vmul.f32 %v790, %v99
  %v946 = vmul.f32 %v791, %v100
  %v947 = vmul.f32 %v792, %v101
  %v948 = vmul.f32 %v793, %v102
  %v949 = vmul.f32 %v794, %v103
  %v950 = vmul.f32 %v795, %v104
  %v951 = vmul.f32 %v796, %v105
  %v952 = vmul.f32 %v797, %v106
  %v953 = vmul.f32 %v790, %v107
  %v954 = vmul.f32 %v791, %v108
  %v955 = vmul.f32 %v792, %v109
  %v956 = vmul.f32 %v793, %v110
  %v957 = vmul.f32 %v794, %v111
  %v958 = vmul.f32 %v795, %v112
  %v959 = vmul.f32 %v796, %v113
  %v960 = vmul.f32 %v797, %v114
  %v961 = vmul.f32 %v790, %v115
  %v962 = vmul.f32 %v791, %v116
  %v963 = vmul.f32 %v792, %v117
  %v964 = vmul.f32 %v793, %v118
  %v965 = vmul.f32 %v794, %v119
  %v966 = vmul.f32 %v795, %v120
  %v967 = vmul.f32 %v796, %v121
  %v968 = vmul.f32 %v797, %v122
  %v969 = vmul.f32 %v790, %v123
  %v970 = vmul.f32 %v791, %v124
  %v971 = vmul.f32 %v792, %v125
  %v972 = vmul.f32 %v793, %v126
  %v973 = vmul.f32 %v794, %v127
  %v974 = vmul.f32 %v795, %v128
  %v975 = vmul.f32 %v796, %v129
  %v976 = vmul.f32 %v797, %v130
  %v977 = vpack.c.bf16 %v946, %v945
  %v978 = vpack.c.bf16 %v948, %v947
  %v979 = vpack.c.bf16 %v950, %v949
  %v980 = vpack.c.bf16 %v952, %v951
  %v981 = vpack.c.bf16 %v954, %v953
  %v982 = vpack.c.bf16 %v956, %v955
  %v983 = vpack.c.bf16 %v958, %v957
  %v984 = vpack.c.bf16 %v960, %v959
  %v985 = vpack.c.bf16 %v962, %v961
  %v986 = vpack.c.bf16 %v964, %v963
  %v987 = vpack.c.bf16 %v966, %v965
  %v988 = vpack.c.bf16 %v968, %v967
  %v989 = vpack.c.bf16 %v970, %v969
  %v990 = vpack.c.bf16 %v972, %v971
  %v991 = vpack.c.bf16 %v974, %v973
  %v992 = vpack.c.bf16 %v976, %v975
  %v994 = vsel %vm139, %v977, 0
  %v997 = vsel %vm139, %v978, 0
  %v1000 = vsel %vm139, %v979, 0
  %v1003 = vsel %vm139, %v980, 0
  %v1006 = vsel %vm139, %v981, 0
  %v1009 = vsel %vm139, %v982, 0
  %v1012 = vsel %vm139, %v983, 0
  %v1015 = vsel %vm139, %v984, 0
  %v1018 = vsel %vm139, %v985, 0
  %v1021 = vsel %vm139, %v986, 0
  %v1024 = vsel %vm139, %v987, 0
  %v1027 = vsel %vm139, %v988, 0
  %v1030 = vsel %vm139, %v989, 0
  %v1033 = vsel %vm139, %v990, 0
  %v1036 = vsel %vm139, %v991, 0
  %v1039 = vsel %vm139, %v992, 0
  %v1042 = vsel %vm139, %v937, 0
  %v1045 = vsel %vm139, %v938, 0
  %v1048 = vsel %vm139, %v939, 0
  %v1051 = vsel %vm139, %v940, 0
  %1053 = vmatprep.subr.bf16.mxu0 0
  %1054 = vmatpush1.bf16.xpose.msra.mxu0 0
  %1055 = vmatprep.subr.bf16.mxu0 0
  %1056 = vmatpush1.bf16.xpose.msra.mxu0 0
  %1057 = vmatprep.subr.bf16.mxu0 0
  %1058 = vmatpush1.bf16.xpose.msra.mxu0 0
  %1059 = vmatprep.subr.bf16.mxu0 0
  %1060 = vmatpush1.bf16.xpose.msra.mxu0 0
  %1061 = vmatprep.subr.bf16.mxu0 0
  %1062 = vmatpush1.bf16.xpose.msra.mxu0 %v1051
  %1063 = vmatprep.subr.bf16.mxu0 0
  %1064 = vmatpush1.bf16.xpose.msra.mxu0 %v1048
  %1065 = vmatprep.subr.bf16.mxu0 0
  %1066 = vmatpush1.bf16.xpose.msra.mxu0 %v1045
  %1067 = vmatprep.subr.bf16.mxu0 0
  %1068 = vmatpush1.bf16.xpose.msra.mxu0 %v1042
  %1069 = vmatprep.subr.bf16.mxu0 0
  %1070 = vmatpush2.bf16.xpose.msra.mxu0 0
  %1071 = vmatprep.subr.bf16.mxu0 0
  %1072 = vmatpush2.bf16.xpose.msra.mxu0 0
  %1073 = vmatprep.subr.bf16.mxu0 0
  %1074 = vmatpush2.bf16.xpose.msra.mxu0 0
  %1075 = vmatprep.subr.bf16.mxu0 0
  %1076 = vmatpush2.bf16.xpose.msra.mxu0 0
  %1077 = vmatprep.subr.bf16.mxu0 0
  %1078 = vmatpush2.bf16.xpose.msra.mxu0 0
  %1079 = vmatprep.subr.bf16.mxu0 0
  %1080 = vmatpush2.bf16.xpose.msra.mxu0 0
  %1081 = vmatprep.subr.bf16.mxu0 0
  %1082 = vmatpush2.bf16.xpose.msra.mxu0 0
  %1083 = vmatprep.subr.bf16.mxu0 0
  %1084 = vmatpush2.bf16.xpose.msra.mxu0 0
  %1085 = vmatprep.mubr.bf16.mxu0 0
  %1086 = vmatmul.mubr.bf16.gmra.mxu0 %v994
  %v1087 = vpop.f32.mrf.mxu0
  %v1088 = vadd.f32 %v67, %v1087
  %v1089 = vpop.f32.mrf.mxu0
  %v1090 = vpop.f32.mrf.mxu0
  %v1091 = vadd.f32 %v68, %v1090
  %v1092 = vpop.f32.mrf.mxu0
  %1093 = vmatprep.mubr.bf16.mxu0 0
  %1094 = vmatmul.mubr.bf16.gmra.mxu0 %v997
  %v1095 = vpop.f32.mrf.mxu0
  %v1096 = vadd.f32 %v69, %v1095
  %v1097 = vpop.f32.mrf.mxu0
  %v1098 = vpop.f32.mrf.mxu0
  %v1099 = vadd.f32 %v70, %v1098
  %v1100 = vpop.f32.mrf.mxu0
  %1101 = vmatprep.mubr.bf16.mxu0 0
  %1102 = vmatmul.mubr.bf16.gmra.mxu0 %v1000
  %v1103 = vpop.f32.mrf.mxu0
  %v1104 = vadd.f32 %v71, %v1103
  %v1105 = vpop.f32.mrf.mxu0
  %v1106 = vpop.f32.mrf.mxu0
  %v1107 = vadd.f32 %v72, %v1106
  %v1108 = vpop.f32.mrf.mxu0
  %1109 = vmatprep.mubr.bf16.mxu0 0
  %1110 = vmatmul.mubr.bf16.gmra.mxu0 %v1003
  %v1111 = vpop.f32.mrf.mxu0
  %v1112 = vadd.f32 %v73, %v1111
  %v1113 = vpop.f32.mrf.mxu0
  %v1114 = vpop.f32.mrf.mxu0
  %v1115 = vadd.f32 %v74, %v1114
  %v1116 = vpop.f32.mrf.mxu0
  %1117 = vmatprep.mubr.bf16.mxu0 0
  %1118 = vmatmul.mubr.bf16.gmra.mxu0 %v1006
  %v1119 = vpop.f32.mrf.mxu0
  %v1120 = vadd.f32 %v75, %v1119
  %v1121 = vpop.f32.mrf.mxu0
  %v1122 = vpop.f32.mrf.mxu0
  %v1123 = vadd.f32 %v76, %v1122
  %v1124 = vpop.f32.mrf.mxu0
  %1125 = vmatprep.mubr.bf16.mxu0 0
  %1126 = vmatmul.mubr.bf16.gmra.mxu0 %v1009
  %v1127 = vpop.f32.mrf.mxu0
  %v1128 = vadd.f32 %v77, %v1127
  %v1129 = vpop.f32.mrf.mxu0
  %v1130 = vpop.f32.mrf.mxu0
  %v1131 = vadd.f32 %v78, %v1130
  %v1132 = vpop.f32.mrf.mxu0
  %1133 = vmatprep.mubr.bf16.mxu0 0
  %1134 = vmatmul.mubr.bf16.gmra.mxu0 %v1012
  %v1135 = vpop.f32.mrf.mxu0
  %v1136 = vadd.f32 %v79, %v1135
  %v1137 = vpop.f32.mrf.mxu0
  %v1138 = vpop.f32.mrf.mxu0
  %v1139 = vadd.f32 %v80, %v1138
  %v1140 = vpop.f32.mrf.mxu0
  %1141 = vmatprep.mubr.bf16.mxu0 0
  %1142 = vmatmul.mubr.bf16.gmra.mxu0 %v1015
  %v1143 = vpop.f32.mrf.mxu0
  %v1144 = vadd.f32 %v81, %v1143
  %v1145 = vpop.f32.mrf.mxu0
  %v1146 = vpop.f32.mrf.mxu0
  %v1147 = vadd.f32 %v82, %v1146
  %v1148 = vpop.f32.mrf.mxu0
  %1149 = vmatprep.mubr.bf16.mxu0 0
  %1150 = vmatmul.mubr.bf16.gmra.mxu0 %v1018
  %v1151 = vpop.f32.mrf.mxu0
  %v1152 = vadd.f32 %v83, %v1151
  %v1153 = vpop.f32.mrf.mxu0
  %v1154 = vpop.f32.mrf.mxu0
  %v1155 = vadd.f32 %v84, %v1154
  %v1156 = vpop.f32.mrf.mxu0
  %1157 = vmatprep.mubr.bf16.mxu0 0
  %1158 = vmatmul.mubr.bf16.gmra.mxu0 %v1021
  %v1159 = vpop.f32.mrf.mxu0
  %v1160 = vadd.f32 %v85, %v1159
  %v1161 = vpop.f32.mrf.mxu0
  %v1162 = vpop.f32.mrf.mxu0
  %v1163 = vadd.f32 %v86, %v1162
  %v1164 = vpop.f32.mrf.mxu0
  %1165 = vmatprep.mubr.bf16.mxu0 0
  %1166 = vmatmul.mubr.bf16.gmra.mxu0 %v1024
  %v1167 = vpop.f32.mrf.mxu0
  %v1168 = vadd.f32 %v87, %v1167
  %v1169 = vpop.f32.mrf.mxu0
  %v1170 = vpop.f32.mrf.mxu0
  %v1171 = vadd.f32 %v88, %v1170
  %v1172 = vpop.f32.mrf.mxu0
  %1173 = vmatprep.mubr.bf16.mxu0 0
  %1174 = vmatmul.mubr.bf16.gmra.mxu0 %v1027
  %v1175 = vpop.f32.mrf.mxu0
  %v1176 = vadd.f32 %v89, %v1175
  %v1177 = vpop.f32.mrf.mxu0
  %v1178 = vpop.f32.mrf.mxu0
  %v1179 = vadd.f32 %v90, %v1178
  %v1180 = vpop.f32.mrf.mxu0
  %1181 = vmatprep.mubr.bf16.mxu0 0
  %1182 = vmatmul.mubr.bf16.gmra.mxu0 %v1030
  %v1183 = vpop.f32.mrf.mxu0
  %v1184 = vadd.f32 %v91, %v1183
  %v1185 = vpop.f32.mrf.mxu0
  %v1186 = vpop.f32.mrf.mxu0
  %v1187 = vadd.f32 %v92, %v1186
  %v1188 = vpop.f32.mrf.mxu0
  %1189 = vmatprep.mubr.bf16.mxu0 0
  %1190 = vmatmul.mubr.bf16.gmra.mxu0 %v1033
  %v1191 = vpop.f32.mrf.mxu0
  %v1192 = vadd.f32 %v93, %v1191
  %v1193 = vpop.f32.mrf.mxu0
  %v1194 = vpop.f32.mrf.mxu0
  %v1195 = vadd.f32 %v94, %v1194
  %v1196 = vpop.f32.mrf.mxu0
  %1197 = vmatprep.mubr.bf16.mxu0 0
  %1198 = vmatmul.mubr.bf16.gmra.mxu0 %v1036
  %v1199 = vpop.f32.mrf.mxu0
  %v1200 = vadd.f32 %v95, %v1199
  %v1201 = vpop.f32.mrf.mxu0
  %v1202 = vpop.f32.mrf.mxu0
  %v1203 = vadd.f32 %v96, %v1202
  %v1204 = vpop.f32.mrf.mxu0
  %1205 = vmatprep.mubr.bf16.mxu0 0
  %1206 = vmatmul.mubr.bf16.gmra.mxu0 %v1039
  %v1207 = vpop.f32.mrf.mxu0
  %v1208 = vadd.f32 %v97, %v1207
  %v1209 = vpop.f32.mrf.mxu0
  %v1210 = vpop.f32.mrf.mxu0
  %v1211 = vadd.f32 %v98, %v1210
  %v1212 = vpop.f32.mrf.mxu0
  %1213 = vdwg.mxu0
  %vm1214 = vcmask 523264
  %v1215 = vsel %vm1214, %v1088, -inf
  %1216 = vmax.xlane.f32.xlu0 %v1215
  %v1217 = vpop.xlane.xlu0 %1216
  %v1218 = vsel %vm1214, %v1091, -inf
  %1219 = vmax.xlane.f32.xlu0 %v1218
  %v1220 = vpop.xlane.xlu0 %1219
  %v1221 = vsel %vm1214, %v1096, -inf
  %1222 = vmax.xlane.f32.xlu0 %v1221
  %v1223 = vpop.xlane.xlu0 %1222
  %v1224 = vsel %vm1214, %v1099, -inf
  %1225 = vmax.xlane.f32.xlu0 %v1224
  %v1226 = vpop.xlane.xlu0 %1225
  %v1227 = vsel %vm1214, %v1104, -inf
  %1228 = vmax.xlane.f32.xlu0 %v1227
  %v1229 = vpop.xlane.xlu0 %1228
  %v1230 = vsel %vm1214, %v1107, -inf
  %1231 = vmax.xlane.f32.xlu0 %v1230
  %v1232 = vpop.xlane.xlu0 %1231
  %v1233 = vsel %vm1214, %v1112, -inf
  %1234 = vmax.xlane.f32.xlu0 %v1233
  %v1235 = vpop.xlane.xlu0 %1234
  %v1236 = vsel %vm1214, %v1115, -inf
  %1237 = vmax.xlane.f32.xlu0 %v1236
  %v1238 = vpop.xlane.xlu0 %1237
  %v1239 = vsel %vm1214, %v1120, -inf
  %1240 = vmax.xlane.f32.xlu0 %v1239
  %v1241 = vpop.xlane.xlu0 %1240
  %v1242 = vsel %vm1214, %v1123, -inf
  %1243 = vmax.xlane.f32.xlu0 %v1242
  %v1244 = vpop.xlane.xlu0 %1243
  %v1245 = vsel %vm1214, %v1128, -inf
  %1246 = vmax.xlane.f32.xlu0 %v1245
  %v1247 = vpop.xlane.xlu0 %1246
  %v1248 = vsel %vm1214, %v1131, -inf
  %1249 = vmax.xlane.f32.xlu0 %v1248
  %v1250 = vpop.xlane.xlu0 %1249
  %v1251 = vsel %vm1214, %v1136, -inf
  %1252 = vmax.xlane.f32.xlu0 %v1251
  %v1253 = vpop.xlane.xlu0 %1252
  %v1254 = vsel %vm1214, %v1139, -inf
  %1255 = vmax.xlane.f32.xlu0 %v1254
  %v1256 = vpop.xlane.xlu0 %1255
  %v1257 = vsel %vm1214, %v1144, -inf
  %1258 = vmax.xlane.f32.xlu0 %v1257
  %v1259 = vpop.xlane.xlu0 %1258
  %v1260 = vsel %vm1214, %v1147, -inf
  %1261 = vmax.xlane.f32.xlu0 %v1260
  %v1262 = vpop.xlane.xlu0 %1261
  %v1263 = vsel %vm1214, %v1152, -inf
  %1264 = vmax.xlane.f32.xlu0 %v1263
  %v1265 = vpop.xlane.xlu0 %1264
  %v1266 = vsel %vm1214, %v1155, -inf
  %1267 = vmax.xlane.f32.xlu0 %v1266
  %v1268 = vpop.xlane.xlu0 %1267
  %v1269 = vsel %vm1214, %v1160, -inf
  %1270 = vmax.xlane.f32.xlu0 %v1269
  %v1271 = vpop.xlane.xlu0 %1270
  %v1272 = vsel %vm1214, %v1163, -inf
  %1273 = vmax.xlane.f32.xlu0 %v1272
  %v1274 = vpop.xlane.xlu0 %1273
  %v1275 = vsel %vm1214, %v1168, -inf
  %1276 = vmax.xlane.f32.xlu0 %v1275
  %v1277 = vpop.xlane.xlu0 %1276
  %v1278 = vsel %vm1214, %v1171, -inf
  %1279 = vmax.xlane.f32.xlu0 %v1278
  %v1280 = vpop.xlane.xlu0 %1279
  %v1281 = vsel %vm1214, %v1176, -inf
  %1282 = vmax.xlane.f32.xlu0 %v1281
  %v1283 = vpop.xlane.xlu0 %1282
  %v1284 = vsel %vm1214, %v1179, -inf
  %1285 = vmax.xlane.f32.xlu0 %v1284
  %v1286 = vpop.xlane.xlu0 %1285
  %v1287 = vsel %vm1214, %v1184, -inf
  %1288 = vmax.xlane.f32.xlu0 %v1287
  %v1289 = vpop.xlane.xlu0 %1288
  %v1290 = vsel %vm1214, %v1187, -inf
  %1291 = vmax.xlane.f32.xlu0 %v1290
  %v1292 = vpop.xlane.xlu0 %1291
  %v1293 = vsel %vm1214, %v1192, -inf
  %1294 = vmax.xlane.f32.xlu0 %v1293
  %v1295 = vpop.xlane.xlu0 %1294
  %v1296 = vsel %vm1214, %v1195, -inf
  %1297 = vmax.xlane.f32.xlu0 %v1296
  %v1298 = vpop.xlane.xlu0 %1297
  %v1299 = vsel %vm1214, %v1200, -inf
  %1300 = vmax.xlane.f32.xlu0 %v1299
  %v1301 = vpop.xlane.xlu0 %1300
  %v1302 = vsel %vm1214, %v1203, -inf
  %1303 = vmax.xlane.f32.xlu0 %v1302
  %v1304 = vpop.xlane.xlu0 %1303
  %v1305 = vsel %vm1214, %v1208, -inf
  %1306 = vmax.xlane.f32.xlu0 %v1305
  %v1307 = vpop.xlane.xlu0 %1306
  %v1308 = vsel %vm1214, %v1211, -inf
  %1309 = vmax.xlane.f32.xlu0 %v1308
  %v1310 = vpop.xlane.xlu0 %1309
  %v1311 = vsub.f32 %v1088, %v1217
  %v1312 = vsub.f32 %v1091, %v1220
  %v1313 = vsub.f32 %v1096, %v1223
  %v1314 = vsub.f32 %v1099, %v1226
  %v1315 = vsub.f32 %v1104, %v1229
  %v1316 = vsub.f32 %v1107, %v1232
  %v1317 = vsub.f32 %v1112, %v1235
  %v1318 = vsub.f32 %v1115, %v1238
  %v1319 = vsub.f32 %v1120, %v1241
  %v1320 = vsub.f32 %v1123, %v1244
  %v1321 = vsub.f32 %v1128, %v1247
  %v1322 = vsub.f32 %v1131, %v1250
  %v1323 = vsub.f32 %v1136, %v1253
  %v1324 = vsub.f32 %v1139, %v1256
  %v1325 = vsub.f32 %v1144, %v1259
  %v1326 = vsub.f32 %v1147, %v1262
  %v1327 = vsub.f32 %v1152, %v1265
  %v1328 = vsub.f32 %v1155, %v1268
  %v1329 = vsub.f32 %v1160, %v1271
  %v1330 = vsub.f32 %v1163, %v1274
  %v1331 = vsub.f32 %v1168, %v1277
  %v1332 = vsub.f32 %v1171, %v1280
  %v1333 = vsub.f32 %v1176, %v1283
  %v1334 = vsub.f32 %v1179, %v1286
  %v1335 = vsub.f32 %v1184, %v1289
  %v1336 = vsub.f32 %v1187, %v1292
  %v1337 = vsub.f32 %v1192, %v1295
  %v1338 = vsub.f32 %v1195, %v1298
  %v1339 = vsub.f32 %v1200, %v1301
  %v1340 = vsub.f32 %v1203, %v1304
  %v1341 = vsub.f32 %v1208, %v1307
  %v1342 = vsub.f32 %v1211, %v1310
  %v1343 = vmul.f32 %v1311, 1.442695
  %v1344 = vpow.pop %v1343
  %v1345 = vmul.f32 %v1312, 1.442695
  %v1346 = vpow.pop %v1345
  %v1347 = vmul.f32 %v1313, 1.442695
  %v1348 = vpow.pop %v1347
  %v1349 = vmul.f32 %v1314, 1.442695
  %v1350 = vpow.pop %v1349
  %v1351 = vmul.f32 %v1315, 1.442695
  %v1352 = vpow.pop %v1351
  %v1353 = vmul.f32 %v1316, 1.442695
  %v1354 = vpow.pop %v1353
  %v1355 = vmul.f32 %v1317, 1.442695
  %v1356 = vpow.pop %v1355
  %v1357 = vmul.f32 %v1318, 1.442695
  %v1358 = vpow.pop %v1357
  %v1359 = vmul.f32 %v1319, 1.442695
  %v1360 = vpow.pop %v1359
  %v1361 = vmul.f32 %v1320, 1.442695
  %v1362 = vpow.pop %v1361
  %v1363 = vmul.f32 %v1321, 1.442695
  %v1364 = vpow.pop %v1363
  %v1365 = vmul.f32 %v1322, 1.442695
  %v1366 = vpow.pop %v1365
  %v1367 = vmul.f32 %v1323, 1.442695
  %v1368 = vpow.pop %v1367
  %v1369 = vmul.f32 %v1324, 1.442695
  %v1370 = vpow.pop %v1369
  %v1371 = vmul.f32 %v1325, 1.442695
  %v1372 = vpow.pop %v1371
  %v1373 = vmul.f32 %v1326, 1.442695
  %v1374 = vpow.pop %v1373
  %v1375 = vmul.f32 %v1327, 1.442695
  %v1376 = vpow.pop %v1375
  %v1377 = vmul.f32 %v1328, 1.442695
  %v1378 = vpow.pop %v1377
  %v1379 = vmul.f32 %v1329, 1.442695
  %v1380 = vpow.pop %v1379
  %v1381 = vmul.f32 %v1330, 1.442695
  %v1382 = vpow.pop %v1381
  %v1383 = vmul.f32 %v1331, 1.442695
  %v1384 = vpow.pop %v1383
  %v1385 = vmul.f32 %v1332, 1.442695
  %v1386 = vpow.pop %v1385
  %v1387 = vmul.f32 %v1333, 1.442695
  %v1388 = vpow.pop %v1387
  %v1389 = vmul.f32 %v1334, 1.442695
  %v1390 = vpow.pop %v1389
  %v1391 = vmul.f32 %v1335, 1.442695
  %v1392 = vpow.pop %v1391
  %v1393 = vmul.f32 %v1336, 1.442695
  %v1394 = vpow.pop %v1393
  %v1395 = vmul.f32 %v1337, 1.442695
  %v1396 = vpow.pop %v1395
  %v1397 = vmul.f32 %v1338, 1.442695
  %v1398 = vpow.pop %v1397
  %v1399 = vmul.f32 %v1339, 1.442695
  %v1400 = vpow.pop %v1399
  %v1401 = vmul.f32 %v1340, 1.442695
  %v1402 = vpow.pop %v1401
  %v1403 = vmul.f32 %v1341, 1.442695
  %v1404 = vpow.pop %v1403
  %v1405 = vmul.f32 %v1342, 1.442695
  %v1406 = vpow.pop %v1405
  %v1407 = vsel %vm1214, %v1344, 0.0
  %1408 = vadd.xlane.f32.xlu0 %v1407
  %v1409 = vpop.xlane.xlu0 %1408
  %v1410 = vsel %vm1214, %v1346, 0.0
  %1411 = vadd.xlane.f32.xlu0 %v1410
  %v1412 = vpop.xlane.xlu0 %1411
  %v1413 = vsel %vm1214, %v1348, 0.0
  %1414 = vadd.xlane.f32.xlu0 %v1413
  %v1415 = vpop.xlane.xlu0 %1414
  %v1416 = vsel %vm1214, %v1350, 0.0
  %1417 = vadd.xlane.f32.xlu0 %v1416
  %v1418 = vpop.xlane.xlu0 %1417
  %v1419 = vsel %vm1214, %v1352, 0.0
  %1420 = vadd.xlane.f32.xlu0 %v1419
  %v1421 = vpop.xlane.xlu0 %1420
  %v1422 = vsel %vm1214, %v1354, 0.0
  %1423 = vadd.xlane.f32.xlu0 %v1422
  %v1424 = vpop.xlane.xlu0 %1423
  %v1425 = vsel %vm1214, %v1356, 0.0
  %1426 = vadd.xlane.f32.xlu0 %v1425
  %v1427 = vpop.xlane.xlu0 %1426
  %v1428 = vsel %vm1214, %v1358, 0.0
  %1429 = vadd.xlane.f32.xlu0 %v1428
  %v1430 = vpop.xlane.xlu0 %1429
  %v1431 = vsel %vm1214, %v1360, 0.0
  %1432 = vadd.xlane.f32.xlu0 %v1431
  %v1433 = vpop.xlane.xlu0 %1432
  %v1434 = vsel %vm1214, %v1362, 0.0
  %1435 = vadd.xlane.f32.xlu0 %v1434
  %v1436 = vpop.xlane.xlu0 %1435
  %v1437 = vsel %vm1214, %v1364, 0.0
  %1438 = vadd.xlane.f32.xlu0 %v1437
  %v1439 = vpop.xlane.xlu0 %1438
  %v1440 = vsel %vm1214, %v1366, 0.0
  %1441 = vadd.xlane.f32.xlu0 %v1440
  %v1442 = vpop.xlane.xlu0 %1441
  %v1443 = vsel %vm1214, %v1368, 0.0
  %1444 = vadd.xlane.f32.xlu0 %v1443
  %v1445 = vpop.xlane.xlu0 %1444
  %v1446 = vsel %vm1214, %v1370, 0.0
  %1447 = vadd.xlane.f32.xlu0 %v1446
  %v1448 = vpop.xlane.xlu0 %1447
  %v1449 = vsel %vm1214, %v1372, 0.0
  %1450 = vadd.xlane.f32.xlu0 %v1449
  %v1451 = vpop.xlane.xlu0 %1450
  %v1452 = vsel %vm1214, %v1374, 0.0
  %1453 = vadd.xlane.f32.xlu0 %v1452
  %v1454 = vpop.xlane.xlu0 %1453
  %v1455 = vsel %vm1214, %v1376, 0.0
  %1456 = vadd.xlane.f32.xlu0 %v1455
  %v1457 = vpop.xlane.xlu0 %1456
  %v1458 = vsel %vm1214, %v1378, 0.0
  %1459 = vadd.xlane.f32.xlu0 %v1458
  %v1460 = vpop.xlane.xlu0 %1459
  %v1461 = vsel %vm1214, %v1380, 0.0
  %1462 = vadd.xlane.f32.xlu0 %v1461
  %v1463 = vpop.xlane.xlu0 %1462
  %v1464 = vsel %vm1214, %v1382, 0.0
  %1465 = vadd.xlane.f32.xlu0 %v1464
  %v1466 = vpop.xlane.xlu0 %1465
  %v1467 = vsel %vm1214, %v1384, 0.0
  %1468 = vadd.xlane.f32.xlu0 %v1467
  %v1469 = vpop.xlane.xlu0 %1468
  %v1470 = vsel %vm1214, %v1386, 0.0
  %1471 = vadd.xlane.f32.xlu0 %v1470
  %v1472 = vpop.xlane.xlu0 %1471
  %v1473 = vsel %vm1214, %v1388, 0.0
  %1474 = vadd.xlane.f32.xlu0 %v1473
  %v1475 = vpop.xlane.xlu0 %1474
  %v1476 = vsel %vm1214, %v1390, 0.0
  %1477 = vadd.xlane.f32.xlu0 %v1476
  %v1478 = vpop.xlane.xlu0 %1477
  %v1479 = vsel %vm1214, %v1392, 0.0
  %1480 = vadd.xlane.f32.xlu0 %v1479
  %v1481 = vpop.xlane.xlu0 %1480
  %v1482 = vsel %vm1214, %v1394, 0.0
  %1483 = vadd.xlane.f32.xlu0 %v1482
  %v1484 = vpop.xlane.xlu0 %1483
  %v1485 = vsel %vm1214, %v1396, 0.0
  %1486 = vadd.xlane.f32.xlu0 %v1485
  %v1487 = vpop.xlane.xlu0 %1486
  %v1488 = vsel %vm1214, %v1398, 0.0
  %1489 = vadd.xlane.f32.xlu0 %v1488
  %v1490 = vpop.xlane.xlu0 %1489
  %v1491 = vsel %vm1214, %v1400, 0.0
  %1492 = vadd.xlane.f32.xlu0 %v1491
  %v1493 = vpop.xlane.xlu0 %1492
  %v1494 = vsel %vm1214, %v1402, 0.0
  %1495 = vadd.xlane.f32.xlu0 %v1494
  %v1496 = vpop.xlane.xlu0 %1495
  %v1497 = vsel %vm1214, %v1404, 0.0
  %1498 = vadd.xlane.f32.xlu0 %v1497
  %v1499 = vpop.xlane.xlu0 %1498
  %v1500 = vsel %vm1214, %v1406, 0.0
  %1501 = vadd.xlane.f32.xlu0 %v1500
  %v1502 = vpop.xlane.xlu0 %1501
  %v1503 = vrcp.pop %v1409
  %v1504 = vrcp.pop %v1412
  %v1505 = vrcp.pop %v1415
  %v1506 = vrcp.pop %v1418
  %v1507 = vrcp.pop %v1421
  %v1508 = vrcp.pop %v1424
  %v1509 = vrcp.pop %v1427
  %v1510 = vrcp.pop %v1430
  %v1511 = vrcp.pop %v1433
  %v1512 = vrcp.pop %v1436
  %v1513 = vrcp.pop %v1439
  %v1514 = vrcp.pop %v1442
  %v1515 = vrcp.pop %v1445
  %v1516 = vrcp.pop %v1448
  %v1517 = vrcp.pop %v1451
  %v1518 = vrcp.pop %v1454
  %v1519 = vrcp.pop %v1457
  %v1520 = vrcp.pop %v1460
  %v1521 = vrcp.pop %v1463
  %v1522 = vrcp.pop %v1466
  %v1523 = vrcp.pop %v1469
  %v1524 = vrcp.pop %v1472
  %v1525 = vrcp.pop %v1475
  %v1526 = vrcp.pop %v1478
  %v1527 = vrcp.pop %v1481
  %v1528 = vrcp.pop %v1484
  %v1529 = vrcp.pop %v1487
  %v1530 = vrcp.pop %v1490
  %v1531 = vrcp.pop %v1493
  %v1532 = vrcp.pop %v1496
  %v1533 = vrcp.pop %v1499
  %v1534 = vrcp.pop %v1502
  %v1535 = vmul.f32 %v1344, %v1503
  %v1536 = vmul.f32 %v1346, %v1504
  %v1537 = vmul.f32 %v1348, %v1505
  %v1538 = vmul.f32 %v1350, %v1506
  %v1539 = vmul.f32 %v1352, %v1507
  %v1540 = vmul.f32 %v1354, %v1508
  %v1541 = vmul.f32 %v1356, %v1509
  %v1542 = vmul.f32 %v1358, %v1510
  %v1543 = vmul.f32 %v1360, %v1511
  %v1544 = vmul.f32 %v1362, %v1512
  %v1545 = vmul.f32 %v1364, %v1513
  %v1546 = vmul.f32 %v1366, %v1514
  %v1547 = vmul.f32 %v1368, %v1515
  %v1548 = vmul.f32 %v1370, %v1516
  %v1549 = vmul.f32 %v1372, %v1517
  %v1550 = vmul.f32 %v1374, %v1518
  %v1551 = vmul.f32 %v1376, %v1519
  %v1552 = vmul.f32 %v1378, %v1520
  %v1553 = vmul.f32 %v1380, %v1521
  %v1554 = vmul.f32 %v1382, %v1522
  %v1555 = vmul.f32 %v1384, %v1523
  %v1556 = vmul.f32 %v1386, %v1524
  %v1557 = vmul.f32 %v1388, %v1525
  %v1558 = vmul.f32 %v1390, %v1526
  %v1559 = vmul.f32 %v1392, %v1527
  %v1560 = vmul.f32 %v1394, %v1528
  %v1561 = vmul.f32 %v1396, %v1529
  %v1562 = vmul.f32 %v1398, %v1530
  %v1563 = vmul.f32 %v1400, %v1531
  %v1564 = vmul.f32 %v1402, %v1532
  %v1565 = vmul.f32 %v1404, %v1533
  %v1566 = vmul.f32 %v1406, %v1534
  %v1567 = vpack.c.bf16 %v1536, %v1535
  %v1568 = vpack.c.bf16 %v1538, %v1537
  %v1569 = vpack.c.bf16 %v1540, %v1539
  %v1570 = vpack.c.bf16 %v1542, %v1541
  %v1571 = vpack.c.bf16 %v1544, %v1543
  %v1572 = vpack.c.bf16 %v1546, %v1545
  %v1573 = vpack.c.bf16 %v1548, %v1547
  %v1574 = vpack.c.bf16 %v1550, %v1549
  %v1575 = vpack.c.bf16 %v1552, %v1551
  %v1576 = vpack.c.bf16 %v1554, %v1553
  %v1577 = vpack.c.bf16 %v1556, %v1555
  %v1578 = vpack.c.bf16 %v1558, %v1557
  %v1579 = vpack.c.bf16 %v1560, %v1559
  %v1580 = vpack.c.bf16 %v1562, %v1561
  %v1581 = vpack.c.bf16 %v1564, %v1563
  %v1582 = vpack.c.bf16 %v1566, %v1565
  %1587 = vrot.lane.b32.xlu0 %v937, 96
  %v1588 = vpop.permute.xlu0 %1587
  %1589 = vrot.lane.b32.xlu0 %v938, 96
  %v1590 = vpop.permute.xlu0 %1589
  %1591 = vrot.lane.b32.xlu0 %v939, 96
  %v1592 = vpop.permute.xlu0 %1591
  %1593 = vrot.lane.b32.xlu0 %v940, 96
  %v1594 = vpop.permute.xlu0 %1593
  %v1600 = vsel %vm1214, %v1567, 0
  %v1603 = vsel %vm1214, %v1568, 0
  %v1606 = vsel %vm1214, %v1569, 0
  %v1609 = vsel %vm1214, %v1570, 0
  %v1612 = vsel %vm1214, %v1571, 0
  %v1615 = vsel %vm1214, %v1572, 0
  %v1618 = vsel %vm1214, %v1573, 0
  %v1621 = vsel %vm1214, %v1574, 0
  %v1624 = vsel %vm1214, %v1575, 0
  %v1627 = vsel %vm1214, %v1576, 0
  %v1630 = vsel %vm1214, %v1577, 0
  %v1633 = vsel %vm1214, %v1578, 0
  %v1636 = vsel %vm1214, %v1579, 0
  %v1639 = vsel %vm1214, %v1580, 0
  %v1642 = vsel %vm1214, %v1581, 0
  %v1645 = vsel %vm1214, %v1582, 0
  %1647 = vmatprep.subr.bf16.mxu0 0
  %1648 = vmatpush1.bf16.msra.mxu0 0
  %1649 = vmatprep.subr.bf16.mxu0 0
  %1650 = vmatpush1.bf16.msra.mxu0 0
  %1651 = vmatprep.subr.bf16.mxu0 0
  %1652 = vmatpush1.bf16.msra.mxu0 0
  %1653 = vmatprep.subr.bf16.mxu0 0
  %1654 = vmatpush1.bf16.msra.mxu0 0
  %1655 = vmatprep.subr.bf16.mxu0 0
  %1656 = vmatpush1.bf16.msra.mxu0 %v1594
  %1657 = vmatprep.subr.bf16.mxu0 0
  %1658 = vmatpush1.bf16.msra.mxu0 %v1592
  %1659 = vmatprep.subr.bf16.mxu0 0
  %1660 = vmatpush1.bf16.msra.mxu0 %v1590
  %1661 = vmatprep.subr.bf16.mxu0 0
  %1662 = vmatpush1.bf16.msra.mxu0 %v1588
  %1663 = vmatprep.subr.bf16.mxu0 0
  %1664 = vmatpush2.bf16.msra.mxu0 0
  %1665 = vmatprep.subr.bf16.mxu0 0
  %1666 = vmatpush2.bf16.msra.mxu0 0
  %1667 = vmatprep.subr.bf16.mxu0 0
  %1668 = vmatpush2.bf16.msra.mxu0 0
  %1669 = vmatprep.subr.bf16.mxu0 0
  %1670 = vmatpush2.bf16.msra.mxu0 0
  %1671 = vmatprep.subr.bf16.mxu0 0
  %1672 = vmatpush2.bf16.msra.mxu0 0
  %1673 = vmatprep.subr.bf16.mxu0 0
  %1674 = vmatpush2.bf16.msra.mxu0 0
  %1675 = vmatprep.subr.bf16.mxu0 0
  %1676 = vmatpush2.bf16.msra.mxu0 0
  %1677 = vmatprep.subr.bf16.mxu0 0
  %1678 = vmatpush2.bf16.msra.mxu0 0
  %1679 = vmatprep.mubr.bf16.mxu0 0
  %1680 = vmatmul.mubr.bf16.gmra.mxu0 %v1600
  %v1681 = vpop.f32.mrf.mxu0
  %v1682 = vadd.f32 0.0, %v1681
  %v1683 = vpop.f32.mrf.mxu0
  %v1684 = vpop.f32.mrf.mxu0
  %v1685 = vadd.f32 0.0, %v1684
  %v1686 = vpop.f32.mrf.mxu0
  %1687 = vmatprep.mubr.bf16.mxu0 0
  %1688 = vmatmul.mubr.bf16.gmra.mxu0 %v1603
  %v1689 = vpop.f32.mrf.mxu0
  %v1690 = vadd.f32 0.0, %v1689
  %v1691 = vpop.f32.mrf.mxu0
  %v1692 = vpop.f32.mrf.mxu0
  %v1693 = vadd.f32 0.0, %v1692
  %v1694 = vpop.f32.mrf.mxu0
  %1695 = vmatprep.mubr.bf16.mxu0 0
  %1696 = vmatmul.mubr.bf16.gmra.mxu0 %v1606
  %v1697 = vpop.f32.mrf.mxu0
  %v1698 = vadd.f32 0.0, %v1697
  %v1699 = vpop.f32.mrf.mxu0
  %v1700 = vpop.f32.mrf.mxu0
  %v1701 = vadd.f32 0.0, %v1700
  %v1702 = vpop.f32.mrf.mxu0
  %1703 = vmatprep.mubr.bf16.mxu0 0
  %1704 = vmatmul.mubr.bf16.gmra.mxu0 %v1609
  %v1705 = vpop.f32.mrf.mxu0
  %v1706 = vadd.f32 0.0, %v1705
  %v1707 = vpop.f32.mrf.mxu0
  %v1708 = vpop.f32.mrf.mxu0
  %v1709 = vadd.f32 0.0, %v1708
  %v1710 = vpop.f32.mrf.mxu0
  %1711 = vmatprep.mubr.bf16.mxu0 0
  %1712 = vmatmul.mubr.bf16.gmra.mxu0 %v1612
  %v1713 = vpop.f32.mrf.mxu0
  %v1714 = vadd.f32 0.0, %v1713
  %v1715 = vpop.f32.mrf.mxu0
  %v1716 = vpop.f32.mrf.mxu0
  %v1717 = vadd.f32 0.0, %v1716
  %v1718 = vpop.f32.mrf.mxu0
  %1719 = vmatprep.mubr.bf16.mxu0 0
  %1720 = vmatmul.mubr.bf16.gmra.mxu0 %v1615
  %v1721 = vpop.f32.mrf.mxu0
  %v1722 = vadd.f32 0.0, %v1721
  %v1723 = vpop.f32.mrf.mxu0
  %v1724 = vpop.f32.mrf.mxu0
  %v1725 = vadd.f32 0.0, %v1724
  %v1726 = vpop.f32.mrf.mxu0
  %1727 = vmatprep.mubr.bf16.mxu0 0
  %1728 = vmatmul.mubr.bf16.gmra.mxu0 %v1618
  %v1729 = vpop.f32.mrf.mxu0
  %v1730 = vadd.f32 0.0, %v1729
  %v1731 = vpop.f32.mrf.mxu0
  %v1732 = vpop.f32.mrf.mxu0
  %v1733 = vadd.f32 0.0, %v1732
  %v1734 = vpop.f32.mrf.mxu0
  %1735 = vmatprep.mubr.bf16.mxu0 0
  %1736 = vmatmul.mubr.bf16.gmra.mxu0 %v1621
  %v1737 = vpop.f32.mrf.mxu0
  %v1738 = vadd.f32 0.0, %v1737
  %v1739 = vpop.f32.mrf.mxu0
  %v1740 = vpop.f32.mrf.mxu0
  %v1741 = vadd.f32 0.0, %v1740
  %v1742 = vpop.f32.mrf.mxu0
  %1743 = vmatprep.mubr.bf16.mxu0 0
  %1744 = vmatmul.mubr.bf16.gmra.mxu0 %v1624
  %v1745 = vpop.f32.mrf.mxu0
  %v1746 = vadd.f32 0.0, %v1745
  %v1747 = vpop.f32.mrf.mxu0
  %v1748 = vpop.f32.mrf.mxu0
  %v1749 = vadd.f32 0.0, %v1748
  %v1750 = vpop.f32.mrf.mxu0
  %1751 = vmatprep.mubr.bf16.mxu0 0
  %1752 = vmatmul.mubr.bf16.gmra.mxu0 %v1627
  %v1753 = vpop.f32.mrf.mxu0
  %v1754 = vadd.f32 0.0, %v1753
  %v1755 = vpop.f32.mrf.mxu0
  %v1756 = vpop.f32.mrf.mxu0
  %v1757 = vadd.f32 0.0, %v1756
  %v1758 = vpop.f32.mrf.mxu0
  %1759 = vmatprep.mubr.bf16.mxu0 0
  %1760 = vmatmul.mubr.bf16.gmra.mxu0 %v1630
  %v1761 = vpop.f32.mrf.mxu0
  %v1762 = vadd.f32 0.0, %v1761
  %v1763 = vpop.f32.mrf.mxu0
  %v1764 = vpop.f32.mrf.mxu0
  %v1765 = vadd.f32 0.0, %v1764
  %v1766 = vpop.f32.mrf.mxu0
  %1767 = vmatprep.mubr.bf16.mxu0 0
  %1768 = vmatmul.mubr.bf16.gmra.mxu0 %v1633
  %v1769 = vpop.f32.mrf.mxu0
  %v1770 = vadd.f32 0.0, %v1769
  %v1771 = vpop.f32.mrf.mxu0
  %v1772 = vpop.f32.mrf.mxu0
  %v1773 = vadd.f32 0.0, %v1772
  %v1774 = vpop.f32.mrf.mxu0
  %1775 = vmatprep.mubr.bf16.mxu0 0
  %1776 = vmatmul.mubr.bf16.gmra.mxu0 %v1636
  %v1777 = vpop.f32.mrf.mxu0
  %v1778 = vadd.f32 0.0, %v1777
  %v1779 = vpop.f32.mrf.mxu0
  %v1780 = vpop.f32.mrf.mxu0
  %v1781 = vadd.f32 0.0, %v1780
  %v1782 = vpop.f32.mrf.mxu0
  %1783 = vmatprep.mubr.bf16.mxu0 0
  %1784 = vmatmul.mubr.bf16.gmra.mxu0 %v1639
  %v1785 = vpop.f32.mrf.mxu0
  %v1786 = vadd.f32 0.0, %v1785
  %v1787 = vpop.f32.mrf.mxu0
  %v1788 = vpop.f32.mrf.mxu0
  %v1789 = vadd.f32 0.0, %v1788
  %v1790 = vpop.f32.mrf.mxu0
  %1791 = vmatprep.mubr.bf16.mxu0 0
  %1792 = vmatmul.mubr.bf16.gmra.mxu0 %v1642
  %v1793 = vpop.f32.mrf.mxu0
  %v1794 = vadd.f32 0.0, %v1793
  %v1795 = vpop.f32.mrf.mxu0
  %v1796 = vpop.f32.mrf.mxu0
  %v1797 = vadd.f32 0.0, %v1796
  %v1798 = vpop.f32.mrf.mxu0
  %1799 = vmatprep.mubr.bf16.mxu0 0
  %1800 = vmatmul.mubr.bf16.gmra.mxu0 %v1645
  %v1801 = vpop.f32.mrf.mxu0
  %v1802 = vadd.f32 0.0, %v1801
  %v1803 = vpop.f32.mrf.mxu0
  %v1804 = vpop.f32.mrf.mxu0
  %v1805 = vadd.f32 0.0, %v1804
  %v1806 = vpop.f32.mrf.mxu0
  %1807 = vdwg.mxu0
  %v1808 = vmul.f32 %v1682, %v99
  %v1809 = vmul.f32 %v1685, %v100
  %v1810 = vmul.f32 %v1690, %v101
  %v1811 = vmul.f32 %v1693, %v102
  %v1812 = vmul.f32 %v1698, %v103
  %v1813 = vmul.f32 %v1701, %v104
  %v1814 = vmul.f32 %v1706, %v105
  %v1815 = vmul.f32 %v1709, %v106
  %v1816 = vmul.f32 %v1714, %v107
  %v1817 = vmul.f32 %v1717, %v108
  %v1818 = vmul.f32 %v1722, %v109
  %v1819 = vmul.f32 %v1725, %v110
  %v1820 = vmul.f32 %v1730, %v111
  %v1821 = vmul.f32 %v1733, %v112
  %v1822 = vmul.f32 %v1738, %v113
  %v1823 = vmul.f32 %v1741, %v114
  %v1824 = vadd.f32 %v1808, %v1816
  %v1825 = vadd.f32 %v1809, %v1817
  %v1826 = vadd.f32 %v1810, %v1818
  %v1827 = vadd.f32 %v1811, %v1819
  %v1828 = vadd.f32 %v1812, %v1820
  %v1829 = vadd.f32 %v1813, %v1821
  %v1830 = vadd.f32 %v1814, %v1822
  %v1831 = vadd.f32 %v1815, %v1823
  %v1832 = vmul.f32 %v1746, %v115
  %v1833 = vmul.f32 %v1749, %v116
  %v1834 = vmul.f32 %v1754, %v117
  %v1835 = vmul.f32 %v1757, %v118
  %v1836 = vmul.f32 %v1762, %v119
  %v1837 = vmul.f32 %v1765, %v120
  %v1838 = vmul.f32 %v1770, %v121
  %v1839 = vmul.f32 %v1773, %v122
  %v1840 = vadd.f32 %v1824, %v1832
  %v1841 = vadd.f32 %v1825, %v1833
  %v1842 = vadd.f32 %v1826, %v1834
  %v1843 = vadd.f32 %v1827, %v1835
  %v1844 = vadd.f32 %v1828, %v1836
  %v1845 = vadd.f32 %v1829, %v1837
  %v1846 = vadd.f32 %v1830, %v1838
  %v1847 = vadd.f32 %v1831, %v1839
  %v1848 = vmul.f32 %v1778, %v123
  %v1849 = vmul.f32 %v1781, %v124
  %v1850 = vmul.f32 %v1786, %v125
  %v1851 = vmul.f32 %v1789, %v126
  %v1852 = vmul.f32 %v1794, %v127
  %v1853 = vmul.f32 %v1797, %v128
  %v1854 = vmul.f32 %v1802, %v129
  %v1855 = vmul.f32 %v1805, %v130
  %v1856 = vadd.f32 %v1840, %v1848
  %v1857 = vadd.f32 %v1841, %v1849
  %v1858 = vadd.f32 %v1842, %v1850
  %v1859 = vadd.f32 %v1843, %v1851
  %v1860 = vadd.f32 %v1844, %v1852
  %v1861 = vadd.f32 %v1845, %v1853
  %v1862 = vadd.f32 %v1846, %v1854
  %v1863 = vadd.f32 %v1847, %v1855
  %v1864 = vmul.f32 %v798, %v99
  %v1865 = vmul.f32 %v799, %v100
  %v1866 = vmul.f32 %v800, %v101
  %v1867 = vmul.f32 %v801, %v102
  %v1868 = vmul.f32 %v802, %v103
  %v1869 = vmul.f32 %v803, %v104
  %v1870 = vmul.f32 %v804, %v105
  %v1871 = vmul.f32 %v805, %v106
  %v1872 = vmul.f32 %v798, %v107
  %v1873 = vmul.f32 %v799, %v108
  %v1874 = vmul.f32 %v800, %v109
  %v1875 = vmul.f32 %v801, %v110
  %v1876 = vmul.f32 %v802, %v111
  %v1877 = vmul.f32 %v803, %v112
  %v1878 = vmul.f32 %v804, %v113
  %v1879 = vmul.f32 %v805, %v114
  %v1880 = vmul.f32 %v798, %v115
  %v1881 = vmul.f32 %v799, %v116
  %v1882 = vmul.f32 %v800, %v117
  %v1883 = vmul.f32 %v801, %v118
  %v1884 = vmul.f32 %v802, %v119
  %v1885 = vmul.f32 %v803, %v120
  %v1886 = vmul.f32 %v804, %v121
  %v1887 = vmul.f32 %v805, %v122
  %v1888 = vmul.f32 %v798, %v123
  %v1889 = vmul.f32 %v799, %v124
  %v1890 = vmul.f32 %v800, %v125
  %v1891 = vmul.f32 %v801, %v126
  %v1892 = vmul.f32 %v802, %v127
  %v1893 = vmul.f32 %v803, %v128
  %v1894 = vmul.f32 %v804, %v129
  %v1895 = vmul.f32 %v805, %v130
  %v1896 = vpack.c.bf16 %v1865, %v1864
  %v1897 = vpack.c.bf16 %v1867, %v1866
  %v1898 = vpack.c.bf16 %v1869, %v1868
  %v1899 = vpack.c.bf16 %v1871, %v1870
  %v1900 = vpack.c.bf16 %v1873, %v1872
  %v1901 = vpack.c.bf16 %v1875, %v1874
  %v1902 = vpack.c.bf16 %v1877, %v1876
  %v1903 = vpack.c.bf16 %v1879, %v1878
  %v1904 = vpack.c.bf16 %v1881, %v1880
  %v1905 = vpack.c.bf16 %v1883, %v1882
  %v1906 = vpack.c.bf16 %v1885, %v1884
  %v1907 = vpack.c.bf16 %v1887, %v1886
  %v1908 = vpack.c.bf16 %v1889, %v1888
  %v1909 = vpack.c.bf16 %v1891, %v1890
  %v1910 = vpack.c.bf16 %v1893, %v1892
  %v1911 = vpack.c.bf16 %v1895, %v1894
  %v1913 = vsel %vm139, %v1896, 0
  %v1916 = vsel %vm139, %v1897, 0
  %v1919 = vsel %vm139, %v1898, 0
  %v1922 = vsel %vm139, %v1899, 0
  %v1925 = vsel %vm139, %v1900, 0
  %v1928 = vsel %vm139, %v1901, 0
  %v1931 = vsel %vm139, %v1902, 0
  %v1934 = vsel %vm139, %v1903, 0
  %v1937 = vsel %vm139, %v1904, 0
  %v1940 = vsel %vm139, %v1905, 0
  %v1943 = vsel %vm139, %v1906, 0
  %v1946 = vsel %vm139, %v1907, 0
  %v1949 = vsel %vm139, %v1908, 0
  %v1952 = vsel %vm139, %v1909, 0
  %v1955 = vsel %vm139, %v1910, 0
  %v1958 = vsel %vm139, %v1911, 0
  %v1961 = vsel %vm139, %v941, 0
  %v1964 = vsel %vm139, %v942, 0
  %v1967 = vsel %vm139, %v943, 0
  %v1970 = vsel %vm139, %v944, 0
  %1972 = vmatprep.subr.bf16.mxu0 0
  %1973 = vmatpush1.bf16.xpose.msra.mxu0 0
  %1974 = vmatprep.subr.bf16.mxu0 0
  %1975 = vmatpush1.bf16.xpose.msra.mxu0 0
  %1976 = vmatprep.subr.bf16.mxu0 0
  %1977 = vmatpush1.bf16.xpose.msra.mxu0 0
  %1978 = vmatprep.subr.bf16.mxu0 0
  %1979 = vmatpush1.bf16.xpose.msra.mxu0 0
  %1980 = vmatprep.subr.bf16.mxu0 0
  %1981 = vmatpush1.bf16.xpose.msra.mxu0 %v1970
  %1982 = vmatprep.subr.bf16.mxu0 0
  %1983 = vmatpush1.bf16.xpose.msra.mxu0 %v1967
  %1984 = vmatprep.subr.bf16.mxu0 0
  %1985 = vmatpush1.bf16.xpose.msra.mxu0 %v1964
  %1986 = vmatprep.subr.bf16.mxu0 0
  %1987 = vmatpush1.bf16.xpose.msra.mxu0 %v1961
  %1988 = vmatprep.subr.bf16.mxu0 0
  %1989 = vmatpush2.bf16.xpose.msra.mxu0 0
  %1990 = vmatprep.subr.bf16.mxu0 0
  %1991 = vmatpush2.bf16.xpose.msra.mxu0 0
  %1992 = vmatprep.subr.bf16.mxu0 0
  %1993 = vmatpush2.bf16.xpose.msra.mxu0 0
  %1994 = vmatprep.subr.bf16.mxu0 0
  %1995 = vmatpush2.bf16.xpose.msra.mxu0 0
  %1996 = vmatprep.subr.bf16.mxu0 0
  %1997 = vmatpush2.bf16.xpose.msra.mxu0 0
  %1998 = vmatprep.subr.bf16.mxu0 0
  %1999 = vmatpush2.bf16.xpose.msra.mxu0 0
  %2000 = vmatprep.subr.bf16.mxu0 0
  %2001 = vmatpush2.bf16.xpose.msra.mxu0 0
  %2002 = vmatprep.subr.bf16.mxu0 0
  %2003 = vmatpush2.bf16.xpose.msra.mxu0 0
  %2004 = vmatprep.mubr.bf16.mxu0 0
  %2005 = vmatmul.mubr.bf16.gmra.mxu0 %v1913
  %v2006 = vpop.f32.mrf.mxu0
  %v2007 = vadd.f32 %v67, %v2006
  %v2008 = vpop.f32.mrf.mxu0
  %v2009 = vpop.f32.mrf.mxu0
  %v2010 = vadd.f32 %v68, %v2009
  %v2011 = vpop.f32.mrf.mxu0
  %2012 = vmatprep.mubr.bf16.mxu0 0
  %2013 = vmatmul.mubr.bf16.gmra.mxu0 %v1916
  %v2014 = vpop.f32.mrf.mxu0
  %v2015 = vadd.f32 %v69, %v2014
  %v2016 = vpop.f32.mrf.mxu0
  %v2017 = vpop.f32.mrf.mxu0
  %v2018 = vadd.f32 %v70, %v2017
  %v2019 = vpop.f32.mrf.mxu0
  %2020 = vmatprep.mubr.bf16.mxu0 0
  %2021 = vmatmul.mubr.bf16.gmra.mxu0 %v1919
  %v2022 = vpop.f32.mrf.mxu0
  %v2023 = vadd.f32 %v71, %v2022
  %v2024 = vpop.f32.mrf.mxu0
  %v2025 = vpop.f32.mrf.mxu0
  %v2026 = vadd.f32 %v72, %v2025
  %v2027 = vpop.f32.mrf.mxu0
  %2028 = vmatprep.mubr.bf16.mxu0 0
  %2029 = vmatmul.mubr.bf16.gmra.mxu0 %v1922
  %v2030 = vpop.f32.mrf.mxu0
  %v2031 = vadd.f32 %v73, %v2030
  %v2032 = vpop.f32.mrf.mxu0
  %v2033 = vpop.f32.mrf.mxu0
  %v2034 = vadd.f32 %v74, %v2033
  %v2035 = vpop.f32.mrf.mxu0
  %2036 = vmatprep.mubr.bf16.mxu0 0
  %2037 = vmatmul.mubr.bf16.gmra.mxu0 %v1925
  %v2038 = vpop.f32.mrf.mxu0
  %v2039 = vadd.f32 %v75, %v2038
  %v2040 = vpop.f32.mrf.mxu0
  %v2041 = vpop.f32.mrf.mxu0
  %v2042 = vadd.f32 %v76, %v2041
  %v2043 = vpop.f32.mrf.mxu0
  %2044 = vmatprep.mubr.bf16.mxu0 0
  %2045 = vmatmul.mubr.bf16.gmra.mxu0 %v1928
  %v2046 = vpop.f32.mrf.mxu0
  %v2047 = vadd.f32 %v77, %v2046
  %v2048 = vpop.f32.mrf.mxu0
  %v2049 = vpop.f32.mrf.mxu0
  %v2050 = vadd.f32 %v78, %v2049
  %v2051 = vpop.f32.mrf.mxu0
  %2052 = vmatprep.mubr.bf16.mxu0 0
  %2053 = vmatmul.mubr.bf16.gmra.mxu0 %v1931
  %v2054 = vpop.f32.mrf.mxu0
  %v2055 = vadd.f32 %v79, %v2054
  %v2056 = vpop.f32.mrf.mxu0
  %v2057 = vpop.f32.mrf.mxu0
  %v2058 = vadd.f32 %v80, %v2057
  %v2059 = vpop.f32.mrf.mxu0
  %2060 = vmatprep.mubr.bf16.mxu0 0
  %2061 = vmatmul.mubr.bf16.gmra.mxu0 %v1934
  %v2062 = vpop.f32.mrf.mxu0
  %v2063 = vadd.f32 %v81, %v2062
  %v2064 = vpop.f32.mrf.mxu0
  %v2065 = vpop.f32.mrf.mxu0
  %v2066 = vadd.f32 %v82, %v2065
  %v2067 = vpop.f32.mrf.mxu0
  %2068 = vmatprep.mubr.bf16.mxu0 0
  %2069 = vmatmul.mubr.bf16.gmra.mxu0 %v1937
  %v2070 = vpop.f32.mrf.mxu0
  %v2071 = vadd.f32 %v83, %v2070
  %v2072 = vpop.f32.mrf.mxu0
  %v2073 = vpop.f32.mrf.mxu0
  %v2074 = vadd.f32 %v84, %v2073
  %v2075 = vpop.f32.mrf.mxu0
  %2076 = vmatprep.mubr.bf16.mxu0 0
  %2077 = vmatmul.mubr.bf16.gmra.mxu0 %v1940
  %v2078 = vpop.f32.mrf.mxu0
  %v2079 = vadd.f32 %v85, %v2078
  %v2080 = vpop.f32.mrf.mxu0
  %v2081 = vpop.f32.mrf.mxu0
  %v2082 = vadd.f32 %v86, %v2081
  %v2083 = vpop.f32.mrf.mxu0
  %2084 = vmatprep.mubr.bf16.mxu0 0
  %2085 = vmatmul.mubr.bf16.gmra.mxu0 %v1943
  %v2086 = vpop.f32.mrf.mxu0
  %v2087 = vadd.f32 %v87, %v2086
  %v2088 = vpop.f32.mrf.mxu0
  %v2089 = vpop.f32.mrf.mxu0
  %v2090 = vadd.f32 %v88, %v2089
  %v2091 = vpop.f32.mrf.mxu0
  %2092 = vmatprep.mubr.bf16.mxu0 0
  %2093 = vmatmul.mubr.bf16.gmra.mxu0 %v1946
  %v2094 = vpop.f32.mrf.mxu0
  %v2095 = vadd.f32 %v89, %v2094
  %v2096 = vpop.f32.mrf.mxu0
  %v2097 = vpop.f32.mrf.mxu0
  %v2098 = vadd.f32 %v90, %v2097
  %v2099 = vpop.f32.mrf.mxu0
  %2100 = vmatprep.mubr.bf16.mxu0 0
  %2101 = vmatmul.mubr.bf16.gmra.mxu0 %v1949
  %v2102 = vpop.f32.mrf.mxu0
  %v2103 = vadd.f32 %v91, %v2102
  %v2104 = vpop.f32.mrf.mxu0
  %v2105 = vpop.f32.mrf.mxu0
  %v2106 = vadd.f32 %v92, %v2105
  %v2107 = vpop.f32.mrf.mxu0
  %2108 = vmatprep.mubr.bf16.mxu0 0
  %2109 = vmatmul.mubr.bf16.gmra.mxu0 %v1952
  %v2110 = vpop.f32.mrf.mxu0
  %v2111 = vadd.f32 %v93, %v2110
  %v2112 = vpop.f32.mrf.mxu0
  %v2113 = vpop.f32.mrf.mxu0
  %v2114 = vadd.f32 %v94, %v2113
  %v2115 = vpop.f32.mrf.mxu0
  %2116 = vmatprep.mubr.bf16.mxu0 0
  %2117 = vmatmul.mubr.bf16.gmra.mxu0 %v1955
  %v2118 = vpop.f32.mrf.mxu0
  %v2119 = vadd.f32 %v95, %v2118
  %v2120 = vpop.f32.mrf.mxu0
  %v2121 = vpop.f32.mrf.mxu0
  %v2122 = vadd.f32 %v96, %v2121
  %v2123 = vpop.f32.mrf.mxu0
  %2124 = vmatprep.mubr.bf16.mxu0 0
  %2125 = vmatmul.mubr.bf16.gmra.mxu0 %v1958
  %v2126 = vpop.f32.mrf.mxu0
  %v2127 = vadd.f32 %v97, %v2126
  %v2128 = vpop.f32.mrf.mxu0
  %v2129 = vpop.f32.mrf.mxu0
  %v2130 = vadd.f32 %v98, %v2129
  %v2131 = vpop.f32.mrf.mxu0
  %2132 = vdwg.mxu0
  %v2133 = vsel %vm1214, %v2007, -inf
  %2134 = vmax.xlane.f32.xlu0 %v2133
  %v2135 = vpop.xlane.xlu0 %2134
  %v2136 = vsel %vm1214, %v2010, -inf
  %2137 = vmax.xlane.f32.xlu0 %v2136
  %v2138 = vpop.xlane.xlu0 %2137
  %v2139 = vsel %vm1214, %v2015, -inf
  %2140 = vmax.xlane.f32.xlu0 %v2139
  %v2141 = vpop.xlane.xlu0 %2140
  %v2142 = vsel %vm1214, %v2018, -inf
  %2143 = vmax.xlane.f32.xlu0 %v2142
  %v2144 = vpop.xlane.xlu0 %2143
  %v2145 = vsel %vm1214, %v2023, -inf
  %2146 = vmax.xlane.f32.xlu0 %v2145
  %v2147 = vpop.xlane.xlu0 %2146
  %v2148 = vsel %vm1214, %v2026, -inf
  %2149 = vmax.xlane.f32.xlu0 %v2148
  %v2150 = vpop.xlane.xlu0 %2149
  %v2151 = vsel %vm1214, %v2031, -inf
  %2152 = vmax.xlane.f32.xlu0 %v2151
  %v2153 = vpop.xlane.xlu0 %2152
  %v2154 = vsel %vm1214, %v2034, -inf
  %2155 = vmax.xlane.f32.xlu0 %v2154
  %v2156 = vpop.xlane.xlu0 %2155
  %v2157 = vsel %vm1214, %v2039, -inf
  %2158 = vmax.xlane.f32.xlu0 %v2157
  %v2159 = vpop.xlane.xlu0 %2158
  %v2160 = vsel %vm1214, %v2042, -inf
  %2161 = vmax.xlane.f32.xlu0 %v2160
  %v2162 = vpop.xlane.xlu0 %2161
  %v2163 = vsel %vm1214, %v2047, -inf
  %2164 = vmax.xlane.f32.xlu0 %v2163
  %v2165 = vpop.xlane.xlu0 %2164
  %v2166 = vsel %vm1214, %v2050, -inf
  %2167 = vmax.xlane.f32.xlu0 %v2166
  %v2168 = vpop.xlane.xlu0 %2167
  %v2169 = vsel %vm1214, %v2055, -inf
  %2170 = vmax.xlane.f32.xlu0 %v2169
  %v2171 = vpop.xlane.xlu0 %2170
  %v2172 = vsel %vm1214, %v2058, -inf
  %2173 = vmax.xlane.f32.xlu0 %v2172
  %v2174 = vpop.xlane.xlu0 %2173
  %v2175 = vsel %vm1214, %v2063, -inf
  %2176 = vmax.xlane.f32.xlu0 %v2175
  %v2177 = vpop.xlane.xlu0 %2176
  %v2178 = vsel %vm1214, %v2066, -inf
  %2179 = vmax.xlane.f32.xlu0 %v2178
  %v2180 = vpop.xlane.xlu0 %2179
  %v2181 = vsel %vm1214, %v2071, -inf
  %2182 = vmax.xlane.f32.xlu0 %v2181
  %v2183 = vpop.xlane.xlu0 %2182
  %v2184 = vsel %vm1214, %v2074, -inf
  %2185 = vmax.xlane.f32.xlu0 %v2184
  %v2186 = vpop.xlane.xlu0 %2185
  %v2187 = vsel %vm1214, %v2079, -inf
  %2188 = vmax.xlane.f32.xlu0 %v2187
  %v2189 = vpop.xlane.xlu0 %2188
  %v2190 = vsel %vm1214, %v2082, -inf
  %2191 = vmax.xlane.f32.xlu0 %v2190
  %v2192 = vpop.xlane.xlu0 %2191
  %v2193 = vsel %vm1214, %v2087, -inf
  %2194 = vmax.xlane.f32.xlu0 %v2193
  %v2195 = vpop.xlane.xlu0 %2194
  %v2196 = vsel %vm1214, %v2090, -inf
  %2197 = vmax.xlane.f32.xlu0 %v2196
  %v2198 = vpop.xlane.xlu0 %2197
  %v2199 = vsel %vm1214, %v2095, -inf
  %2200 = vmax.xlane.f32.xlu0 %v2199
  %v2201 = vpop.xlane.xlu0 %2200
  %v2202 = vsel %vm1214, %v2098, -inf
  %2203 = vmax.xlane.f32.xlu0 %v2202
  %v2204 = vpop.xlane.xlu0 %2203
  %v2205 = vsel %vm1214, %v2103, -inf
  %2206 = vmax.xlane.f32.xlu0 %v2205
  %v2207 = vpop.xlane.xlu0 %2206
  %v2208 = vsel %vm1214, %v2106, -inf
  %2209 = vmax.xlane.f32.xlu0 %v2208
  %v2210 = vpop.xlane.xlu0 %2209
  %v2211 = vsel %vm1214, %v2111, -inf
  %2212 = vmax.xlane.f32.xlu0 %v2211
  %v2213 = vpop.xlane.xlu0 %2212
  %v2214 = vsel %vm1214, %v2114, -inf
  %2215 = vmax.xlane.f32.xlu0 %v2214
  %v2216 = vpop.xlane.xlu0 %2215
  %v2217 = vsel %vm1214, %v2119, -inf
  %2218 = vmax.xlane.f32.xlu0 %v2217
  %v2219 = vpop.xlane.xlu0 %2218
  %v2220 = vsel %vm1214, %v2122, -inf
  %2221 = vmax.xlane.f32.xlu0 %v2220
  %v2222 = vpop.xlane.xlu0 %2221
  %v2223 = vsel %vm1214, %v2127, -inf
  %2224 = vmax.xlane.f32.xlu0 %v2223
  %v2225 = vpop.xlane.xlu0 %2224
  %v2226 = vsel %vm1214, %v2130, -inf
  %2227 = vmax.xlane.f32.xlu0 %v2226
  %v2228 = vpop.xlane.xlu0 %2227
  %v2229 = vsub.f32 %v2007, %v2135
  %v2230 = vsub.f32 %v2010, %v2138
  %v2231 = vsub.f32 %v2015, %v2141
  %v2232 = vsub.f32 %v2018, %v2144
  %v2233 = vsub.f32 %v2023, %v2147
  %v2234 = vsub.f32 %v2026, %v2150
  %v2235 = vsub.f32 %v2031, %v2153
  %v2236 = vsub.f32 %v2034, %v2156
  %v2237 = vsub.f32 %v2039, %v2159
  %v2238 = vsub.f32 %v2042, %v2162
  %v2239 = vsub.f32 %v2047, %v2165
  %v2240 = vsub.f32 %v2050, %v2168
  %v2241 = vsub.f32 %v2055, %v2171
  %v2242 = vsub.f32 %v2058, %v2174
  %v2243 = vsub.f32 %v2063, %v2177
  %v2244 = vsub.f32 %v2066, %v2180
  %v2245 = vsub.f32 %v2071, %v2183
  %v2246 = vsub.f32 %v2074, %v2186
  %v2247 = vsub.f32 %v2079, %v2189
  %v2248 = vsub.f32 %v2082, %v2192
  %v2249 = vsub.f32 %v2087, %v2195
  %v2250 = vsub.f32 %v2090, %v2198
  %v2251 = vsub.f32 %v2095, %v2201
  %v2252 = vsub.f32 %v2098, %v2204
  %v2253 = vsub.f32 %v2103, %v2207
  %v2254 = vsub.f32 %v2106, %v2210
  %v2255 = vsub.f32 %v2111, %v2213
  %v2256 = vsub.f32 %v2114, %v2216
  %v2257 = vsub.f32 %v2119, %v2219
  %v2258 = vsub.f32 %v2122, %v2222
  %v2259 = vsub.f32 %v2127, %v2225
  %v2260 = vsub.f32 %v2130, %v2228
  %v2261 = vmul.f32 %v2229, 1.442695
  %v2262 = vpow.pop %v2261
  %v2263 = vmul.f32 %v2230, 1.442695
  %v2264 = vpow.pop %v2263
  %v2265 = vmul.f32 %v2231, 1.442695
  %v2266 = vpow.pop %v2265
  %v2267 = vmul.f32 %v2232, 1.442695
  %v2268 = vpow.pop %v2267
  %v2269 = vmul.f32 %v2233, 1.442695
  %v2270 = vpow.pop %v2269
  %v2271 = vmul.f32 %v2234, 1.442695
  %v2272 = vpow.pop %v2271
  %v2273 = vmul.f32 %v2235, 1.442695
  %v2274 = vpow.pop %v2273
  %v2275 = vmul.f32 %v2236, 1.442695
  %v2276 = vpow.pop %v2275
  %v2277 = vmul.f32 %v2237, 1.442695
  %v2278 = vpow.pop %v2277
  %v2279 = vmul.f32 %v2238, 1.442695
  %v2280 = vpow.pop %v2279
  %v2281 = vmul.f32 %v2239, 1.442695
  %v2282 = vpow.pop %v2281
  %v2283 = vmul.f32 %v2240, 1.442695
  %v2284 = vpow.pop %v2283
  %v2285 = vmul.f32 %v2241, 1.442695
  %v2286 = vpow.pop %v2285
  %v2287 = vmul.f32 %v2242, 1.442695
  %v2288 = vpow.pop %v2287
  %v2289 = vmul.f32 %v2243, 1.442695
  %v2290 = vpow.pop %v2289
  %v2291 = vmul.f32 %v2244, 1.442695
  %v2292 = vpow.pop %v2291
  %v2293 = vmul.f32 %v2245, 1.442695
  %v2294 = vpow.pop %v2293
  %v2295 = vmul.f32 %v2246, 1.442695
  %v2296 = vpow.pop %v2295
  %v2297 = vmul.f32 %v2247, 1.442695
  %v2298 = vpow.pop %v2297
  %v2299 = vmul.f32 %v2248, 1.442695
  %v2300 = vpow.pop %v2299
  %v2301 = vmul.f32 %v2249, 1.442695
  %v2302 = vpow.pop %v2301
  %v2303 = vmul.f32 %v2250, 1.442695
  %v2304 = vpow.pop %v2303
  %v2305 = vmul.f32 %v2251, 1.442695
  %v2306 = vpow.pop %v2305
  %v2307 = vmul.f32 %v2252, 1.442695
  %v2308 = vpow.pop %v2307
  %v2309 = vmul.f32 %v2253, 1.442695
  %v2310 = vpow.pop %v2309
  %v2311 = vmul.f32 %v2254, 1.442695
  %v2312 = vpow.pop %v2311
  %v2313 = vmul.f32 %v2255, 1.442695
  %v2314 = vpow.pop %v2313
  %v2315 = vmul.f32 %v2256, 1.442695
  %v2316 = vpow.pop %v2315
  %v2317 = vmul.f32 %v2257, 1.442695
  %v2318 = vpow.pop %v2317
  %v2319 = vmul.f32 %v2258, 1.442695
  %v2320 = vpow.pop %v2319
  %v2321 = vmul.f32 %v2259, 1.442695
  %v2322 = vpow.pop %v2321
  %v2323 = vmul.f32 %v2260, 1.442695
  %v2324 = vpow.pop %v2323
  %v2325 = vsel %vm1214, %v2262, 0.0
  %2326 = vadd.xlane.f32.xlu0 %v2325
  %v2327 = vpop.xlane.xlu0 %2326
  %v2328 = vsel %vm1214, %v2264, 0.0
  %2329 = vadd.xlane.f32.xlu0 %v2328
  %v2330 = vpop.xlane.xlu0 %2329
  %v2331 = vsel %vm1214, %v2266, 0.0
  %2332 = vadd.xlane.f32.xlu0 %v2331
  %v2333 = vpop.xlane.xlu0 %2332
  %v2334 = vsel %vm1214, %v2268, 0.0
  %2335 = vadd.xlane.f32.xlu0 %v2334
  %v2336 = vpop.xlane.xlu0 %2335
  %v2337 = vsel %vm1214, %v2270, 0.0
  %2338 = vadd.xlane.f32.xlu0 %v2337
  %v2339 = vpop.xlane.xlu0 %2338
  %v2340 = vsel %vm1214, %v2272, 0.0
  %2341 = vadd.xlane.f32.xlu0 %v2340
  %v2342 = vpop.xlane.xlu0 %2341
  %v2343 = vsel %vm1214, %v2274, 0.0
  %2344 = vadd.xlane.f32.xlu0 %v2343
  %v2345 = vpop.xlane.xlu0 %2344
  %v2346 = vsel %vm1214, %v2276, 0.0
  %2347 = vadd.xlane.f32.xlu0 %v2346
  %v2348 = vpop.xlane.xlu0 %2347
  %v2349 = vsel %vm1214, %v2278, 0.0
  %2350 = vadd.xlane.f32.xlu0 %v2349
  %v2351 = vpop.xlane.xlu0 %2350
  %v2352 = vsel %vm1214, %v2280, 0.0
  %2353 = vadd.xlane.f32.xlu0 %v2352
  %v2354 = vpop.xlane.xlu0 %2353
  %v2355 = vsel %vm1214, %v2282, 0.0
  %2356 = vadd.xlane.f32.xlu0 %v2355
  %v2357 = vpop.xlane.xlu0 %2356
  %v2358 = vsel %vm1214, %v2284, 0.0
  %2359 = vadd.xlane.f32.xlu0 %v2358
  %v2360 = vpop.xlane.xlu0 %2359
  %v2361 = vsel %vm1214, %v2286, 0.0
  %2362 = vadd.xlane.f32.xlu0 %v2361
  %v2363 = vpop.xlane.xlu0 %2362
  %v2364 = vsel %vm1214, %v2288, 0.0
  %2365 = vadd.xlane.f32.xlu0 %v2364
  %v2366 = vpop.xlane.xlu0 %2365
  %v2367 = vsel %vm1214, %v2290, 0.0
  %2368 = vadd.xlane.f32.xlu0 %v2367
  %v2369 = vpop.xlane.xlu0 %2368
  %v2370 = vsel %vm1214, %v2292, 0.0
  %2371 = vadd.xlane.f32.xlu0 %v2370
  %v2372 = vpop.xlane.xlu0 %2371
  %v2373 = vsel %vm1214, %v2294, 0.0
  %2374 = vadd.xlane.f32.xlu0 %v2373
  %v2375 = vpop.xlane.xlu0 %2374
  %v2376 = vsel %vm1214, %v2296, 0.0
  %2377 = vadd.xlane.f32.xlu0 %v2376
  %v2378 = vpop.xlane.xlu0 %2377
  %v2379 = vsel %vm1214, %v2298, 0.0
  %2380 = vadd.xlane.f32.xlu0 %v2379
  %v2381 = vpop.xlane.xlu0 %2380
  %v2382 = vsel %vm1214, %v2300, 0.0
  %2383 = vadd.xlane.f32.xlu0 %v2382
  %v2384 = vpop.xlane.xlu0 %2383
  %v2385 = vsel %vm1214, %v2302, 0.0
  %2386 = vadd.xlane.f32.xlu0 %v2385
  %v2387 = vpop.xlane.xlu0 %2386
  %v2388 = vsel %vm1214, %v2304, 0.0
  %2389 = vadd.xlane.f32.xlu0 %v2388
  %v2390 = vpop.xlane.xlu0 %2389
  %v2391 = vsel %vm1214, %v2306, 0.0
  %2392 = vadd.xlane.f32.xlu0 %v2391
  %v2393 = vpop.xlane.xlu0 %2392
  %v2394 = vsel %vm1214, %v2308, 0.0
  %2395 = vadd.xlane.f32.xlu0 %v2394
  %v2396 = vpop.xlane.xlu0 %2395
  %v2397 = vsel %vm1214, %v2310, 0.0
  %2398 = vadd.xlane.f32.xlu0 %v2397
  %v2399 = vpop.xlane.xlu0 %2398
  %v2400 = vsel %vm1214, %v2312, 0.0
  %2401 = vadd.xlane.f32.xlu0 %v2400
  %v2402 = vpop.xlane.xlu0 %2401
  %v2403 = vsel %vm1214, %v2314, 0.0
  %2404 = vadd.xlane.f32.xlu0 %v2403
  %v2405 = vpop.xlane.xlu0 %2404
  %v2406 = vsel %vm1214, %v2316, 0.0
  %2407 = vadd.xlane.f32.xlu0 %v2406
  %v2408 = vpop.xlane.xlu0 %2407
  %v2409 = vsel %vm1214, %v2318, 0.0
  %2410 = vadd.xlane.f32.xlu0 %v2409
  %v2411 = vpop.xlane.xlu0 %2410
  %v2412 = vsel %vm1214, %v2320, 0.0
  %2413 = vadd.xlane.f32.xlu0 %v2412
  %v2414 = vpop.xlane.xlu0 %2413
  %v2415 = vsel %vm1214, %v2322, 0.0
  %2416 = vadd.xlane.f32.xlu0 %v2415
  %v2417 = vpop.xlane.xlu0 %2416
  %v2418 = vsel %vm1214, %v2324, 0.0
  %2419 = vadd.xlane.f32.xlu0 %v2418
  %v2420 = vpop.xlane.xlu0 %2419
  %v2421 = vrcp.pop %v2327
  %v2422 = vrcp.pop %v2330
  %v2423 = vrcp.pop %v2333
  %v2424 = vrcp.pop %v2336
  %v2425 = vrcp.pop %v2339
  %v2426 = vrcp.pop %v2342
  %v2427 = vrcp.pop %v2345
  %v2428 = vrcp.pop %v2348
  %v2429 = vrcp.pop %v2351
  %v2430 = vrcp.pop %v2354
  %v2431 = vrcp.pop %v2357
  %v2432 = vrcp.pop %v2360
  %v2433 = vrcp.pop %v2363
  %v2434 = vrcp.pop %v2366
  %v2435 = vrcp.pop %v2369
  %v2436 = vrcp.pop %v2372
  %v2437 = vrcp.pop %v2375
  %v2438 = vrcp.pop %v2378
  %v2439 = vrcp.pop %v2381
  %v2440 = vrcp.pop %v2384
  %v2441 = vrcp.pop %v2387
  %v2442 = vrcp.pop %v2390
  %v2443 = vrcp.pop %v2393
  %v2444 = vrcp.pop %v2396
  %v2445 = vrcp.pop %v2399
  %v2446 = vrcp.pop %v2402
  %v2447 = vrcp.pop %v2405
  %v2448 = vrcp.pop %v2408
  %v2449 = vrcp.pop %v2411
  %v2450 = vrcp.pop %v2414
  %v2451 = vrcp.pop %v2417
  %v2452 = vrcp.pop %v2420
  %v2453 = vmul.f32 %v2262, %v2421
  %v2454 = vmul.f32 %v2264, %v2422
  %v2455 = vmul.f32 %v2266, %v2423
  %v2456 = vmul.f32 %v2268, %v2424
  %v2457 = vmul.f32 %v2270, %v2425
  %v2458 = vmul.f32 %v2272, %v2426
  %v2459 = vmul.f32 %v2274, %v2427
  %v2460 = vmul.f32 %v2276, %v2428
  %v2461 = vmul.f32 %v2278, %v2429
  %v2462 = vmul.f32 %v2280, %v2430
  %v2463 = vmul.f32 %v2282, %v2431
  %v2464 = vmul.f32 %v2284, %v2432
  %v2465 = vmul.f32 %v2286, %v2433
  %v2466 = vmul.f32 %v2288, %v2434
  %v2467 = vmul.f32 %v2290, %v2435
  %v2468 = vmul.f32 %v2292, %v2436
  %v2469 = vmul.f32 %v2294, %v2437
  %v2470 = vmul.f32 %v2296, %v2438
  %v2471 = vmul.f32 %v2298, %v2439
  %v2472 = vmul.f32 %v2300, %v2440
  %v2473 = vmul.f32 %v2302, %v2441
  %v2474 = vmul.f32 %v2304, %v2442
  %v2475 = vmul.f32 %v2306, %v2443
  %v2476 = vmul.f32 %v2308, %v2444
  %v2477 = vmul.f32 %v2310, %v2445
  %v2478 = vmul.f32 %v2312, %v2446
  %v2479 = vmul.f32 %v2314, %v2447
  %v2480 = vmul.f32 %v2316, %v2448
  %v2481 = vmul.f32 %v2318, %v2449
  %v2482 = vmul.f32 %v2320, %v2450
  %v2483 = vmul.f32 %v2322, %v2451
  %v2484 = vmul.f32 %v2324, %v2452
  %v2485 = vpack.c.bf16 %v2454, %v2453
  %v2486 = vpack.c.bf16 %v2456, %v2455
  %v2487 = vpack.c.bf16 %v2458, %v2457
  %v2488 = vpack.c.bf16 %v2460, %v2459
  %v2489 = vpack.c.bf16 %v2462, %v2461
  %v2490 = vpack.c.bf16 %v2464, %v2463
  %v2491 = vpack.c.bf16 %v2466, %v2465
  %v2492 = vpack.c.bf16 %v2468, %v2467
  %v2493 = vpack.c.bf16 %v2470, %v2469
  %v2494 = vpack.c.bf16 %v2472, %v2471
  %v2495 = vpack.c.bf16 %v2474, %v2473
  %v2496 = vpack.c.bf16 %v2476, %v2475
  %v2497 = vpack.c.bf16 %v2478, %v2477
  %v2498 = vpack.c.bf16 %v2480, %v2479
  %v2499 = vpack.c.bf16 %v2482, %v2481
  %v2500 = vpack.c.bf16 %v2484, %v2483
  %2505 = vrot.lane.b32.xlu0 %v941, 96
  %v2506 = vpop.permute.xlu0 %2505
  %2507 = vrot.lane.b32.xlu0 %v942, 96
  %v2508 = vpop.permute.xlu0 %2507
  %2509 = vrot.lane.b32.xlu0 %v943, 96
  %v2510 = vpop.permute.xlu0 %2509
  %2511 = vrot.lane.b32.xlu0 %v944, 96
  %v2512 = vpop.permute.xlu0 %2511
  %v2518 = vsel %vm1214, %v2485, 0
  %v2521 = vsel %vm1214, %v2486, 0
  %v2524 = vsel %vm1214, %v2487, 0
  %v2527 = vsel %vm1214, %v2488, 0
  %v2530 = vsel %vm1214, %v2489, 0
  %v2533 = vsel %vm1214, %v2490, 0
  %v2536 = vsel %vm1214, %v2491, 0
  %v2539 = vsel %vm1214, %v2492, 0
  %v2542 = vsel %vm1214, %v2493, 0
  %v2545 = vsel %vm1214, %v2494, 0
  %v2548 = vsel %vm1214, %v2495, 0
  %v2551 = vsel %vm1214, %v2496, 0
  %v2554 = vsel %vm1214, %v2497, 0
  %v2557 = vsel %vm1214, %v2498, 0
  %v2560 = vsel %vm1214, %v2499, 0
  %v2563 = vsel %vm1214, %v2500, 0
  %2565 = vmatprep.subr.bf16.mxu0 0
  %2566 = vmatpush1.bf16.msra.mxu0 0
  %2567 = vmatprep.subr.bf16.mxu0 0
  %2568 = vmatpush1.bf16.msra.mxu0 0
  %2569 = vmatprep.subr.bf16.mxu0 0
  %2570 = vmatpush1.bf16.msra.mxu0 0
  %2571 = vmatprep.subr.bf16.mxu0 0
  %2572 = vmatpush1.bf16.msra.mxu0 0
  %2573 = vmatprep.subr.bf16.mxu0 0
  %2574 = vmatpush1.bf16.msra.mxu0 %v2512
  %2575 = vmatprep.subr.bf16.mxu0 0
  %2576 = vmatpush1.bf16.msra.mxu0 %v2510
  %2577 = vmatprep.subr.bf16.mxu0 0
  %2578 = vmatpush1.bf16.msra.mxu0 %v2508
  %2579 = vmatprep.subr.bf16.mxu0 0
  %2580 = vmatpush1.bf16.msra.mxu0 %v2506
  %2581 = vmatprep.subr.bf16.mxu0 0
  %2582 = vmatpush2.bf16.msra.mxu0 0
  %2583 = vmatprep.subr.bf16.mxu0 0
  %2584 = vmatpush2.bf16.msra.mxu0 0
  %2585 = vmatprep.subr.bf16.mxu0 0
  %2586 = vmatpush2.bf16.msra.mxu0 0
  %2587 = vmatprep.subr.bf16.mxu0 0
  %2588 = vmatpush2.bf16.msra.mxu0 0
  %2589 = vmatprep.subr.bf16.mxu0 0
  %2590 = vmatpush2.bf16.msra.mxu0 0
  %2591 = vmatprep.subr.bf16.mxu0 0
  %2592 = vmatpush2.bf16.msra.mxu0 0
  %2593 = vmatprep.subr.bf16.mxu0 0
  %2594 = vmatpush2.bf16.msra.mxu0 0
  %2595 = vmatprep.subr.bf16.mxu0 0
  %2596 = vmatpush2.bf16.msra.mxu0 0
  %2597 = vmatprep.mubr.bf16.mxu0 0
  %2598 = vmatmul.mubr.bf16.gmra.mxu0 %v2518
  %v2599 = vpop.f32.mrf.mxu0
  %v2600 = vadd.f32 0.0, %v2599
  %v2601 = vpop.f32.mrf.mxu0
  %v2602 = vpop.f32.mrf.mxu0
  %v2603 = vadd.f32 0.0, %v2602
  %v2604 = vpop.f32.mrf.mxu0
  %2605 = vmatprep.mubr.bf16.mxu0 0
  %2606 = vmatmul.mubr.bf16.gmra.mxu0 %v2521
  %v2607 = vpop.f32.mrf.mxu0
  %v2608 = vadd.f32 0.0, %v2607
  %v2609 = vpop.f32.mrf.mxu0
  %v2610 = vpop.f32.mrf.mxu0
  %v2611 = vadd.f32 0.0, %v2610
  %v2612 = vpop.f32.mrf.mxu0
  %2613 = vmatprep.mubr.bf16.mxu0 0
  %2614 = vmatmul.mubr.bf16.gmra.mxu0 %v2524
  %v2615 = vpop.f32.mrf.mxu0
  %v2616 = vadd.f32 0.0, %v2615
  %v2617 = vpop.f32.mrf.mxu0
  %v2618 = vpop.f32.mrf.mxu0
  %v2619 = vadd.f32 0.0, %v2618
  %v2620 = vpop.f32.mrf.mxu0
  %2621 = vmatprep.mubr.bf16.mxu0 0
  %2622 = vmatmul.mubr.bf16.gmra.mxu0 %v2527
  %v2623 = vpop.f32.mrf.mxu0
  %v2624 = vadd.f32 0.0, %v2623
  %v2625 = vpop.f32.mrf.mxu0
  %v2626 = vpop.f32.mrf.mxu0
  %v2627 = vadd.f32 0.0, %v2626
  %v2628 = vpop.f32.mrf.mxu0
  %2629 = vmatprep.mubr.bf16.mxu0 0
  %2630 = vmatmul.mubr.bf16.gmra.mxu0 %v2530
  %v2631 = vpop.f32.mrf.mxu0
  %v2632 = vadd.f32 0.0, %v2631
  %v2633 = vpop.f32.mrf.mxu0
  %v2634 = vpop.f32.mrf.mxu0
  %v2635 = vadd.f32 0.0, %v2634
  %v2636 = vpop.f32.mrf.mxu0
  %2637 = vmatprep.mubr.bf16.mxu0 0
  %2638 = vmatmul.mubr.bf16.gmra.mxu0 %v2533
  %v2639 = vpop.f32.mrf.mxu0
  %v2640 = vadd.f32 0.0, %v2639
  %v2641 = vpop.f32.mrf.mxu0
  %v2642 = vpop.f32.mrf.mxu0
  %v2643 = vadd.f32 0.0, %v2642
  %v2644 = vpop.f32.mrf.mxu0
  %2645 = vmatprep.mubr.bf16.mxu0 0
  %2646 = vmatmul.mubr.bf16.gmra.mxu0 %v2536
  %v2647 = vpop.f32.mrf.mxu0
  %v2648 = vadd.f32 0.0, %v2647
  %v2649 = vpop.f32.mrf.mxu0
  %v2650 = vpop.f32.mrf.mxu0
  %v2651 = vadd.f32 0.0, %v2650
  %v2652 = vpop.f32.mrf.mxu0
  %2653 = vmatprep.mubr.bf16.mxu0 0
  %2654 = vmatmul.mubr.bf16.gmra.mxu0 %v2539
  %v2655 = vpop.f32.mrf.mxu0
  %v2656 = vadd.f32 0.0, %v2655
  %v2657 = vpop.f32.mrf.mxu0
  %v2658 = vpop.f32.mrf.mxu0
  %v2659 = vadd.f32 0.0, %v2658
  %v2660 = vpop.f32.mrf.mxu0
  %2661 = vmatprep.mubr.bf16.mxu0 0
  %2662 = vmatmul.mubr.bf16.gmra.mxu0 %v2542
  %v2663 = vpop.f32.mrf.mxu0
  %v2664 = vadd.f32 0.0, %v2663
  %v2665 = vpop.f32.mrf.mxu0
  %v2666 = vpop.f32.mrf.mxu0
  %v2667 = vadd.f32 0.0, %v2666
  %v2668 = vpop.f32.mrf.mxu0
  %2669 = vmatprep.mubr.bf16.mxu0 0
  %2670 = vmatmul.mubr.bf16.gmra.mxu0 %v2545
  %v2671 = vpop.f32.mrf.mxu0
  %v2672 = vadd.f32 0.0, %v2671
  %v2673 = vpop.f32.mrf.mxu0
  %v2674 = vpop.f32.mrf.mxu0
  %v2675 = vadd.f32 0.0, %v2674
  %v2676 = vpop.f32.mrf.mxu0
  %2677 = vmatprep.mubr.bf16.mxu0 0
  %2678 = vmatmul.mubr.bf16.gmra.mxu0 %v2548
  %v2679 = vpop.f32.mrf.mxu0
  %v2680 = vadd.f32 0.0, %v2679
  %v2681 = vpop.f32.mrf.mxu0
  %v2682 = vpop.f32.mrf.mxu0
  %v2683 = vadd.f32 0.0, %v2682
  %v2684 = vpop.f32.mrf.mxu0
  %2685 = vmatprep.mubr.bf16.mxu0 0
  %2686 = vmatmul.mubr.bf16.gmra.mxu0 %v2551
  %v2687 = vpop.f32.mrf.mxu0
  %v2688 = vadd.f32 0.0, %v2687
  %v2689 = vpop.f32.mrf.mxu0
  %v2690 = vpop.f32.mrf.mxu0
  %v2691 = vadd.f32 0.0, %v2690
  %v2692 = vpop.f32.mrf.mxu0
  %2693 = vmatprep.mubr.bf16.mxu0 0
  %2694 = vmatmul.mubr.bf16.gmra.mxu0 %v2554
  %v2695 = vpop.f32.mrf.mxu0
  %v2696 = vadd.f32 0.0, %v2695
  %v2697 = vpop.f32.mrf.mxu0
  %v2698 = vpop.f32.mrf.mxu0
  %v2699 = vadd.f32 0.0, %v2698
  %v2700 = vpop.f32.mrf.mxu0
  %2701 = vmatprep.mubr.bf16.mxu0 0
  %2702 = vmatmul.mubr.bf16.gmra.mxu0 %v2557
  %v2703 = vpop.f32.mrf.mxu0
  %v2704 = vadd.f32 0.0, %v2703
  %v2705 = vpop.f32.mrf.mxu0
  %v2706 = vpop.f32.mrf.mxu0
  %v2707 = vadd.f32 0.0, %v2706
  %v2708 = vpop.f32.mrf.mxu0
  %2709 = vmatprep.mubr.bf16.mxu0 0
  %2710 = vmatmul.mubr.bf16.gmra.mxu0 %v2560
  %v2711 = vpop.f32.mrf.mxu0
  %v2712 = vadd.f32 0.0, %v2711
  %v2713 = vpop.f32.mrf.mxu0
  %v2714 = vpop.f32.mrf.mxu0
  %v2715 = vadd.f32 0.0, %v2714
  %v2716 = vpop.f32.mrf.mxu0
  %2717 = vmatprep.mubr.bf16.mxu0 0
  %2718 = vmatmul.mubr.bf16.gmra.mxu0 %v2563
  %v2719 = vpop.f32.mrf.mxu0
  %v2720 = vadd.f32 0.0, %v2719
  %v2721 = vpop.f32.mrf.mxu0
  %v2722 = vpop.f32.mrf.mxu0
  %v2723 = vadd.f32 0.0, %v2722
  %v2724 = vpop.f32.mrf.mxu0
  %2725 = vdwg.mxu0
  %v2726 = vmul.f32 %v2600, %v99
  %v2727 = vmul.f32 %v2603, %v100
  %v2728 = vmul.f32 %v2608, %v101
  %v2729 = vmul.f32 %v2611, %v102
  %v2730 = vmul.f32 %v2616, %v103
  %v2731 = vmul.f32 %v2619, %v104
  %v2732 = vmul.f32 %v2624, %v105
  %v2733 = vmul.f32 %v2627, %v106
  %v2734 = vmul.f32 %v2632, %v107
  %v2735 = vmul.f32 %v2635, %v108
  %v2736 = vmul.f32 %v2640, %v109
  %v2737 = vmul.f32 %v2643, %v110
  %v2738 = vmul.f32 %v2648, %v111
  %v2739 = vmul.f32 %v2651, %v112
  %v2740 = vmul.f32 %v2656, %v113
  %v2741 = vmul.f32 %v2659, %v114
  %v2742 = vadd.f32 %v2726, %v2734
  %v2743 = vadd.f32 %v2727, %v2735
  %v2744 = vadd.f32 %v2728, %v2736
  %v2745 = vadd.f32 %v2729, %v2737
  %v2746 = vadd.f32 %v2730, %v2738
  %v2747 = vadd.f32 %v2731, %v2739
  %v2748 = vadd.f32 %v2732, %v2740
  %v2749 = vadd.f32 %v2733, %v2741
  %v2750 = vmul.f32 %v2664, %v115
  %v2751 = vmul.f32 %v2667, %v116
  %v2752 = vmul.f32 %v2672, %v117
  %v2753 = vmul.f32 %v2675, %v118
  %v2754 = vmul.f32 %v2680, %v119
  %v2755 = vmul.f32 %v2683, %v120
  %v2756 = vmul.f32 %v2688, %v121
  %v2757 = vmul.f32 %v2691, %v122
  %v2758 = vadd.f32 %v2742, %v2750
  %v2759 = vadd.f32 %v2743, %v2751
  %v2760 = vadd.f32 %v2744, %v2752
  %v2761 = vadd.f32 %v2745, %v2753
  %v2762 = vadd.f32 %v2746, %v2754
  %v2763 = vadd.f32 %v2747, %v2755
  %v2764 = vadd.f32 %v2748, %v2756
  %v2765 = vadd.f32 %v2749, %v2757
  %v2766 = vmul.f32 %v2696, %v123
  %v2767 = vmul.f32 %v2699, %v124
  %v2768 = vmul.f32 %v2704, %v125
  %v2769 = vmul.f32 %v2707, %v126
  %v2770 = vmul.f32 %v2712, %v127
  %v2771 = vmul.f32 %v2715, %v128
  %v2772 = vmul.f32 %v2720, %v129
  %v2773 = vmul.f32 %v2723, %v130
  %v2774 = vadd.f32 %v2758, %v2766
  %v2775 = vadd.f32 %v2759, %v2767
  %v2776 = vadd.f32 %v2760, %v2768
  %v2777 = vadd.f32 %v2761, %v2769
  %v2778 = vadd.f32 %v2762, %v2770
  %v2779 = vadd.f32 %v2763, %v2771
  %v2780 = vadd.f32 %v2764, %v2772
  %v2781 = vadd.f32 %v2765, %v2773
  %v2782 = vpack.c.bf16 %v1857, %v1856
  %v2783 = vpack.c.bf16 %v1859, %v1858
  %v2784 = vpack.c.bf16 %v1861, %v1860
  %v2785 = vpack.c.bf16 %v1863, %v1862
  %v2786 = vpack.c.bf16 %v2775, %v2774
  %v2787 = vpack.c.bf16 %v2777, %v2776
  %v2788 = vpack.c.bf16 %v2779, %v2778
  %v2789 = vpack.c.bf16 %v2781, %v2780
  %v2790 = vlaneseq
  %v2791 = vshrl.u32 %v2790, 7
  %v2792 = vsub.s32 0, %v2791
  %v2793 = vrot.slane %v61, %v2792
  %2794 = vrot.lane.b32.xlu0 %v665, 32
  %v2795 = vpop.permute.xlu0 %2794
  %2796 = vrot.lane.b32.xlu0 %v666, 32
  %v2797 = vpop.permute.xlu0 %2796
  %v2801 = vsel %vm139, %v2782, 0
  %v2804 = vsel %vm139, %v2783, 0
  %v2807 = vsel %vm139, %v2784, 0
  %v2810 = vsel %vm139, %v2785, 0
  %v2813 = vsel %vm139, %v2786, 0
  %v2816 = vsel %vm139, %v2787, 0
  %v2819 = vsel %vm139, %v2788, 0
  %v2822 = vsel %vm139, %v2789, 0
  %2824 = vmatprep.subr.bf16.mxu0 0
  %2825 = vmatpush1.bf16.msra.mxu0 0
  %2826 = vmatprep.subr.bf16.mxu0 0
  %2827 = vmatpush1.bf16.msra.mxu0 0
  %2828 = vmatprep.subr.bf16.mxu0 0
  %2829 = vmatpush1.bf16.msra.mxu0 0
  %2830 = vmatprep.subr.bf16.mxu0 0
  %2831 = vmatpush1.bf16.msra.mxu0 0
  %2832 = vmatprep.subr.bf16.mxu0 0
  %2833 = vmatpush1.bf16.msra.mxu0 0
  %2834 = vmatprep.subr.bf16.mxu0 0
  %2835 = vmatpush1.bf16.msra.mxu0 0
  %2836 = vmatprep.subr.bf16.mxu0 0
  %2837 = vmatpush1.bf16.msra.mxu0 %v2797
  %2838 = vmatprep.subr.bf16.mxu0 0
  %2839 = vmatpush1.bf16.msra.mxu0 %v2795
  %2840 = vmatprep.subr.bf16.mxu0 0
  %2841 = vmatpush2.bf16.msra.mxu0 0
  %2842 = vmatprep.subr.bf16.mxu0 0
  %2843 = vmatpush2.bf16.msra.mxu0 0
  %2844 = vmatprep.subr.bf16.mxu0 0
  %2845 = vmatpush2.bf16.msra.mxu0 0
  %2846 = vmatprep.subr.bf16.mxu0 0
  %2847 = vmatpush2.bf16.msra.mxu0 0
  %2848 = vmatprep.subr.bf16.mxu0 0
  %2849 = vmatpush2.bf16.msra.mxu0 0
  %2850 = vmatprep.subr.bf16.mxu0 0
  %2851 = vmatpush2.bf16.msra.mxu0 0
  %2852 = vmatprep.subr.bf16.mxu0 0
  %2853 = vmatpush2.bf16.msra.mxu0 0
  %2854 = vmatprep.subr.bf16.mxu0 0
  %2855 = vmatpush2.bf16.msra.mxu0 0
  %2856 = vmatprep.mubr.bf16.mxu0 0
  %2857 = vmatmul.mubr.bf16.gmra.mxu0 %v2801
  %v2858 = vpop.f32.mrf.mxu0
  %v2859 = vadd.f32 %v2793, %v2858
  %v2860 = vpop.f32.mrf.mxu0
  %v2861 = vpop.f32.mrf.mxu0
  %v2862 = vadd.f32 %v2793, %v2861
  %v2863 = vpop.f32.mrf.mxu0
  %2864 = vmatprep.mubr.bf16.mxu0 0
  %2865 = vmatmul.mubr.bf16.gmra.mxu0 %v2804
  %v2866 = vpop.f32.mrf.mxu0
  %v2867 = vadd.f32 %v2793, %v2866
  %v2868 = vpop.f32.mrf.mxu0
  %v2869 = vpop.f32.mrf.mxu0
  %v2870 = vadd.f32 %v2793, %v2869
  %v2871 = vpop.f32.mrf.mxu0
  %2872 = vmatprep.mubr.bf16.mxu0 0
  %2873 = vmatmul.mubr.bf16.gmra.mxu0 %v2807
  %v2874 = vpop.f32.mrf.mxu0
  %v2875 = vadd.f32 %v2793, %v2874
  %v2876 = vpop.f32.mrf.mxu0
  %v2877 = vpop.f32.mrf.mxu0
  %v2878 = vadd.f32 %v2793, %v2877
  %v2879 = vpop.f32.mrf.mxu0
  %2880 = vmatprep.mubr.bf16.mxu0 0
  %2881 = vmatmul.mubr.bf16.gmra.mxu0 %v2810
  %v2882 = vpop.f32.mrf.mxu0
  %v2883 = vadd.f32 %v2793, %v2882
  %v2884 = vpop.f32.mrf.mxu0
  %v2885 = vpop.f32.mrf.mxu0
  %v2886 = vadd.f32 %v2793, %v2885
  %v2887 = vpop.f32.mrf.mxu0
  %2888 = vmatprep.mubr.bf16.mxu0 0
  %2889 = vmatmul.mubr.bf16.gmra.mxu0 %v2813
  %v2890 = vpop.f32.mrf.mxu0
  %v2891 = vadd.f32 %v2793, %v2890
  %v2892 = vpop.f32.mrf.mxu0
  %v2893 = vpop.f32.mrf.mxu0
  %v2894 = vadd.f32 %v2793, %v2893
  %v2895 = vpop.f32.mrf.mxu0
  %2896 = vmatprep.mubr.bf16.mxu0 0
  %2897 = vmatmul.mubr.bf16.gmra.mxu0 %v2816
  %v2898 = vpop.f32.mrf.mxu0
  %v2899 = vadd.f32 %v2793, %v2898
  %v2900 = vpop.f32.mrf.mxu0
  %v2901 = vpop.f32.mrf.mxu0
  %v2902 = vadd.f32 %v2793, %v2901
  %v2903 = vpop.f32.mrf.mxu0
  %2904 = vmatprep.mubr.bf16.mxu0 0
  %2905 = vmatmul.mubr.bf16.gmra.mxu0 %v2819
  %v2906 = vpop.f32.mrf.mxu0
  %v2907 = vadd.f32 %v2793, %v2906
  %v2908 = vpop.f32.mrf.mxu0
  %v2909 = vpop.f32.mrf.mxu0
  %v2910 = vadd.f32 %v2793, %v2909
  %v2911 = vpop.f32.mrf.mxu0
  %2912 = vmatprep.mubr.bf16.mxu0 0
  %2913 = vmatmul.mubr.bf16.gmra.mxu0 %v2822
  %v2914 = vpop.f32.mrf.mxu0
  %v2915 = vadd.f32 %v2793, %v2914
  %v2916 = vpop.f32.mrf.mxu0
  %v2917 = vpop.f32.mrf.mxu0
  %v2918 = vadd.f32 %v2793, %v2917
  %v2919 = vpop.f32.mrf.mxu0
  %2920 = vdwg.mxu0
  %v2921 = vadd.f32 %v24, %v2859
  %v2922 = vadd.f32 %v25, %v2862
  %v2923 = vadd.f32 %v26, %v2867
  %v2924 = vadd.f32 %v27, %v2870
  %v2925 = vadd.f32 %v28, %v2875
  %v2926 = vadd.f32 %v29, %v2878
  %v2927 = vadd.f32 %v30, %v2883
  %v2928 = vadd.f32 %v31, %v2886
  %v2929 = vadd.f32 %v32, %v2891
  %v2930 = vadd.f32 %v33, %v2894
  %v2931 = vadd.f32 %v34, %v2899
  %v2932 = vadd.f32 %v35, %v2902
  %v2933 = vadd.f32 %v36, %v2907
  %v2934 = vadd.f32 %v37, %v2910
  %v2935 = vadd.f32 %v38, %v2915
  %v2936 = vadd.f32 %v39, %v2918
  %v2937 = vsel %vm139, %v2921, 0.0
  %2938 = vadd.xlane.f32.xlu0 %v2937
  %v2939 = vpop.xlane.xlu0 %2938
  %v2940 = vsel %vm139, %v2922, 0.0
  %2941 = vadd.xlane.f32.xlu0 %v2940
  %v2942 = vpop.xlane.xlu0 %2941
  %v2943 = vsel %vm139, %v2923, 0.0
  %2944 = vadd.xlane.f32.xlu0 %v2943
  %v2945 = vpop.xlane.xlu0 %2944
  %v2946 = vsel %vm139, %v2924, 0.0
  %2947 = vadd.xlane.f32.xlu0 %v2946
  %v2948 = vpop.xlane.xlu0 %2947
  %v2949 = vsel %vm139, %v2925, 0.0
  %2950 = vadd.xlane.f32.xlu0 %v2949
  %v2951 = vpop.xlane.xlu0 %2950
  %v2952 = vsel %vm139, %v2926, 0.0
  %2953 = vadd.xlane.f32.xlu0 %v2952
  %v2954 = vpop.xlane.xlu0 %2953
  %v2955 = vsel %vm139, %v2927, 0.0
  %2956 = vadd.xlane.f32.xlu0 %v2955
  %v2957 = vpop.xlane.xlu0 %2956
  %v2958 = vsel %vm139, %v2928, 0.0
  %2959 = vadd.xlane.f32.xlu0 %v2958
  %v2960 = vpop.xlane.xlu0 %2959
  %v2961 = vsel %vm139, %v2929, 0.0
  %2962 = vadd.xlane.f32.xlu0 %v2961
  %v2963 = vpop.xlane.xlu0 %2962
  %v2964 = vsel %vm139, %v2930, 0.0
  %2965 = vadd.xlane.f32.xlu0 %v2964
  %v2966 = vpop.xlane.xlu0 %2965
  %v2967 = vsel %vm139, %v2931, 0.0
  %2968 = vadd.xlane.f32.xlu0 %v2967
  %v2969 = vpop.xlane.xlu0 %2968
  %v2970 = vsel %vm139, %v2932, 0.0
  %2971 = vadd.xlane.f32.xlu0 %v2970
  %v2972 = vpop.xlane.xlu0 %2971
  %v2973 = vsel %vm139, %v2933, 0.0
  %2974 = vadd.xlane.f32.xlu0 %v2973
  %v2975 = vpop.xlane.xlu0 %2974
  %v2976 = vsel %vm139, %v2934, 0.0
  %2977 = vadd.xlane.f32.xlu0 %v2976
  %v2978 = vpop.xlane.xlu0 %2977
  %v2979 = vsel %vm139, %v2935, 0.0
  %2980 = vadd.xlane.f32.xlu0 %v2979
  %v2981 = vpop.xlane.xlu0 %2980
  %v2982 = vsel %vm139, %v2936, 0.0
  %2983 = vadd.xlane.f32.xlu0 %v2982
  %v2984 = vpop.xlane.xlu0 %2983
  %v2985 = vmul.f32 %v2939, %v188
  %v2986 = vmul.f32 %v2942, %v188
  %v2987 = vmul.f32 %v2945, %v188
  %v2988 = vmul.f32 %v2948, %v188
  %v2989 = vmul.f32 %v2951, %v188
  %v2990 = vmul.f32 %v2954, %v188
  %v2991 = vmul.f32 %v2957, %v188
  %v2992 = vmul.f32 %v2960, %v188
  %v2993 = vmul.f32 %v2963, %v188
  %v2994 = vmul.f32 %v2966, %v188
  %v2995 = vmul.f32 %v2969, %v188
  %v2996 = vmul.f32 %v2972, %v188
  %v2997 = vmul.f32 %v2975, %v188
  %v2998 = vmul.f32 %v2978, %v188
  %v2999 = vmul.f32 %v2981, %v188
  %v3000 = vmul.f32 %v2984, %v188
  %v3001 = vsub.f32 %v2921, %v2985
  %v3002 = vsub.f32 %v2922, %v2986
  %v3003 = vsub.f32 %v2923, %v2987
  %v3004 = vsub.f32 %v2924, %v2988
  %v3005 = vsub.f32 %v2925, %v2989
  %v3006 = vsub.f32 %v2926, %v2990
  %v3007 = vsub.f32 %v2927, %v2991
  %v3008 = vsub.f32 %v2928, %v2992
  %v3009 = vsub.f32 %v2929, %v2993
  %v3010 = vsub.f32 %v2930, %v2994
  %v3011 = vsub.f32 %v2931, %v2995
  %v3012 = vsub.f32 %v2932, %v2996
  %v3013 = vsub.f32 %v2933, %v2997
  %v3014 = vsub.f32 %v2934, %v2998
  %v3015 = vsub.f32 %v2935, %v2999
  %v3016 = vsub.f32 %v2936, %v3000
  %v3017 = vmul.f32 %v3001, %v3001
  %v3018 = vmul.f32 %v3002, %v3002
  %v3019 = vmul.f32 %v3003, %v3003
  %v3020 = vmul.f32 %v3004, %v3004
  %v3021 = vmul.f32 %v3005, %v3005
  %v3022 = vmul.f32 %v3006, %v3006
  %v3023 = vmul.f32 %v3007, %v3007
  %v3024 = vmul.f32 %v3008, %v3008
  %v3025 = vmul.f32 %v3009, %v3009
  %v3026 = vmul.f32 %v3010, %v3010
  %v3027 = vmul.f32 %v3011, %v3011
  %v3028 = vmul.f32 %v3012, %v3012
  %v3029 = vmul.f32 %v3013, %v3013
  %v3030 = vmul.f32 %v3014, %v3014
  %v3031 = vmul.f32 %v3015, %v3015
  %v3032 = vmul.f32 %v3016, %v3016
  %v3033 = vsel %vm139, %v3017, 0.0
  %3034 = vadd.xlane.f32.xlu0 %v3033
  %v3035 = vpop.xlane.xlu0 %3034
  %v3036 = vsel %vm139, %v3018, 0.0
  %3037 = vadd.xlane.f32.xlu0 %v3036
  %v3038 = vpop.xlane.xlu0 %3037
  %v3039 = vsel %vm139, %v3019, 0.0
  %3040 = vadd.xlane.f32.xlu0 %v3039
  %v3041 = vpop.xlane.xlu0 %3040
  %v3042 = vsel %vm139, %v3020, 0.0
  %3043 = vadd.xlane.f32.xlu0 %v3042
  %v3044 = vpop.xlane.xlu0 %3043
  %v3045 = vsel %vm139, %v3021, 0.0
  %3046 = vadd.xlane.f32.xlu0 %v3045
  %v3047 = vpop.xlane.xlu0 %3046
  %v3048 = vsel %vm139, %v3022, 0.0
  %3049 = vadd.xlane.f32.xlu0 %v3048
  %v3050 = vpop.xlane.xlu0 %3049
  %v3051 = vsel %vm139, %v3023, 0.0
  %3052 = vadd.xlane.f32.xlu0 %v3051
  %v3053 = vpop.xlane.xlu0 %3052
  %v3054 = vsel %vm139, %v3024, 0.0
  %3055 = vadd.xlane.f32.xlu0 %v3054
  %v3056 = vpop.xlane.xlu0 %3055
  %v3057 = vsel %vm139, %v3025, 0.0
  %3058 = vadd.xlane.f32.xlu0 %v3057
  %v3059 = vpop.xlane.xlu0 %3058
  %v3060 = vsel %vm139, %v3026, 0.0
  %3061 = vadd.xlane.f32.xlu0 %v3060
  %v3062 = vpop.xlane.xlu0 %3061
  %v3063 = vsel %vm139, %v3027, 0.0
  %3064 = vadd.xlane.f32.xlu0 %v3063
  %v3065 = vpop.xlane.xlu0 %3064
  %v3066 = vsel %vm139, %v3028, 0.0
  %3067 = vadd.xlane.f32.xlu0 %v3066
  %v3068 = vpop.xlane.xlu0 %3067
  %v3069 = vsel %vm139, %v3029, 0.0
  %3070 = vadd.xlane.f32.xlu0 %v3069
  %v3071 = vpop.xlane.xlu0 %3070
  %v3072 = vsel %vm139, %v3030, 0.0
  %3073 = vadd.xlane.f32.xlu0 %v3072
  %v3074 = vpop.xlane.xlu0 %3073
  %v3075 = vsel %vm139, %v3031, 0.0
  %3076 = vadd.xlane.f32.xlu0 %v3075
  %v3077 = vpop.xlane.xlu0 %3076
  %v3078 = vsel %vm139, %v3032, 0.0
  %3079 = vadd.xlane.f32.xlu0 %v3078
  %v3080 = vpop.xlane.xlu0 %3079
  %v3081 = vmul.f32 %v3035, %v188
  %v3082 = vmul.f32 %v3038, %v188
  %v3083 = vmul.f32 %v3041, %v188
  %v3084 = vmul.f32 %v3044, %v188
  %v3085 = vmul.f32 %v3047, %v188
  %v3086 = vmul.f32 %v3050, %v188
  %v3087 = vmul.f32 %v3053, %v188
  %v3088 = vmul.f32 %v3056, %v188
  %v3089 = vmul.f32 %v3059, %v188
  %v3090 = vmul.f32 %v3062, %v188
  %v3091 = vmul.f32 %v3065, %v188
  %v3092 = vmul.f32 %v3068, %v188
  %v3093 = vmul.f32 %v3071, %v188
  %v3094 = vmul.f32 %v3074, %v188
  %v3095 = vmul.f32 %v3077, %v188
  %v3096 = vmul.f32 %v3080, %v188
  %v3097 = vadd.f32 %v3081, 1e-05
  %v3098 = vadd.f32 %v3082, 1e-05
  %v3099 = vadd.f32 %v3083, 1e-05
  %v3100 = vadd.f32 %v3084, 1e-05
  %v3101 = vadd.f32 %v3085, 1e-05
  %v3102 = vadd.f32 %v3086, 1e-05
  %v3103 = vadd.f32 %v3087, 1e-05
  %v3104 = vadd.f32 %v3088, 1e-05
  %v3105 = vadd.f32 %v3089, 1e-05
  %v3106 = vadd.f32 %v3090, 1e-05
  %v3107 = vadd.f32 %v3091, 1e-05
  %v3108 = vadd.f32 %v3092, 1e-05
  %v3109 = vadd.f32 %v3093, 1e-05
  %v3110 = vadd.f32 %v3094, 1e-05
  %v3111 = vadd.f32 %v3095, 1e-05
  %v3112 = vadd.f32 %v3096, 1e-05
  %v3113 = vrsqrt.pop %v3097
  %v3114 = vrsqrt.pop %v3098
  %v3115 = vrsqrt.pop %v3099
  %v3116 = vrsqrt.pop %v3100
  %v3117 = vrsqrt.pop %v3101
  %v3118 = vrsqrt.pop %v3102
  %v3119 = vrsqrt.pop %v3103
  %v3120 = vrsqrt.pop %v3104
  %v3121 = vrsqrt.pop %v3105
  %v3122 = vrsqrt.pop %v3106
  %v3123 = vrsqrt.pop %v3107
  %v3124 = vrsqrt.pop %v3108
  %v3125 = vrsqrt.pop %v3109
  %v3126 = vrsqrt.pop %v3110
  %v3127 = vrsqrt.pop %v3111
  %v3128 = vrsqrt.pop %v3112
  %v3129 = vmul.f32 %v3001, %v3113
  %v3130 = vmul.f32 %v3002, %v3114
  %v3131 = vmul.f32 %v3003, %v3115
  %v3132 = vmul.f32 %v3004, %v3116
  %v3133 = vmul.f32 %v3005, %v3117
  %v3134 = vmul.f32 %v3006, %v3118
  %v3135 = vmul.f32 %v3007, %v3119
  %v3136 = vmul.f32 %v3008, %v3120
  %v3137 = vmul.f32 %v3009, %v3121
  %v3138 = vmul.f32 %v3010, %v3122
  %v3139 = vmul.f32 %v3011, %v3123
  %v3140 = vmul.f32 %v3012, %v3124
  %v3141 = vmul.f32 %v3013, %v3125
  %v3142 = vmul.f32 %v3014, %v3126
  %v3143 = vmul.f32 %v3015, %v3127
  %v3144 = vmul.f32 %v3016, %v3128
  %v3145 = vlaneseq
  %v3146 = vshrl.u32 %v3145, 7
  %v3147 = vsub.s32 0, %v3146
  %v3148 = vrot.slane %v62, %v3147
  %v3149 = vmul.f32 %v3129, %v3148
  %v3150 = vmul.f32 %v3130, %v3148
  %v3151 = vmul.f32 %v3131, %v3148
  %v3152 = vmul.f32 %v3132, %v3148
  %v3153 = vmul.f32 %v3133, %v3148
  %v3154 = vmul.f32 %v3134, %v3148
  %v3155 = vmul.f32 %v3135, %v3148
  %v3156 = vmul.f32 %v3136, %v3148
  %v3157 = vmul.f32 %v3137, %v3148
  %v3158 = vmul.f32 %v3138, %v3148
  %v3159 = vmul.f32 %v3139, %v3148
  %v3160 = vmul.f32 %v3140, %v3148
  %v3161 = vmul.f32 %v3141, %v3148
  %v3162 = vmul.f32 %v3142, %v3148
  %v3163 = vmul.f32 %v3143, %v3148
  %v3164 = vmul.f32 %v3144, %v3148
  %v3165 = vlaneseq
  %v3166 = vshrl.u32 %v3165, 7
  %v3167 = vsub.s32 0, %v3166
  %v3168 = vrot.slane %v63, %v3167
  %v3169 = vadd.f32 %v3149, %v3168
  %v3170 = vadd.f32 %v3150, %v3168
  %v3171 = vadd.f32 %v3151, %v3168
  %v3172 = vadd.f32 %v3152, %v3168
  %v3173 = vadd.f32 %v3153, %v3168
  %v3174 = vadd.f32 %v3154, %v3168
  %v3175 = vadd.f32 %v3155, %v3168
  %v3176 = vadd.f32 %v3156, %v3168
  %v3177 = vadd.f32 %v3157, %v3168
  %v3178 = vadd.f32 %v3158, %v3168
  %v3179 = vadd.f32 %v3159, %v3168
  %v3180 = vadd.f32 %v3160, %v3168
  %v3181 = vadd.f32 %v3161, %v3168
  %v3182 = vadd.f32 %v3162, %v3168
  %v3183 = vadd.f32 %v3163, %v3168
  %v3184 = vadd.f32 %v3164, %v3168
  %v3185 = vpack.c.bf16 %v3170, %v3169
  %v3186 = vpack.c.bf16 %v3172, %v3171
  %v3187 = vpack.c.bf16 %v3174, %v3173
  %v3188 = vpack.c.bf16 %v3176, %v3175
  %v3189 = vpack.c.bf16 %v3178, %v3177
  %v3190 = vpack.c.bf16 %v3180, %v3179
  %v3191 = vpack.c.bf16 %v3182, %v3181
  %v3192 = vpack.c.bf16 %v3184, %v3183
  %v3193 = vlaneseq
  %v3194 = vshrl.u32 %v3193, 7
  %v3195 = vsub.s32 0, %v3194
  %v3196 = vrot.slane %v66, %v3195
  %v3201 = vunpack.c.l.b16 %v135
  %v3202 = vunpack.c.l.b16 %v136
  %v3203 = vunpack.c.l.b16 %v137
  %v3204 = vunpack.c.l.b16 %v138
  %v3205 = vpack.c.b16 %v3202, %v3201
  %v3206 = vpack.c.b16 %v3204, %v3203
  %v3210 = vsel %vm139, %v3185, 0
  %v3213 = vsel %vm139, %v3186, 0
  %v3216 = vsel %vm139, %v3187, 0
  %v3219 = vsel %vm139, %v3188, 0
  %v3222 = vsel %vm139, %v3189, 0
  %v3225 = vsel %vm139, %v3190, 0
  %v3228 = vsel %vm139, %v3191, 0
  %v3231 = vsel %vm139, %v3192, 0
  %3233 = vmatprep.subr.bf16.mxu0 0
  %3234 = vmatpush1.bf16.msra.mxu0 0
  %3235 = vmatprep.subr.bf16.mxu0 0
  %3236 = vmatpush1.bf16.msra.mxu0 0
  %3237 = vmatprep.subr.bf16.mxu0 0
  %3238 = vmatpush1.bf16.msra.mxu0 0
  %3239 = vmatprep.subr.bf16.mxu0 0
  %3240 = vmatpush1.bf16.msra.mxu0 0
  %3241 = vmatprep.subr.bf16.mxu0 0
  %3242 = vmatpush1.bf16.msra.mxu0 0
  %3243 = vmatprep.subr.bf16.mxu0 0
  %3244 = vmatpush1.bf16.msra.mxu0 0
  %3245 = vmatprep.subr.bf16.mxu0 0
  %3246 = vmatpush1.bf16.msra.mxu0 %v3206
  %3247 = vmatprep.subr.bf16.mxu0 0
  %3248 = vmatpush1.bf16.msra.mxu0 %v3205
  %3249 = vmatprep.subr.bf16.mxu0 0
  %3250 = vmatpush2.bf16.msra.mxu0 0
  %3251 = vmatprep.subr.bf16.mxu0 0
  %3252 = vmatpush2.bf16.msra.mxu0 0
  %3253 = vmatprep.subr.bf16.mxu0 0
  %3254 = vmatpush2.bf16.msra.mxu0 0
  %3255 = vmatprep.subr.bf16.mxu0 0
  %3256 = vmatpush2.bf16.msra.mxu0 0
  %3257 = vmatprep.subr.bf16.mxu0 0
  %3258 = vmatpush2.bf16.msra.mxu0 0
  %3259 = vmatprep.subr.bf16.mxu0 0
  %3260 = vmatpush2.bf16.msra.mxu0 0
  %3261 = vmatprep.subr.bf16.mxu0 0
  %3262 = vmatpush2.bf16.msra.mxu0 0
  %3263 = vmatprep.subr.bf16.mxu0 0
  %3264 = vmatpush2.bf16.msra.mxu0 0
  %3265 = vmatprep.mubr.bf16.mxu0 0
  %3266 = vmatmul.mubr.bf16.gmra.mxu0 %v3210
  %v3267 = vpop.f32.mrf.mxu0
  %v3268 = vadd.f32 %v3196, %v3267
  %v3269 = vpop.f32.mrf.mxu0
  %v3270 = vpop.f32.mrf.mxu0
  %v3271 = vadd.f32 %v3196, %v3270
  %v3272 = vpop.f32.mrf.mxu0
  %3273 = vmatprep.mubr.bf16.mxu0 0
  %3274 = vmatmul.mubr.bf16.gmra.mxu0 %v3213
  %v3275 = vpop.f32.mrf.mxu0
  %v3276 = vadd.f32 %v3196, %v3275
  %v3277 = vpop.f32.mrf.mxu0
  %v3278 = vpop.f32.mrf.mxu0
  %v3279 = vadd.f32 %v3196, %v3278
  %v3280 = vpop.f32.mrf.mxu0
  %3281 = vmatprep.mubr.bf16.mxu0 0
  %3282 = vmatmul.mubr.bf16.gmra.mxu0 %v3216
  %v3283 = vpop.f32.mrf.mxu0
  %v3284 = vadd.f32 %v3196, %v3283
  %v3285 = vpop.f32.mrf.mxu0
  %v3286 = vpop.f32.mrf.mxu0
  %v3287 = vadd.f32 %v3196, %v3286
  %v3288 = vpop.f32.mrf.mxu0
  %3289 = vmatprep.mubr.bf16.mxu0 0
  %3290 = vmatmul.mubr.bf16.gmra.mxu0 %v3219
  %v3291 = vpop.f32.mrf.mxu0
  %v3292 = vadd.f32 %v3196, %v3291
  %v3293 = vpop.f32.mrf.mxu0
  %v3294 = vpop.f32.mrf.mxu0
  %v3295 = vadd.f32 %v3196, %v3294
  %v3296 = vpop.f32.mrf.mxu0
  %3297 = vmatprep.mubr.bf16.mxu0 0
  %3298 = vmatmul.mubr.bf16.gmra.mxu0 %v3222
  %v3299 = vpop.f32.mrf.mxu0
  %v3300 = vadd.f32 %v3196, %v3299
  %v3301 = vpop.f32.mrf.mxu0
  %v3302 = vpop.f32.mrf.mxu0
  %v3303 = vadd.f32 %v3196, %v3302
  %v3304 = vpop.f32.mrf.mxu0
  %3305 = vmatprep.mubr.bf16.mxu0 0
  %3306 = vmatmul.mubr.bf16.gmra.mxu0 %v3225
  %v3307 = vpop.f32.mrf.mxu0
  %v3308 = vadd.f32 %v3196, %v3307
  %v3309 = vpop.f32.mrf.mxu0
  %v3310 = vpop.f32.mrf.mxu0
  %v3311 = vadd.f32 %v3196, %v3310
  %v3312 = vpop.f32.mrf.mxu0
  %3313 = vmatprep.mubr.bf16.mxu0 0
  %3314 = vmatmul.mubr.bf16.gmra.mxu0 %v3228
  %v3315 = vpop.f32.mrf.mxu0
  %v3316 = vadd.f32 %v3196, %v3315
  %v3317 = vpop.f32.mrf.mxu0
  %v3318 = vpop.f32.mrf.mxu0
  %v3319 = vadd.f32 %v3196, %v3318
  %v3320 = vpop.f32.mrf.mxu0
  %3321 = vmatprep.mubr.bf16.mxu0 0
  %3322 = vmatmul.mubr.bf16.gmra.mxu0 %v3231
  %v3323 = vpop.f32.mrf.mxu0
  %v3324 = vadd.f32 %v3196, %v3323
  %v3325 = vpop.f32.mrf.mxu0
  %v3326 = vpop.f32.mrf.mxu0
  %v3327 = vadd.f32 %v3196, %v3326
  %v3328 = vpop.f32.mrf.mxu0
  %3329 = vdwg.mxu0
  %v3330 = vmul.f32 %v3268, 0.5
  %v3331 = vmul.f32 %v3271, 0.5
  %v3332 = vmul.f32 %v3276, 0.5
  %v3333 = vmul.f32 %v3279, 0.5
  %v3334 = vmul.f32 %v3284, 0.5
  %v3335 = vmul.f32 %v3287, 0.5
  %v3336 = vmul.f32 %v3292, 0.5
  %v3337 = vmul.f32 %v3295, 0.5
  %v3338 = vmul.f32 %v3300, 0.5
  %v3339 = vmul.f32 %v3303, 0.5
  %v3340 = vmul.f32 %v3308, 0.5
  %v3341 = vmul.f32 %v3311, 0.5
  %v3342 = vmul.f32 %v3316, 0.5
  %v3343 = vmul.f32 %v3319, 0.5
  %v3344 = vmul.f32 %v3324, 0.5
  %v3345 = vmul.f32 %v3327, 0.5
  %v3346 = vmul.f32 %v3268, 0.70710677
  %v3347 = vmul.f32 %v3271, 0.70710677
  %v3348 = vmul.f32 %v3276, 0.70710677
  %v3349 = vmul.f32 %v3279, 0.70710677
  %v3350 = vmul.f32 %v3284, 0.70710677
  %v3351 = vmul.f32 %v3287, 0.70710677
  %v3352 = vmul.f32 %v3292, 0.70710677
  %v3353 = vmul.f32 %v3295, 0.70710677
  %v3354 = vmul.f32 %v3300, 0.70710677
  %v3355 = vmul.f32 %v3303, 0.70710677
  %v3356 = vmul.f32 %v3308, 0.70710677
  %v3357 = vmul.f32 %v3311, 0.70710677
  %v3358 = vmul.f32 %v3316, 0.70710677
  %v3359 = vmul.f32 %v3319, 0.70710677
  %v3360 = vmul.f32 %v3324, 0.70710677
  %v3361 = vmul.f32 %v3327, 0.70710677
  %v3362 = verf.f32.pop %v3346
  %v3363 = verf.f32.pop %v3347
  %v3364 = verf.f32.pop %v3348
  %v3365 = verf.f32.pop %v3349
  %v3366 = verf.f32.pop %v3350
  %v3367 = verf.f32.pop %v3351
  %v3368 = verf.f32.pop %v3352
  %v3369 = verf.f32.pop %v3353
  %v3370 = verf.f32.pop %v3354
  %v3371 = verf.f32.pop %v3355
  %v3372 = verf.f32.pop %v3356
  %v3373 = verf.f32.pop %v3357
  %v3374 = verf.f32.pop %v3358
  %v3375 = verf.f32.pop %v3359
  %v3376 = verf.f32.pop %v3360
  %v3377 = verf.f32.pop %v3361
  %v3378 = vadd.f32 %v3362, 1.0
  %v3379 = vadd.f32 %v3363, 1.0
  %v3380 = vadd.f32 %v3364, 1.0
  %v3381 = vadd.f32 %v3365, 1.0
  %v3382 = vadd.f32 %v3366, 1.0
  %v3383 = vadd.f32 %v3367, 1.0
  %v3384 = vadd.f32 %v3368, 1.0
  %v3385 = vadd.f32 %v3369, 1.0
  %v3386 = vadd.f32 %v3370, 1.0
  %v3387 = vadd.f32 %v3371, 1.0
  %v3388 = vadd.f32 %v3372, 1.0
  %v3389 = vadd.f32 %v3373, 1.0
  %v3390 = vadd.f32 %v3374, 1.0
  %v3391 = vadd.f32 %v3375, 1.0
  %v3392 = vadd.f32 %v3376, 1.0
  %v3393 = vadd.f32 %v3377, 1.0
  %v3394 = vmul.f32 %v3330, %v3378
  %v3395 = vmul.f32 %v3331, %v3379
  %v3396 = vmul.f32 %v3332, %v3380
  %v3397 = vmul.f32 %v3333, %v3381
  %v3398 = vmul.f32 %v3334, %v3382
  %v3399 = vmul.f32 %v3335, %v3383
  %v3400 = vmul.f32 %v3336, %v3384
  %v3401 = vmul.f32 %v3337, %v3385
  %v3402 = vmul.f32 %v3338, %v3386
  %v3403 = vmul.f32 %v3339, %v3387
  %v3404 = vmul.f32 %v3340, %v3388
  %v3405 = vmul.f32 %v3341, %v3389
  %v3406 = vmul.f32 %v3342, %v3390
  %v3407 = vmul.f32 %v3343, %v3391
  %v3408 = vmul.f32 %v3344, %v3392
  %v3409 = vmul.f32 %v3345, %v3393
  %v3410 = vpack.c.bf16 %v3395, %v3394
  %v3411 = vpack.c.bf16 %v3397, %v3396
  %v3412 = vpack.c.bf16 %v3399, %v3398
  %v3413 = vpack.c.bf16 %v3401, %v3400
  %v3414 = vpack.c.bf16 %v3403, %v3402
  %v3415 = vpack.c.bf16 %v3405, %v3404
  %v3416 = vpack.c.bf16 %v3407, %v3406
  %v3417 = vpack.c.bf16 %v3409, %v3408
  %v3418 = vld [vmem:[%s4] sm:$0xf]
  %v3419 = vld [vmem:[%s4 + $0x4] sm:$0xf]
  %v3420 = vld [vmem:[%s4 + $0x8] sm:$0xf]
  %v3421 = vld [vmem:[%s4 + $0xc] sm:$0xf]
  %v3422 = vld [vmem:[%s4 + $0x10] sm:$0xf]
  %v3423 = vld [vmem:[%s4 + $0x14] sm:$0xf]
  %v3424 = vld [vmem:[%s4 + $0x18] sm:$0xf]
  %v3425 = vld [vmem:[%s4 + $0x1c] sm:$0xf]
  %v3426 = vld [vmem:[%s4 + $0x20] sm:$0xf]
  %v3427 = vld [vmem:[%s4 + $0x24] sm:$0xf]
  %v3428 = vld [vmem:[%s4 + $0x28] sm:$0xf]
  %v3429 = vld [vmem:[%s4 + $0x2c] sm:$0xf]
  %v3430 = vld [vmem:[%s4 + $0x30] sm:$0xf]
  %v3431 = vld [vmem:[%s4 + $0x34] sm:$0xf]
  %v3432 = vld [vmem:[%s4 + $0x38] sm:$0xf]
  %v3433 = vld [vmem:[%s4 + $0x3c] sm:$0xf]
  %v3434 = vlaneseq
  %v3435 = vshrl.u32 %v3434, 7
  %v3436 = vsub.s32 0, %v3435
  %v3437 = vrot.slane %v64, %v3436
  %v3454 = vunpack.c.l.b16 %v3418
  %v3455 = vunpack.c.l.b16 %v3419
  %v3456 = vunpack.c.l.b16 %v3420
  %v3457 = vunpack.c.l.b16 %v3421
  %v3458 = vunpack.c.l.b16 %v3422
  %v3459 = vunpack.c.l.b16 %v3423
  %v3460 = vunpack.c.l.b16 %v3424
  %v3461 = vunpack.c.l.b16 %v3425
  %v3462 = vunpack.c.l.b16 %v3426
  %v3463 = vunpack.c.l.b16 %v3427
  %v3464 = vunpack.c.l.b16 %v3428
  %v3465 = vunpack.c.l.b16 %v3429
  %v3466 = vunpack.c.l.b16 %v3430
  %v3467 = vunpack.c.l.b16 %v3431
  %v3468 = vunpack.c.l.b16 %v3432
  %v3469 = vunpack.c.l.b16 %v3433
  %v3470 = vpack.c.b16 %v3455, %v3454
  %v3471 = vpack.c.b16 %v3457, %v3456
  %v3472 = vpack.c.b16 %v3459, %v3458
  %v3473 = vpack.c.b16 %v3461, %v3460
  %v3474 = vpack.c.b16 %v3463, %v3462
  %v3475 = vpack.c.b16 %v3465, %v3464
  %v3476 = vpack.c.b16 %v3467, %v3466
  %v3477 = vpack.c.b16 %v3469, %v3468
  %3486 = vmatprep.subr.bf16.mxu0 0
  %3487 = vmatpush1.bf16.msra.mxu0 %v3477
  %3488 = vmatprep.subr.bf16.mxu0 0
  %3489 = vmatpush1.bf16.msra.mxu0 %v3476
  %3490 = vmatprep.subr.bf16.mxu0 0
  %3491 = vmatpush1.bf16.msra.mxu0 %v3475
  %3492 = vmatprep.subr.bf16.mxu0 0
  %3493 = vmatpush1.bf16.msra.mxu0 %v3474
  %3494 = vmatprep.subr.bf16.mxu0 0
  %3495 = vmatpush1.bf16.msra.mxu0 %v3473
  %3496 = vmatprep.subr.bf16.mxu0 0
  %3497 = vmatpush1.bf16.msra.mxu0 %v3472
  %3498 = vmatprep.subr.bf16.mxu0 0
  %3499 = vmatpush1.bf16.msra.mxu0 %v3471
  %3500 = vmatprep.subr.bf16.mxu0 0
  %3501 = vmatpush1.bf16.msra.mxu0 %v3470
  %3502 = vmatprep.subr.bf16.mxu0 0
  %3503 = vmatpush2.bf16.msra.mxu0 0
  %3504 = vmatprep.subr.bf16.mxu0 0
  %3505 = vmatpush2.bf16.msra.mxu0 0
  %3506 = vmatprep.subr.bf16.mxu0 0
  %3507 = vmatpush2.bf16.msra.mxu0 0
  %3508 = vmatprep.subr.bf16.mxu0 0
  %3509 = vmatpush2.bf16.msra.mxu0 0
  %3510 = vmatprep.subr.bf16.mxu0 0
  %3511 = vmatpush2.bf16.msra.mxu0 0
  %3512 = vmatprep.subr.bf16.mxu0 0
  %3513 = vmatpush2.bf16.msra.mxu0 0
  %3514 = vmatprep.subr.bf16.mxu0 0
  %3515 = vmatpush2.bf16.msra.mxu0 0
  %3516 = vmatprep.subr.bf16.mxu0 0
  %3517 = vmatpush2.bf16.msra.mxu0 0
  %3518 = vmatprep.mubr.bf16.mxu0 0
  %3519 = vmatmul.mubr.bf16.gmra.mxu0 %v3410
  %v3520 = vpop.f32.mrf.mxu0
  %v3521 = vadd.f32 %v3437, %v3520
  %v3522 = vpop.f32.mrf.mxu0
  %v3523 = vpop.f32.mrf.mxu0
  %v3524 = vadd.f32 %v3437, %v3523
  %v3525 = vpop.f32.mrf.mxu0
  %3526 = vmatprep.mubr.bf16.mxu0 0
  %3527 = vmatmul.mubr.bf16.gmra.mxu0 %v3411
  %v3528 = vpop.f32.mrf.mxu0
  %v3529 = vadd.f32 %v3437, %v3528
  %v3530 = vpop.f32.mrf.mxu0
  %v3531 = vpop.f32.mrf.mxu0
  %v3532 = vadd.f32 %v3437, %v3531
  %v3533 = vpop.f32.mrf.mxu0
  %3534 = vmatprep.mubr.bf16.mxu0 0
  %3535 = vmatmul.mubr.bf16.gmra.mxu0 %v3412
  %v3536 = vpop.f32.mrf.mxu0
  %v3537 = vadd.f32 %v3437, %v3536
  %v3538 = vpop.f32.mrf.mxu0
  %v3539 = vpop.f32.mrf.mxu0
  %v3540 = vadd.f32 %v3437, %v3539
  %v3541 = vpop.f32.mrf.mxu0
  %3542 = vmatprep.mubr.bf16.mxu0 0
  %3543 = vmatmul.mubr.bf16.gmra.mxu0 %v3413
  %v3544 = vpop.f32.mrf.mxu0
  %v3545 = vadd.f32 %v3437, %v3544
  %v3546 = vpop.f32.mrf.mxu0
  %v3547 = vpop.f32.mrf.mxu0
  %v3548 = vadd.f32 %v3437, %v3547
  %v3549 = vpop.f32.mrf.mxu0
  %3550 = vmatprep.mubr.bf16.mxu0 0
  %3551 = vmatmul.mubr.bf16.gmra.mxu0 %v3414
  %v3552 = vpop.f32.mrf.mxu0
  %v3553 = vadd.f32 %v3437, %v3552
  %v3554 = vpop.f32.mrf.mxu0
  %v3555 = vpop.f32.mrf.mxu0
  %v3556 = vadd.f32 %v3437, %v3555
  %v3557 = vpop.f32.mrf.mxu0
  %3558 = vmatprep.mubr.bf16.mxu0 0
  %3559 = vmatmul.mubr.bf16.gmra.mxu0 %v3415
  %v3560 = vpop.f32.mrf.mxu0
  %v3561 = vadd.f32 %v3437, %v3560
  %v3562 = vpop.f32.mrf.mxu0
  %v3563 = vpop.f32.mrf.mxu0
  %v3564 = vadd.f32 %v3437, %v3563
  %v3565 = vpop.f32.mrf.mxu0
  %3566 = vmatprep.mubr.bf16.mxu0 0
  %3567 = vmatmul.mubr.bf16.gmra.mxu0 %v3416
  %v3568 = vpop.f32.mrf.mxu0
  %v3569 = vadd.f32 %v3437, %v3568
  %v3570 = vpop.f32.mrf.mxu0
  %v3571 = vpop.f32.mrf.mxu0
  %v3572 = vadd.f32 %v3437, %v3571
  %v3573 = vpop.f32.mrf.mxu0
  %3574 = vmatprep.mubr.bf16.mxu0 0
  %3575 = vmatmul.mubr.bf16.gmra.mxu0 %v3417
  %v3576 = vpop.f32.mrf.mxu0
  %v3577 = vadd.f32 %v3437, %v3576
  %v3578 = vpop.f32.mrf.mxu0
  %v3579 = vpop.f32.mrf.mxu0
  %v3580 = vadd.f32 %v3437, %v3579
  %v3581 = vpop.f32.mrf.mxu0
  %3582 = vdwg.mxu0
  %v3583 = vadd.f32 %v2921, %v3521
  %v3584 = vadd.f32 %v2922, %v3524
  %v3585 = vadd.f32 %v2923, %v3529
  %v3586 = vadd.f32 %v2924, %v3532
  %v3587 = vadd.f32 %v2925, %v3537
  %v3588 = vadd.f32 %v2926, %v3540
  %v3589 = vadd.f32 %v2927, %v3545
  %v3590 = vadd.f32 %v2928, %v3548
  %v3591 = vadd.f32 %v2929, %v3553
  %v3592 = vadd.f32 %v2930, %v3556
  %v3593 = vadd.f32 %v2931, %v3561
  %v3594 = vadd.f32 %v2932, %v3564
  %v3595 = vadd.f32 %v2933, %v3569
  %v3596 = vadd.f32 %v2934, %v3572
  %v3597 = vadd.f32 %v2935, %v3577
  %v3598 = vadd.f32 %v2936, %v3580
  %3599 = vst.msk [vmem:[%s6] sm:$0xff] %vm139, %v3583
  %3600 = vst.msk [vmem:[%s6 + $0x8] sm:$0xff] %vm139, %v3584
  %3601 = vst.msk [vmem:[%s6 + $0x10] sm:$0xff] %vm139, %v3585
  %3602 = vst.msk [vmem:[%s6 + $0x18] sm:$0xff] %vm139, %v3586
  %3603 = vst.msk [vmem:[%s6 + $0x20] sm:$0xff] %vm139, %v3587
  %3604 = vst.msk [vmem:[%s6 + $0x28] sm:$0xff] %vm139, %v3588
  %3605 = vst.msk [vmem:[%s6 + $0x30] sm:$0xff] %vm139, %v3589
  %3606 = vst.msk [vmem:[%s6 + $0x38] sm:$0xff] %vm139, %v3590
  %3607 = vst.msk [vmem:[%s6 + $0x40] sm:$0xff] %vm139, %v3591
  %3608 = vst.msk [vmem:[%s6 + $0x48] sm:$0xff] %vm139, %v3592
  %3609 = vst.msk [vmem:[%s6 + $0x50] sm:$0xff] %vm139, %v3593
  %3610 = vst.msk [vmem:[%s6 + $0x58] sm:$0xff] %vm139, %v3594
  %3611 = vst.msk [vmem:[%s6 + $0x60] sm:$0xff] %vm139, %v3595
  %3612 = vst.msk [vmem:[%s6 + $0x68] sm:$0xff] %vm139, %v3596
  %3613 = vst.msk [vmem:[%s6 + $0x70] sm:$0xff] %vm139, %v3597
  %3614 = vst.msk [vmem:[%s6 + $0x78] sm:$0xff] %vm139, %v3598
  // Predicated region
  $region26: #{swin_block_forward.1} parent=0 // pred_check
    _
  $region27: #{swin_block_forward.1} parent=0 // pred_check_branch
    %3616 = sbr.rel (0) target = $region29
  $region28: #{swin_block_forward.1} parent=0 // pred_region
    _
  $region29: #{swin_block_forward.1} parent=0 // pred_fallthru
    _
  // Predicated region
  $region30: #{swin_block_forward.1} parent=0 // pred_check
    _
  $region31: #{swin_block_forward.1} parent=0 // pred_check_branch
    %3618 = sbr.rel (0) target = $region33
  $region32: #{swin_block_forward.1} parent=0 // pred_region
    _
  $region33: #{swin_block_forward.1} parent=0 // pred_fallthru
    _

</llo_original>
